<compile_context>
chip_gen: v7x
topology: tpu7x:2x2x1
jax: 0.10.0
libtpu: 0.0.40
codegen_flags: <defaults>
</compile_context>

<pallas_src>
import functools

import jax
import jax.numpy as jnp
from jax.experimental import pallas as pl
from jax.experimental.pallas import tpu as pltpu


def _encoder_layer_kernel(
    x_ref,                                   # (1, D, T)  f32  NCT input, one batch element
    wq_ref, bq_ref,                          # (D, D) bf16 (scale folded), (1, D) f32
    wkv_ref, bkv_ref,                        # (D, 2D) bf16, (1, 2D) f32
    wo_ref, bo_ref,                          # (D, D) bf16, (1, D) f32
    g1_ref, be1_ref,                         # (1, D) f32
    w1_ref, bf1_ref,                         # (D, hidden) bf16, (1, hidden) f32
    w2_ref, bf2_ref,                         # (hidden, D) bf16, (1, D) f32
    g2_ref, be2_ref,                         # (1, D) f32
    o_ref,                                   # (1, D, TQ) f32  NCT output block
    x_scr,                                   # VMEM (T, D) f32  NTC activations (residual source)
    k_scr, v_scr,                            # VMEM (H, T, Dh) bf16  cached K / V, full sequence
    *, eps, num_heads, q_tile):
    qi = pl.program_id(1)
    D = x_ref.shape[1]
    T = x_ref.shape[2]
    H = num_heads
    Dh = D // H
    TQ = q_tile
    bf16 = jnp.bfloat16

    # ---- once per batch element: NCT->NTC transpose + fused K/V projection --------
    @pl.when(qi == 0)
    def _():
        x_ntc = x_ref[0].T                                       # (T, D)  XLU transpose
        x_scr[...] = x_ntc
        kv = jnp.dot(x_ntc.astype(bf16), wkv_ref[...],
                     preferred_element_type=jnp.float32) + bkv_ref[...]   # (T, 2D)
        kvb = kv.astype(bf16)
        for h in range(H):                                       # head split = static lane slices
            k_scr[h] = kvb[:, h * Dh:(h + 1) * Dh]
            v_scr[h] = kvb[:, D + h * Dh:D + (h + 1) * Dh]

    # ---- this query tile -----------------------------------------------------------
    row0 = pl.multiple_of(qi * TQ, TQ)
    xq = x_scr[pl.ds(row0, TQ), :]                               # (TQ, D) f32 residual input

    # Q projection: single full-lane-width matmul (1/sqrt(Dh) folded into wq/bq).
    q = jnp.dot(xq.astype(bf16), wq_ref[...],
                preferred_element_type=jnp.float32) + bq_ref[...]         # (TQ, D)
    qb = q.astype(bf16)
    q_h = jnp.stack([qb[:, h * Dh:(h + 1) * Dh] for h in range(H)], axis=0)  # (H, TQ, Dh)

    # Attention, batched over heads.  (Contraction over Dh is MXU-padded; model-defined.)
    s = jnp.einsum("hqd,hkd->hqk", q_h, k_scr[...],
                   preferred_element_type=jnp.float32)           # (H, TQ, T)
    s = s - jnp.max(s, axis=-1, keepdims=True)
    p = jnp.exp(s)
    p = p * pl.reciprocal(jnp.sum(p, axis=-1, keepdims=True), approx=True)

    o_h = jnp.einsum("hqk,hkd->hqd", p.astype(bf16), v_scr[...],
                     preferred_element_type=jnp.float32).astype(bf16)     # (H, TQ, Dh)
    o_cat = jnp.concatenate([o_h[h] for h in range(H)], axis=1)           # (TQ, D) head concat
    attn = jnp.dot(o_cat, wo_ref[...],
                   preferred_element_type=jnp.float32) + bo_ref[...]      # (TQ, D)

    # Residual + LayerNorm over channels (TimeLastLayerNorm == LN over C in NTC view).
    x1 = xq + attn
    mu1 = jnp.mean(x1, axis=-1, keepdims=True)
    var1 = jnp.mean((x1 - mu1) ** 2, axis=-1, keepdims=True)
    y = (x1 - mu1) * jax.lax.rsqrt(var1 + eps) * g1_ref[...] + be1_ref[...]

    # Feed-forward: Linear -> ReLU -> Linear (dropouts are identity in eval mode).
    hdn = jnp.dot(y.astype(bf16), w1_ref[...],
                  preferred_element_type=jnp.float32) + bf1_ref[...]
    hdn = jnp.maximum(hdn, 0.0)
    ff = jnp.dot(hdn.astype(bf16), w2_ref[...],
                 preferred_element_type=jnp.float32) + bf2_ref[...]

    # Residual + second LayerNorm, then back to NCT for the output block.
    x2 = y + ff
    mu2 = jnp.mean(x2, axis=-1, keepdims=True)
    var2 = jnp.mean((x2 - mu2) ** 2, axis=-1, keepdims=True)
    out = (x2 - mu2) * jax.lax.rsqrt(var2 + eps) * g2_ref[...] + be2_ref[...]

    o_ref[0] = out.T.astype(o_ref.dtype)                         # (D, TQ)  NCT


def _pick_q_tile(T):
    # 256 fills the 256-wide MXU on v6e/v7x; 128 matches v5e; else one tile.
    for cand in (256, 128):
        if T % cand == 0:
            return cand
    return T


def encoder_layer_pallas(x_nct, params, *, num_heads, eps=1e-5, q_tile=None):
    """x_nct: (B, D, T) float32, matching the PyTorch NCT input convention."""
    B, D, T = x_nct.shape
    assert D % num_heads == 0
    Dh = D // num_heads
    hidden = params["w1"].shape[0]

    if q_tile is None:
        q_tile = _pick_q_tile(T)
    assert T % q_tile == 0, "q_tile must divide T"
    assert q_tile == T or q_tile % 128 == 0, \
        "q_tile must be a multiple of 128 (lane-dense NCT output blocks) or equal T"

    f32, bf16 = jnp.float32, jnp.bfloat16
    scale = 1.0 / (Dh ** 0.5)
    w_in, b_in = params["w_in"], params["b_in"]

    # Host-side weight prep: transposed for x @ W, K/V projections fused into (D, 2D),
    # softmax scale folded into the Q projection.
    wq = (w_in[0:D].T * scale).astype(bf16)                               # (D, D)
    bq = (b_in[0:D] * scale).reshape(1, D).astype(f32)
    wkv = jnp.concatenate([w_in[D:2 * D].T, w_in[2 * D:3 * D].T], axis=1).astype(bf16)  # (D, 2D)
    bkv = jnp.concatenate([b_in[D:2 * D], b_in[2 * D:3 * D]]).reshape(1, 2 * D).astype(f32)
    weights = [
        wq, bq, wkv, bkv,
        params["w_out"].T.astype(bf16), params["b_out"].reshape(1, D).astype(f32),
        params["g1"].reshape(1, D).astype(f32), params["be1"].reshape(1, D).astype(f32),
        params["w1"].T.astype(bf16), params["bf1"].reshape(1, hidden).astype(f32),
        params["w2"].T.astype(bf16), params["bf2"].reshape(1, D).astype(f32),
        params["g2"].reshape(1, D).astype(f32), params["be2"].reshape(1, D).astype(f32),
    ]

    def _const_spec(a):
        # Loop-invariant operand: constant index map + single buffer (double buffering
        # buys nothing here and would double its VMEM footprint -- matters on v7x).
        zeros = (0,) * a.ndim
        return pl.BlockSpec(a.shape, lambda b, qi: zeros,
                            pipeline_mode=pl.Buffered(1))

    flops = 2 * B * T * (4 * D * D + 2 * T * D + 2 * D * hidden)
    transcendentals = B * num_heads * T * T
    bytes_accessed = (2 * B * T * D) * 4 + (4 * D * D + 2 * D * hidden) * 2

    kernel = functools.partial(_encoder_layer_kernel, eps=eps,
                               num_heads=num_heads, q_tile=q_tile)
    return pl.pallas_call(
        kernel,
        out_shape=jax.ShapeDtypeStruct((B, D, T), x_nct.dtype),
        grid=(B, T // q_tile),
        in_specs=[pl.BlockSpec((1, D, T), lambda b, qi: (b, 0, 0))]      # NCT, full sequence
                 + [_const_spec(w) for w in weights],
        out_specs=pl.BlockSpec((1, D, q_tile), lambda b, qi: (b, 0, qi)),
        scratch_shapes=[
            pltpu.VMEM((T, D), jnp.float32),                   # NTC activations (residual)
            pltpu.VMEM((num_heads, T, Dh), jnp.bfloat16),      # cached K
            pltpu.VMEM((num_heads, T, Dh), jnp.bfloat16),      # cached V
        ],
        compiler_params=pltpu.CompilerParams(
            # B "parallel" keeps both v7x TensorCores busy; the query-tile axis is
            # "arbitrary" because the K/V/x scratch carries state across it.
            dimension_semantics=("parallel", "arbitrary"),
            vmem_limit_bytes=64 * 1024 * 1024),
        cost_estimate=pl.CostEstimate(flops=flops,
                                      transcendentals=transcendentals,
                                      bytes_accessed=bytes_accessed),
    )(x_nct, *weights)


def encoder_layer_ref(x_nct, params, *, num_heads, eps=1e-5):
    """Pure-JAX f32 reference mirroring the PyTorch forward (eval mode)."""
    B, D, T = x_nct.shape
    Dh = D // num_heads
    x = jnp.transpose(x_nct, (0, 2, 1))  # (B, T, D)

    qkv = x @ params["w_in"].T + params["b_in"]
    q, k, v = jnp.split(qkv, 3, axis=-1)

    def split_heads(a):  # (B, T, D) -> (B, H, T, Dh)
        return a.reshape(B, T, num_heads, Dh).transpose(0, 2, 1, 3)

    qh, kh, vh = split_heads(q), split_heads(k), split_heads(v)
    s = jnp.einsum("bhqd,bhkd->bhqk", qh, kh) / (Dh ** 0.5)
    p = jax.nn.softmax(s, axis=-1)
    o = jnp.einsum("bhqk,bhkd->bhqd", p, vh).transpose(0, 2, 1, 3).reshape(B, T, D)
    attn = o @ params["w_out"].T + params["b_out"]

    def ln(a, g, b):
        mu = jnp.mean(a, axis=-1, keepdims=True)
        var = jnp.mean((a - mu) ** 2, axis=-1, keepdims=True)
        return (a - mu) * jax.lax.rsqrt(var + eps) * g + b

    x1 = ln(x + attn, params["g1"], params["be1"])
    ff = jnp.maximum(x1 @ params["w1"].T + params["bf1"], 0.0) @ params["w2"].T + params["bf2"]
    x2 = ln(x1 + ff, params["g2"], params["be2"])
    return jnp.transpose(x2, (0, 2, 1))


def make_params(key, dim, num_heads, hidden_dim):
    ks = jax.random.split(key, 6)
    f32 = jnp.float32
    return {
        # nn.MultiheadAttention packed in-projection + out-projection
        "w_in": 0.1 * jax.random.normal(ks[0], (3 * dim, dim), f32),
        "b_in": 0.05 * jax.random.normal(ks[1], (3 * dim,), f32),
        "w_out": 0.1 * jax.random.normal(ks[2], (dim, dim), f32),
        "b_out": jnp.zeros((dim,), f32),
        # norm1 / norm2 (LayerNorm over the channel dim)
        "g1": jnp.ones((dim,), f32),
        "be1": jnp.zeros((dim,), f32),
        "g2": jnp.ones((dim,), f32),
        "be2": jnp.zeros((dim,), f32),
        # feed-forward block: Linear(dim, hidden) -> ReLU -> Linear(hidden, dim)
        "w1": 0.1 * jax.random.normal(ks[3], (hidden_dim, dim), f32),
        "bf1": jnp.zeros((hidden_dim,), f32),
        "w2": 0.1 * jax.random.normal(ks[4], (dim, hidden_dim), f32),
        "bf2": jnp.zeros((dim,), f32),
    }


if __name__ == "__main__":
    # Small but lane-dense shapes: D a multiple of 128, T a multiple of the 128-row
    # query tile so the K/V cache-reuse path (2 query tiles per batch) is exercised,
    # and B=2 gives the "parallel" batch axis two blocks (v7x megacore).
    B, dim, T = 2, 128, 256
    num_heads, hidden_dim = 4, 256

    key = jax.random.PRNGKey(0)
    k_x, k_p = jax.random.split(key)
    x_nct = jax.random.normal(k_x, (B, dim, T), jnp.float32)   # NCT input
    params = make_params(k_p, dim, num_heads, hidden_dim)

    out = encoder_layer_pallas(x_nct, params, num_heads=num_heads, q_tile=128)
    out = jax.block_until_ready(out)

    ref = encoder_layer_ref(x_nct, params, num_heads=num_heads)
    assert out.shape == x_nct.shape
    max_err = float(jnp.max(jnp.abs(out - ref)))
    # bf16 MXU operands + approx softmax reciprocal -> looser tolerance than pure f32.
    assert jnp.allclose(out, ref, atol=5e-2, rtol=5e-2), \
        f"mismatch vs reference (max abs err {max_err:.4f})"

    print("KERNEL_OK")
</pallas_src>

<mosaic_0001>
module attributes {stable_mosaic.version = 11 : i64} {
  func.func @_encoder_layer_kernel(%arg0: i32, %arg1: i32, %arg2: memref<1x128x256xf32, #tpu.memory_space<vmem>>, %arg3: memref<128x128xbf16, #tpu.memory_space<vmem>>, %arg4: memref<1x128xf32, #tpu.memory_space<vmem>>, %arg5: memref<128x256xbf16, #tpu.memory_space<vmem>>, %arg6: memref<1x256xf32, #tpu.memory_space<vmem>>, %arg7: memref<128x128xbf16, #tpu.memory_space<vmem>>, %arg8: memref<1x128xf32, #tpu.memory_space<vmem>>, %arg9: memref<1x128xf32, #tpu.memory_space<vmem>>, %arg10: memref<1x128xf32, #tpu.memory_space<vmem>>, %arg11: memref<128x256xbf16, #tpu.memory_space<vmem>>, %arg12: memref<1x256xf32, #tpu.memory_space<vmem>>, %arg13: memref<256x128xbf16, #tpu.memory_space<vmem>>, %arg14: memref<1x128xf32, #tpu.memory_space<vmem>>, %arg15: memref<1x128xf32, #tpu.memory_space<vmem>>, %arg16: memref<1x128xf32, #tpu.memory_space<vmem>>, %arg17: memref<1x128x128xf32, #tpu.memory_space<vmem>>, %arg18: memref<256x128xf32, #tpu.memory_space<vmem>>, %arg19: memref<4x256x32xbf16, #tpu.memory_space<vmem>>, %arg20: memref<4x256x32xbf16, #tpu.memory_space<vmem>>) attributes {dimension_semantics = [#tpu.dimension_semantics<parallel>, #tpu.dimension_semantics<arbitrary>], iteration_bounds = array<i64: 2, 2>, scalar_prefetch = 0 : i64, scratch_operands = 3 : i64, tpu.core_type = #tpu.core_type<tc>, window_params = [{transform_indices = @transform_0, window_bounds = array<i64: 1, 128, 256>}, {pipeline_mode = #tpu.pipeline_mode<synchronous>, transform_indices = @transform_1, window_bounds = array<i64: 128, 128>}, {pipeline_mode = #tpu.pipeline_mode<synchronous>, transform_indices = @transform_2, window_bounds = array<i64: 1, 128>}, {pipeline_mode = #tpu.pipeline_mode<synchronous>, transform_indices = @transform_3, window_bounds = array<i64: 128, 256>}, {pipeline_mode = #tpu.pipeline_mode<synchronous>, transform_indices = @transform_4, window_bounds = array<i64: 1, 256>}, {pipeline_mode = #tpu.pipeline_mode<synchronous>, transform_indices = @transform_5, window_bounds = array<i64: 128, 128>}, {pipeline_mode = #tpu.pipeline_mode<synchronous>, transform_indices = @transform_6, window_bounds = array<i64: 1, 128>}, {pipeline_mode = #tpu.pipeline_mode<synchronous>, transform_indices = @transform_7, window_bounds = array<i64: 1, 128>}, {pipeline_mode = #tpu.pipeline_mode<synchronous>, transform_indices = @transform_8, window_bounds = array<i64: 1, 128>}, {pipeline_mode = #tpu.pipeline_mode<synchronous>, transform_indices = @transform_9, window_bounds = array<i64: 128, 256>}, {pipeline_mode = #tpu.pipeline_mode<synchronous>, transform_indices = @transform_10, window_bounds = array<i64: 1, 256>}, {pipeline_mode = #tpu.pipeline_mode<synchronous>, transform_indices = @transform_11, window_bounds = array<i64: 256, 128>}, {pipeline_mode = #tpu.pipeline_mode<synchronous>, transform_indices = @transform_12, window_bounds = array<i64: 1, 128>}, {pipeline_mode = #tpu.pipeline_mode<synchronous>, transform_indices = @transform_13, window_bounds = array<i64: 1, 128>}, {pipeline_mode = #tpu.pipeline_mode<synchronous>, transform_indices = @transform_14, window_bounds = array<i64: 1, 128>}, {transform_indices = @transform_15, window_bounds = array<i64: 1, 128, 128>}]} {
    %c0_i32 = arith.constant 0 : i32
    %0 = arith.cmpi eq, %arg1, %c0_i32 : i32
    %1 = arith.extui %0 : i1 to i32
    %c0_i32_0 = arith.constant 0 : i32
    %2 = arith.cmpi ne, %1, %c0_i32_0 : i32
    scf.if %2 {
      %c0_52 = arith.constant 0 : index
      %c0_53 = arith.constant 0 : index
      %c0_54 = arith.constant 0 : index
      %121 = vector.load %arg2[%c0_52, %c0_53, %c0_54] : memref<1x128x256xf32, #tpu.memory_space<vmem>>, vector<1x128x256xf32>
      %122 = vector.shape_cast %121 : vector<1x128x256xf32> to vector<128x256xf32>
      %123 = tpu.transpose %122, [1, 0] : vector<128x256xf32> -> vector<256x128xf32>
      %c0_55 = arith.constant 0 : index
      %c0_56 = arith.constant 0 : index
      %124 = vector.load %arg18[%c0_55, %c0_56] : memref<256x128xf32, #tpu.memory_space<vmem>>, vector<256x128xf32>
      tpu.vector_store %arg18[%c0_55, %c0_56], %123 {strides = array<i32>} : memref<256x128xf32, #tpu.memory_space<vmem>>, vector<256x128xf32>,
      %125 = arith.truncf %123 : vector<256x128xf32> to vector<256x128xbf16>
      %c0_57 = arith.constant 0 : index
      %c0_58 = arith.constant 0 : index
      %126 = vector.load %arg5[%c0_57, %c0_58] : memref<128x256xbf16, #tpu.memory_space<vmem>>, vector<128x256xbf16>
      %cst_59 = arith.constant dense<0.000000e+00> : vector<256x256xf32>
      %127 = tpu.matmul %125, %126, %cst_59 {dimension_numbers = #tpu.dot_dimension_numbers<[1], [0], [0], [1], [0, 0, 1, 1], [], []>} : vector<256x128xbf16>, vector<128x256xbf16>, vector<256x256xf32> -> vector<256x256xf32>
      %c0_60 = arith.constant 0 : index
      %c0_61 = arith.constant 0 : index
      %128 = vector.load %arg6[%c0_60, %c0_61] : memref<1x256xf32, #tpu.memory_space<vmem>>, vector<1x256xf32>
      %129 = vector.broadcast %128 : vector<1x256xf32> to vector<256x256xf32>
      %130 = arith.addf %127, %129 : vector<256x256xf32>
      %131 = arith.truncf %130 : vector<256x256xf32> to vector<256x256xbf16>
      %132 = vector.extract_strided_slice %131 {offsets = [0, 0], sizes = [256, 32], strides = [1, 1]} : vector<256x256xbf16> to vector<256x32xbf16>
      %c0_62 = arith.constant 0 : index
      %c0_63 = arith.constant 0 : index
      %c0_64 = arith.constant 0 : index
      %133 = vector.load %arg19[%c0_62, %c0_63, %c0_64] : memref<4x256x32xbf16, #tpu.memory_space<vmem>>, vector<1x256x32xbf16>
      %134 = vector.shape_cast %133 : vector<1x256x32xbf16> to vector<256x32xbf16>
      %135 = vector.shape_cast %132 : vector<256x32xbf16> to vector<1x256x32xbf16>
      tpu.vector_store %arg19[%c0_62, %c0_63, %c0_64], %135 {strides = array<i32>} : memref<4x256x32xbf16, #tpu.memory_space<vmem>>, vector<1x256x32xbf16>,
      %136 = vector.extract_strided_slice %131 {offsets = [0, 128], sizes = [256, 32], strides = [1, 1]} : vector<256x256xbf16> to vector<256x32xbf16>
      %c0_65 = arith.constant 0 : index
      %c0_66 = arith.constant 0 : index
      %c0_67 = arith.constant 0 : index
      %137 = vector.load %arg20[%c0_65, %c0_66, %c0_67] : memref<4x256x32xbf16, #tpu.memory_space<vmem>>, vector<1x256x32xbf16>
      %138 = vector.shape_cast %137 : vector<1x256x32xbf16> to vector<256x32xbf16>
      %139 = vector.shape_cast %136 : vector<256x32xbf16> to vector<1x256x32xbf16>
      tpu.vector_store %arg20[%c0_65, %c0_66, %c0_67], %139 {strides = array<i32>} : memref<4x256x32xbf16, #tpu.memory_space<vmem>>, vector<1x256x32xbf16>,
      %140 = vector.extract_strided_slice %131 {offsets = [0, 32], sizes = [256, 32], strides = [1, 1]} : vector<256x256xbf16> to vector<256x32xbf16>
      %c1 = arith.constant 1 : index
      %c0_68 = arith.constant 0 : index
      %c0_69 = arith.constant 0 : index
      %141 = vector.load %arg19[%c1, %c0_68, %c0_69] : memref<4x256x32xbf16, #tpu.memory_space<vmem>>, vector<1x256x32xbf16>
      %142 = vector.shape_cast %141 : vector<1x256x32xbf16> to vector<256x32xbf16>
      %143 = vector.shape_cast %140 : vector<256x32xbf16> to vector<1x256x32xbf16>
      tpu.vector_store %arg19[%c1, %c0_68, %c0_69], %143 {strides = array<i32>} : memref<4x256x32xbf16, #tpu.memory_space<vmem>>, vector<1x256x32xbf16>,
      %144 = vector.extract_strided_slice %131 {offsets = [0, 160], sizes = [256, 32], strides = [1, 1]} : vector<256x256xbf16> to vector<256x32xbf16>
      %c1_70 = arith.constant 1 : index
      %c0_71 = arith.constant 0 : index
      %c0_72 = arith.constant 0 : index
      %145 = vector.load %arg20[%c1_70, %c0_71, %c0_72] : memref<4x256x32xbf16, #tpu.memory_space<vmem>>, vector<1x256x32xbf16>
      %146 = vector.shape_cast %145 : vector<1x256x32xbf16> to vector<256x32xbf16>
      %147 = vector.shape_cast %144 : vector<256x32xbf16> to vector<1x256x32xbf16>
      tpu.vector_store %arg20[%c1_70, %c0_71, %c0_72], %147 {strides = array<i32>} : memref<4x256x32xbf16, #tpu.memory_space<vmem>>, vector<1x256x32xbf16>,
      %148 = vector.extract_strided_slice %131 {offsets = [0, 64], sizes = [256, 32], strides = [1, 1]} : vector<256x256xbf16> to vector<256x32xbf16>
      %c2 = arith.constant 2 : index
      %c0_73 = arith.constant 0 : index
      %c0_74 = arith.constant 0 : index
      %149 = vector.load %arg19[%c2, %c0_73, %c0_74] : memref<4x256x32xbf16, #tpu.memory_space<vmem>>, vector<1x256x32xbf16>
      %150 = vector.shape_cast %149 : vector<1x256x32xbf16> to vector<256x32xbf16>
      %151 = vector.shape_cast %148 : vector<256x32xbf16> to vector<1x256x32xbf16>
      tpu.vector_store %arg19[%c2, %c0_73, %c0_74], %151 {strides = array<i32>} : memref<4x256x32xbf16, #tpu.memory_space<vmem>>, vector<1x256x32xbf16>,
      %152 = vector.extract_strided_slice %131 {offsets = [0, 192], sizes = [256, 32], strides = [1, 1]} : vector<256x256xbf16> to vector<256x32xbf16>
      %c2_75 = arith.constant 2 : index
      %c0_76 = arith.constant 0 : index
      %c0_77 = arith.constant 0 : index
      %153 = vector.load %arg20[%c2_75, %c0_76, %c0_77] : memref<4x256x32xbf16, #tpu.memory_space<vmem>>, vector<1x256x32xbf16>
      %154 = vector.shape_cast %153 : vector<1x256x32xbf16> to vector<256x32xbf16>
      %155 = vector.shape_cast %152 : vector<256x32xbf16> to vector<1x256x32xbf16>
      tpu.vector_store %arg20[%c2_75, %c0_76, %c0_77], %155 {strides = array<i32>} : memref<4x256x32xbf16, #tpu.memory_space<vmem>>, vector<1x256x32xbf16>,
      %156 = vector.extract_strided_slice %131 {offsets = [0, 96], sizes = [256, 32], strides = [1, 1]} : vector<256x256xbf16> to vector<256x32xbf16>
      %c3 = arith.constant 3 : index
      %c0_78 = arith.constant 0 : index
      %c0_79 = arith.constant 0 : index
      %157 = vector.load %arg19[%c3, %c0_78, %c0_79] : memref<4x256x32xbf16, #tpu.memory_space<vmem>>, vector<1x256x32xbf16>
      %158 = vector.shape_cast %157 : vector<1x256x32xbf16> to vector<256x32xbf16>
      %159 = vector.shape_cast %156 : vector<256x32xbf16> to vector<1x256x32xbf16>
      tpu.vector_store %arg19[%c3, %c0_78, %c0_79], %159 {strides = array<i32>} : memref<4x256x32xbf16, #tpu.memory_space<vmem>>, vector<1x256x32xbf16>,
      %160 = vector.extract_strided_slice %131 {offsets = [0, 224], sizes = [256, 32], strides = [1, 1]} : vector<256x256xbf16> to vector<256x32xbf16>
      %c3_80 = arith.constant 3 : index
      %c0_81 = arith.constant 0 : index
      %c0_82 = arith.constant 0 : index
      %161 = vector.load %arg20[%c3_80, %c0_81, %c0_82] : memref<4x256x32xbf16, #tpu.memory_space<vmem>>, vector<1x256x32xbf16>
      %162 = vector.shape_cast %161 : vector<1x256x32xbf16> to vector<256x32xbf16>
      %163 = vector.shape_cast %160 : vector<256x32xbf16> to vector<1x256x32xbf16>
      tpu.vector_store %arg20[%c3_80, %c0_81, %c0_82], %163 {strides = array<i32>} : memref<4x256x32xbf16, #tpu.memory_space<vmem>>, vector<1x256x32xbf16>,
    } else {
    }
    %c128_i32 = arith.constant 128 : i32
    %3 = arith.muli %arg1, %c128_i32 : i32
    %4 = tpu.assume_multiple %3, 128 : i32
    %5 = arith.index_cast %4 : i32 to index
    %c0 = arith.constant 0 : index
    %6 = vector.load %arg18[%5, %c0] : memref<256x128xf32, #tpu.memory_space<vmem>>, vector<128x128xf32>
    %7 = arith.truncf %6 : vector<128x128xf32> to vector<128x128xbf16>
    %c0_1 = arith.constant 0 : index
    %c0_2 = arith.constant 0 : index
    %8 = vector.load %arg3[%c0_1, %c0_2] : memref<128x128xbf16, #tpu.memory_space<vmem>>, vector<128x128xbf16>
    %cst = arith.constant dense<0.000000e+00> : vector<128x128xf32>
    %9 = tpu.matmul %7, %8, %cst {dimension_numbers = #tpu.dot_dimension_numbers<[1], [0], [0], [1], [0, 0, 1, 1], [], []>} : vector<128x128xbf16>, vector<128x128xbf16>, vector<128x128xf32> -> vector<128x128xf32>
    %c0_3 = arith.constant 0 : index
    %c0_4 = arith.constant 0 : index
    %10 = vector.load %arg4[%c0_3, %c0_4] : memref<1x128xf32, #tpu.memory_space<vmem>>, vector<1x128xf32>
    %11 = vector.broadcast %10 : vector<1x128xf32> to vector<128x128xf32>
    %12 = arith.addf %9, %11 : vector<128x128xf32>
    %13 = arith.truncf %12 : vector<128x128xf32> to vector<128x128xbf16>
    %14 = vector.extract_strided_slice %13 {offsets = [0, 0], sizes = [128, 32], strides = [1, 1]} : vector<128x128xbf16> to vector<128x32xbf16>
    %15 = vector.extract_strided_slice %13 {offsets = [0, 32], sizes = [128, 32], strides = [1, 1]} : vector<128x128xbf16> to vector<128x32xbf16>
    %16 = vector.extract_strided_slice %13 {offsets = [0, 64], sizes = [128, 32], strides = [1, 1]} : vector<128x128xbf16> to vector<128x32xbf16>
    %17 = vector.extract_strided_slice %13 {offsets = [0, 96], sizes = [128, 32], strides = [1, 1]} : vector<128x128xbf16> to vector<128x32xbf16>
    %18 = vector.shape_cast %14 : vector<128x32xbf16> to vector<1x128x32xbf16>
    %19 = vector.shape_cast %15 : vector<128x32xbf16> to vector<1x128x32xbf16>
    %20 = vector.shape_cast %16 : vector<128x32xbf16> to vector<1x128x32xbf16>
    %21 = vector.shape_cast %17 : vector<128x32xbf16> to vector<1x128x32xbf16>
    %22 = tpu.concatenate %18, %19, %20, %21 in 0 : vector<1x128x32xbf16>, vector<1x128x32xbf16>, vector<1x128x32xbf16>, vector<1x128x32xbf16> -> vector<4x128x32xbf16>
    %c0_5 = arith.constant 0 : index
    %c0_6 = arith.constant 0 : index
    %c0_7 = arith.constant 0 : index
    %23 = vector.load %arg19[%c0_5, %c0_6, %c0_7] : memref<4x256x32xbf16, #tpu.memory_space<vmem>>, vector<4x256x32xbf16>
    "tpu.trace_start"() <{level = 10 : i32, message = "hqd,hkd->hqk"}> : () -> ()
    %cst_8 = arith.constant dense<0.000000e+00> : vector<4x128x256xf32>
    %24 = tpu.matmul %22, %23, %cst_8 {dimension_numbers = #tpu.dot_dimension_numbers<[2], [2], [1], [1], [0, 0, 0, 1, 1, 1], [0], [0]>} : vector<4x128x32xbf16>, vector<4x256x32xbf16>, vector<4x128x256xf32> -> vector<4x128x256xf32>
    "tpu.trace_stop"() : () -> ()
    %cst_9 = arith.constant dense<0xFF800000> : vector<4x128xf32>
    %25 = vector.multi_reduction <maximumf>, %24, %cst_9 [2] : vector<4x128x256xf32> to vector<4x128xf32>
    %26 = vector.shape_cast %25 : vector<4x128xf32> to vector<4x128x1xf32>
    %27 = vector.broadcast %26 : vector<4x128x1xf32> to vector<4x128x256xf32>
    %28 = arith.subf %24, %27 : vector<4x128x256xf32>
    %29 = math.exp %28 : vector<4x128x256xf32>
    %cst_10 = arith.constant dense<0.000000e+00> : vector<4x128xf32>
    %30 = vector.multi_reduction <add>, %29, %cst_10 [2] : vector<4x128x256xf32> to vector<4x128xf32>
    %31 = vector.shape_cast %30 : vector<4x128xf32> to vector<4x128x1xf32>
    %32 = tpu.reciprocal %31 {approx = true} : vector<4x128x1xf32> -> vector<4x128x1xf32>
    %33 = vector.broadcast %32 : vector<4x128x1xf32> to vector<4x128x256xf32>
    %34 = arith.mulf %29, %33 : vector<4x128x256xf32>
    %35 = arith.truncf %34 : vector<4x128x256xf32> to vector<4x128x256xbf16>
    %c0_11 = arith.constant 0 : index
    %c0_12 = arith.constant 0 : index
    %c0_13 = arith.constant 0 : index
    %36 = vector.load %arg20[%c0_11, %c0_12, %c0_13] : memref<4x256x32xbf16, #tpu.memory_space<vmem>>, vector<4x256x32xbf16>
    "tpu.trace_start"() <{level = 10 : i32, message = "hqk,hkd->hqd"}> : () -> ()
    %cst_14 = arith.constant dense<0.000000e+00> : vector<4x128x32xf32>
    %37 = tpu.matmul %35, %36, %cst_14 {dimension_numbers = #tpu.dot_dimension_numbers<[2], [1], [1], [2], [0, 0, 0, 1, 1, 2], [0], [0]>} : vector<4x128x256xbf16>, vector<4x256x32xbf16>, vector<4x128x32xf32> -> vector<4x128x32xf32>
    "tpu.trace_stop"() : () -> ()
    %38 = arith.truncf %37 : vector<4x128x32xf32> to vector<4x128x32xbf16>
    %39 = vector.extract_strided_slice %38 {offsets = [0, 0, 0], sizes = [1, 128, 32], strides = [1, 1, 1]} : vector<4x128x32xbf16> to vector<1x128x32xbf16>
    %40 = vector.shape_cast %39 : vector<1x128x32xbf16> to vector<128x32xbf16>
    %41 = vector.extract_strided_slice %38 {offsets = [1, 0, 0], sizes = [1, 128, 32], strides = [1, 1, 1]} : vector<4x128x32xbf16> to vector<1x128x32xbf16>
    %42 = vector.shape_cast %41 : vector<1x128x32xbf16> to vector<128x32xbf16>
    %43 = vector.extract_strided_slice %38 {offsets = [2, 0, 0], sizes = [1, 128, 32], strides = [1, 1, 1]} : vector<4x128x32xbf16> to vector<1x128x32xbf16>
    %44 = vector.shape_cast %43 : vector<1x128x32xbf16> to vector<128x32xbf16>
    %45 = vector.extract_strided_slice %38 {offsets = [3, 0, 0], sizes = [1, 128, 32], strides = [1, 1, 1]} : vector<4x128x32xbf16> to vector<1x128x32xbf16>
    %46 = vector.shape_cast %45 : vector<1x128x32xbf16> to vector<128x32xbf16>
    %47 = tpu.concatenate %40, %42, %44, %46 in 1 : vector<128x32xbf16>, vector<128x32xbf16>, vector<128x32xbf16>, vector<128x32xbf16> -> vector<128x128xbf16>
    %c0_15 = arith.constant 0 : index
    %c0_16 = arith.constant 0 : index
    %48 = vector.load %arg7[%c0_15, %c0_16] : memref<128x128xbf16, #tpu.memory_space<vmem>>, vector<128x128xbf16>
    %cst_17 = arith.constant dense<0.000000e+00> : vector<128x128xf32>
    %49 = tpu.matmul %47, %48, %cst_17 {dimension_numbers = #tpu.dot_dimension_numbers<[1], [0], [0], [1], [0, 0, 1, 1], [], []>} : vector<128x128xbf16>, vector<128x128xbf16>, vector<128x128xf32> -> vector<128x128xf32>
    %c0_18 = arith.constant 0 : index
    %c0_19 = arith.constant 0 : index
    %50 = vector.load %arg8[%c0_18, %c0_19] : memref<1x128xf32, #tpu.memory_space<vmem>>, vector<1x128xf32>
    %51 = vector.broadcast %50 : vector<1x128xf32> to vector<128x128xf32>
    %52 = arith.addf %49, %51 : vector<128x128xf32>
    %53 = arith.addf %6, %52 : vector<128x128xf32>
    %cst_20 = arith.constant dense<0.000000e+00> : vector<128xf32>
    %54 = vector.multi_reduction <add>, %53, %cst_20 [1] : vector<128x128xf32> to vector<128xf32>
    %55 = vector.shape_cast %54 : vector<128xf32> to vector<128x1xf32>
    %cst_21 = arith.constant 1.280000e+02 : f32
    %56 = vector.broadcast %cst_21 : f32 to vector<128x1xf32>
    %57 = arith.divf %55, %56 : vector<128x1xf32>
    %58 = vector.broadcast %57 : vector<128x1xf32> to vector<128x128xf32>
    %59 = arith.subf %53, %58 : vector<128x128xf32>
    %60 = arith.mulf %59, %59 : vector<128x128xf32>
    %cst_22 = arith.constant dense<0.000000e+00> : vector<128xf32>
    %61 = vector.multi_reduction <add>, %60, %cst_22 [1] : vector<128x128xf32> to vector<128xf32>
    %62 = vector.shape_cast %61 : vector<128xf32> to vector<128x1xf32>
    %cst_23 = arith.constant 1.280000e+02 : f32
    %63 = vector.broadcast %cst_23 : f32 to vector<128x1xf32>
    %64 = arith.divf %62, %63 : vector<128x1xf32>
    %65 = vector.broadcast %57 : vector<128x1xf32> to vector<128x128xf32>
    %66 = arith.subf %53, %65 : vector<128x128xf32>
    %cst_24 = arith.constant 9.99999974E-6 : f32
    %67 = vector.broadcast %cst_24 : f32 to vector<128x1xf32>
    %68 = arith.addf %64, %67 : vector<128x1xf32>
    %69 = math.rsqrt %68 : vector<128x1xf32>
    %70 = vector.broadcast %69 : vector<128x1xf32> to vector<128x128xf32>
    %71 = arith.mulf %66, %70 : vector<128x128xf32>
    %c0_25 = arith.constant 0 : index
    %c0_26 = arith.constant 0 : index
    %72 = vector.load %arg9[%c0_25, %c0_26] : memref<1x128xf32, #tpu.memory_space<vmem>>, vector<1x128xf32>
    %73 = vector.broadcast %72 : vector<1x128xf32> to vector<128x128xf32>
    %74 = arith.mulf %71, %73 : vector<128x128xf32>
    %c0_27 = arith.constant 0 : index
    %c0_28 = arith.constant 0 : index
    %75 = vector.load %arg10[%c0_27, %c0_28] : memref<1x128xf32, #tpu.memory_space<vmem>>, vector<1x128xf32>
    %76 = vector.broadcast %75 : vector<1x128xf32> to vector<128x128xf32>
    %77 = arith.addf %74, %76 : vector<128x128xf32>
    %78 = arith.truncf %77 : vector<128x128xf32> to vector<128x128xbf16>
    %c0_29 = arith.constant 0 : index
    %c0_30 = arith.constant 0 : index
    %79 = vector.load %arg11[%c0_29, %c0_30] : memref<128x256xbf16, #tpu.memory_space<vmem>>, vector<128x256xbf16>
    %cst_31 = arith.constant dense<0.000000e+00> : vector<128x256xf32>
    %80 = tpu.matmul %78, %79, %cst_31 {dimension_numbers = #tpu.dot_dimension_numbers<[1], [0], [0], [1], [0, 0, 1, 1], [], []>} : vector<128x128xbf16>, vector<128x256xbf16>, vector<128x256xf32> -> vector<128x256xf32>
    %c0_32 = arith.constant 0 : index
    %c0_33 = arith.constant 0 : index
    %81 = vector.load %arg12[%c0_32, %c0_33] : memref<1x256xf32, #tpu.memory_space<vmem>>, vector<1x256xf32>
    %82 = vector.broadcast %81 : vector<1x256xf32> to vector<128x256xf32>
    %83 = arith.addf %80, %82 : vector<128x256xf32>
    %cst_34 = arith.constant 0.000000e+00 : f32
    %84 = vector.broadcast %cst_34 : f32 to vector<128x256xf32>
    %85 = arith.maximumf %83, %84 : vector<128x256xf32>
    %86 = arith.truncf %85 : vector<128x256xf32> to vector<128x256xbf16>
    %c0_35 = arith.constant 0 : index
    %c0_36 = arith.constant 0 : index
    %87 = vector.load %arg13[%c0_35, %c0_36] : memref<256x128xbf16, #tpu.memory_space<vmem>>, vector<256x128xbf16>
    %cst_37 = arith.constant dense<0.000000e+00> : vector<128x128xf32>
    %88 = tpu.matmul %86, %87, %cst_37 {dimension_numbers = #tpu.dot_dimension_numbers<[1], [0], [0], [1], [0, 0, 1, 1], [], []>} : vector<128x256xbf16>, vector<256x128xbf16>, vector<128x128xf32> -> vector<128x128xf32>
    %c0_38 = arith.constant 0 : index
    %c0_39 = arith.constant 0 : index
    %89 = vector.load %arg14[%c0_38, %c0_39] : memref<1x128xf32, #tpu.memory_space<vmem>>, vector<1x128xf32>
    %90 = vector.broadcast %89 : vector<1x128xf32> to vector<128x128xf32>
    %91 = arith.addf %88, %90 : vector<128x128xf32>
    %92 = arith.addf %77, %91 : vector<128x128xf32>
    %cst_40 = arith.constant dense<0.000000e+00> : vector<128xf32>
    %93 = vector.multi_reduction <add>, %92, %cst_40 [1] : vector<128x128xf32> to vector<128xf32>
    %94 = vector.shape_cast %93 : vector<128xf32> to vector<128x1xf32>
    %cst_41 = arith.constant 1.280000e+02 : f32
    %95 = vector.broadcast %cst_41 : f32 to vector<128x1xf32>
    %96 = arith.divf %94, %95 : vector<128x1xf32>
    %97 = vector.broadcast %96 : vector<128x1xf32> to vector<128x128xf32>
    %98 = arith.subf %92, %97 : vector<128x128xf32>
    %99 = arith.mulf %98, %98 : vector<128x128xf32>
    %cst_42 = arith.constant dense<0.000000e+00> : vector<128xf32>
    %100 = vector.multi_reduction <add>, %99, %cst_42 [1] : vector<128x128xf32> to vector<128xf32>
    %101 = vector.shape_cast %100 : vector<128xf32> to vector<128x1xf32>
    %cst_43 = arith.constant 1.280000e+02 : f32
    %102 = vector.broadcast %cst_43 : f32 to vector<128x1xf32>
    %103 = arith.divf %101, %102 : vector<128x1xf32>
    %104 = vector.broadcast %96 : vector<128x1xf32> to vector<128x128xf32>
    %105 = arith.subf %92, %104 : vector<128x128xf32>
    %cst_44 = arith.constant 9.99999974E-6 : f32
    %106 = vector.broadcast %cst_44 : f32 to vector<128x1xf32>
    %107 = arith.addf %103, %106 : vector<128x1xf32>
    %108 = math.rsqrt %107 : vector<128x1xf32>
    %109 = vector.broadcast %108 : vector<128x1xf32> to vector<128x128xf32>
    %110 = arith.mulf %105, %109 : vector<128x128xf32>
    %c0_45 = arith.constant 0 : index
    %c0_46 = arith.constant 0 : index
    %111 = vector.load %arg15[%c0_45, %c0_46] : memref<1x128xf32, #tpu.memory_space<vmem>>, vector<1x128xf32>
    %112 = vector.broadcast %111 : vector<1x128xf32> to vector<128x128xf32>
    %113 = arith.mulf %110, %112 : vector<128x128xf32>
    %c0_47 = arith.constant 0 : index
    %c0_48 = arith.constant 0 : index
    %114 = vector.load %arg16[%c0_47, %c0_48] : memref<1x128xf32, #tpu.memory_space<vmem>>, vector<1x128xf32>
    %115 = vector.broadcast %114 : vector<1x128xf32> to vector<128x128xf32>
    %116 = arith.addf %113, %115 : vector<128x128xf32>
    %117 = tpu.transpose %116, [1, 0] : vector<128x128xf32> -> vector<128x128xf32>
    %c0_49 = arith.constant 0 : index
    %c0_50 = arith.constant 0 : index
    %c0_51 = arith.constant 0 : index
    %118 = vector.load %arg17[%c0_49, %c0_50, %c0_51] : memref<1x128x128xf32, #tpu.memory_space<vmem>>, vector<1x128x128xf32>
    %119 = vector.shape_cast %118 : vector<1x128x128xf32> to vector<128x128xf32>
    %120 = vector.shape_cast %117 : vector<128x128xf32> to vector<1x128x128xf32>
    tpu.vector_store %arg17[%c0_49, %c0_50, %c0_51], %120 {strides = array<i32>} : memref<1x128x128xf32, #tpu.memory_space<vmem>>, vector<1x128x128xf32>,
    return
  }
  func.func @transform_0(%arg0: i32, %arg1: i32) -> (i32, i32, i32) {
    %c0_i32 = arith.constant 0 : i32
    %c0_i32_0 = arith.constant 0 : i32
    %c0_i32_1 = arith.constant 0 : i32
    return %arg0, %c0_i32, %c0_i32_0 : i32, i32, i32
  }
  func.func @transform_1(%arg0: i32, %arg1: i32) -> (i32, i32) {
    %c0_i32 = arith.constant 0 : i32
    %c0_i32_0 = arith.constant 0 : i32
    %c0_i32_1 = arith.constant 0 : i32
    return %c0_i32, %c0_i32_0 : i32, i32
  }
  func.func @transform_2(%arg0: i32, %arg1: i32) -> (i32, i32) {
    %c0_i32 = arith.constant 0 : i32
    %c0_i32_0 = arith.constant 0 : i32
    %c0_i32_1 = arith.constant 0 : i32
    return %c0_i32, %c0_i32_0 : i32, i32
  }
  func.func @transform_3(%arg0: i32, %arg1: i32) -> (i32, i32) {
    %c0_i32 = arith.constant 0 : i32
    %c0_i32_0 = arith.constant 0 : i32
    %c0_i32_1 = arith.constant 0 : i32
    return %c0_i32, %c0_i32_0 : i32, i32
  }
  func.func @transform_4(%arg0: i32, %arg1: i32) -> (i32, i32) {
    %c0_i32 = arith.constant 0 : i32
    %c0_i32_0 = arith.constant 0 : i32
    %c0_i32_1 = arith.constant 0 : i32
    return %c0_i32, %c0_i32_0 : i32, i32
  }
  func.func @transform_5(%arg0: i32, %arg1: i32) -> (i32, i32) {
    %c0_i32 = arith.constant 0 : i32
    %c0_i32_0 = arith.constant 0 : i32
    %c0_i32_1 = arith.constant 0 : i32
    return %c0_i32, %c0_i32_0 : i32, i32
  }
  func.func @transform_6(%arg0: i32, %arg1: i32) -> (i32, i32) {
    %c0_i32 = arith.constant 0 : i32
    %c0_i32_0 = arith.constant 0 : i32
    %c0_i32_1 = arith.constant 0 : i32
    return %c0_i32, %c0_i32_0 : i32, i32
  }
  func.func @transform_7(%arg0: i32, %arg1: i32) -> (i32, i32) {
    %c0_i32 = arith.constant 0 : i32
    %c0_i32_0 = arith.constant 0 : i32
    %c0_i32_1 = arith.constant 0 : i32
    return %c0_i32, %c0_i32_0 : i32, i32
  }
  func.func @transform_8(%arg0: i32, %arg1: i32) -> (i32, i32) {
    %c0_i32 = arith.constant 0 : i32
    %c0_i32_0 = arith.constant 0 : i32
    %c0_i32_1 = arith.constant 0 : i32
    return %c0_i32, %c0_i32_0 : i32, i32
  }
  func.func @transform_9(%arg0: i32, %arg1: i32) -> (i32, i32) {
    %c0_i32 = arith.constant 0 : i32
    %c0_i32_0 = arith.constant 0 : i32
    %c0_i32_1 = arith.constant 0 : i32
    return %c0_i32, %c0_i32_0 : i32, i32
  }
  func.func @transform_10(%arg0: i32, %arg1: i32) -> (i32, i32) {
    %c0_i32 = arith.constant 0 : i32
    %c0_i32_0 = arith.constant 0 : i32
    %c0_i32_1 = arith.constant 0 : i32
    return %c0_i32, %c0_i32_0 : i32, i32
  }
  func.func @transform_11(%arg0: i32, %arg1: i32) -> (i32, i32) {
    %c0_i32 = arith.constant 0 : i32
    %c0_i32_0 = arith.constant 0 : i32
    %c0_i32_1 = arith.constant 0 : i32
    return %c0_i32, %c0_i32_0 : i32, i32
  }
  func.func @transform_12(%arg0: i32, %arg1: i32) -> (i32, i32) {
    %c0_i32 = arith.constant 0 : i32
    %c0_i32_0 = arith.constant 0 : i32
    %c0_i32_1 = arith.constant 0 : i32
    return %c0_i32, %c0_i32_0 : i32, i32
  }
  func.func @transform_13(%arg0: i32, %arg1: i32) -> (i32, i32) {
    %c0_i32 = arith.constant 0 : i32
    %c0_i32_0 = arith.constant 0 : i32
    %c0_i32_1 = arith.constant 0 : i32
    return %c0_i32, %c0_i32_0 : i32, i32
  }
  func.func @transform_14(%arg0: i32, %arg1: i32) -> (i32, i32) {
    %c0_i32 = arith.constant 0 : i32
    %c0_i32_0 = arith.constant 0 : i32
    %c0_i32_1 = arith.constant 0 : i32
    return %c0_i32, %c0_i32_0 : i32, i32
  }
  func.func @transform_15(%arg0: i32, %arg1: i32) -> (i32, i32, i32) {
    %c0_i32 = arith.constant 0 : i32
    %c0_i32_0 = arith.constant 0 : i32
    return %arg0, %c0_i32, %arg1 : i32, i32, i32
  }
}

</mosaic_0001>

<llo_original>
// kernel: tpu_custom_call.1
$region0: #{tpu_custom_call.1}
  #allocation0 [shape = 'u32[]', space=smem, size = 0x4, offset = 0x4, fixed_abs, tag = 'smem constant byte address 0x4 - core index']
  #allocation1 [shape = 'u32[144,128]{1,0:T(1,128)}', space=vmem, size = 0x12000, scoped, tag = 'internal scratch']
  #allocation2 [shape = 'f32[256,128]{1,0:T(8,128)}', space=vmem, size = 0x20000, scoped, tag = 'scratch operand']
  #allocation3 [shape = 'bf16[4,256,32]{2,1,0:T(16,128)(2,1)}', space=vmem, size = 0x40000, scoped, tag = 'scratch operand']
  #allocation4 [shape = 'bf16[4,256,32]{2,1,0:T(16,128)(2,1)}', space=vmem, size = 0x40000, scoped, tag = 'scratch operand']
  %s0 = inlined_call_operand.hbm [shape: f32[2,128,256], index: 0, kind: input, shape index: {}]
  %s1 = inlined_call_operand.hbm [shape: bf16[128,128], index: 1, kind: input, shape index: {}]
  %s2 = inlined_call_operand.hbm [shape: f32[1,128], index: 2, kind: input, shape index: {}]
  %s3 = inlined_call_operand.hbm [shape: bf16[128,256], index: 3, kind: input, shape index: {}]
  %s4 = inlined_call_operand.hbm [shape: f32[1,256], index: 4, kind: input, shape index: {}]
  %s5 = inlined_call_operand.hbm [shape: bf16[128,128], index: 5, kind: input, shape index: {}]
  %s6 = inlined_call_operand.hbm [shape: f32[1,128], index: 6, kind: input, shape index: {}]
  %s7 = inlined_call_operand.hbm [shape: f32[1,128], index: 7, kind: input, shape index: {}]
  %s8 = inlined_call_operand.hbm [shape: f32[1,128], index: 8, kind: input, shape index: {}]
  %s9 = inlined_call_operand.hbm [shape: bf16[128,256], index: 9, kind: input, shape index: {}]
  %s10 = inlined_call_operand.hbm [shape: f32[1,256], index: 10, kind: input, shape index: {}]
  %s11 = inlined_call_operand.hbm [shape: bf16[256,128], index: 11, kind: input, shape index: {}]
  %s12 = inlined_call_operand.hbm [shape: f32[1,128], index: 12, kind: input, shape index: {}]
  %s13 = inlined_call_operand.hbm [shape: f32[1,128], index: 13, kind: input, shape index: {}]
  %s14 = inlined_call_operand.hbm [shape: f32[1,128], index: 14, kind: input, shape index: {}]
  %s15 = inlined_call_operand.hbm [shape: f32[2,128,256], index: 15, kind: output, shape index: {}]
  %s16 = sld [smem:[#allocation0]]
  $region157: #{tpu_custom_call.1} parent=0
    _
  %s18 = ssub.s32 1, %s16
  %s19 = scalar_select 0, %s18, %s16
  $region1: #{tpu_custom_call.1} parent=0
    #allocation5 [shape = 'u8[262144]{0}', space=vmem, size = 0x40000, scoped, tag = 'input window, operand 0']
    #allocation6 [shape = 's32[2]{0}', space=sflag, size = 0x8, scoped, tag = 'scoped memory for tpu_custom_call.1']
    #allocation7 [shape = 's32[2]{0}', space=sflag, size = 0x8, scoped, tag = 'scoped memory for tpu_custom_call.1']
    #allocation8 [shape = 'u8[32768]{0}', space=vmem, size = 0x8000, scoped, tag = 'input window, operand 1, single buffered']
    #allocation9 [shape = 's32[1]{0}', space=sflag, size = 0x4, scoped, tag = 'scoped memory for tpu_custom_call.1']
    #allocation10 [shape = 'u8[512]{0}', space=vmem, size = 0x400, scoped, tag = 'input window, operand 2, single buffered']
    #allocation11 [shape = 'u8[65536]{0}', space=vmem, size = 0x10000, scoped, tag = 'input window, operand 3, single buffered']
    #allocation12 [shape = 's32[1]{0}', space=sflag, size = 0x4, scoped, tag = 'scoped memory for tpu_custom_call.1']
    #allocation13 [shape = 'u8[1024]{0}', space=vmem, size = 0x400, scoped, tag = 'input window, operand 4, single buffered']
    #allocation14 [shape = 'u8[32768]{0}', space=vmem, size = 0x8000, scoped, tag = 'input window, operand 5, single buffered']
    #allocation15 [shape = 's32[1]{0}', space=sflag, size = 0x4, scoped, tag = 'scoped memory for tpu_custom_call.1']
    #allocation16 [shape = 'u8[512]{0}', space=vmem, size = 0x400, scoped, tag = 'input window, operand 6, single buffered']
    #allocation17 [shape = 'u8[512]{0}', space=vmem, size = 0x400, scoped, tag = 'input window, operand 7, single buffered']
    #allocation18 [shape = 's32[1]{0}', space=sflag, size = 0x4, scoped, tag = 'scoped memory for tpu_custom_call.1']
    #allocation19 [shape = 'u8[512]{0}', space=vmem, size = 0x400, scoped, tag = 'input window, operand 8, single buffered']
    #allocation20 [shape = 'u8[65536]{0}', space=vmem, size = 0x10000, scoped, tag = 'input window, operand 9, single buffered']
    #allocation21 [shape = 's32[1]{0}', space=sflag, size = 0x4, scoped, tag = 'scoped memory for tpu_custom_call.1']
    #allocation22 [shape = 'u8[1024]{0}', space=vmem, size = 0x400, scoped, tag = 'input window, operand 10, single buffered']
    #allocation23 [shape = 'u8[65536]{0}', space=vmem, size = 0x10000, scoped, tag = 'input window, operand 11, single buffered']
    #allocation24 [shape = 's32[1]{0}', space=sflag, size = 0x4, scoped, tag = 'scoped memory for tpu_custom_call.1']
    #allocation25 [shape = 'u8[512]{0}', space=vmem, size = 0x400, scoped, tag = 'input window, operand 12, single buffered']
    #allocation26 [shape = 'u8[512]{0}', space=vmem, size = 0x400, scoped, tag = 'input window, operand 13, single buffered']
    #allocation27 [shape = 's32[1]{0}', space=sflag, size = 0x4, scoped, tag = 'scoped memory for tpu_custom_call.1']
    #allocation28 [shape = 'u8[512]{0}', space=vmem, size = 0x400, scoped, tag = 'input window, operand 14, single buffered']
    #allocation29 [shape = 'u8[131072]{0}', space=vmem, size = 0x20000, scoped, tag = 'output window, operand 0']
    %20 = vsyncpa [#allocation6], 0
    %s21 = scalar_lea.sflag [#allocation6], 1
    %22 = vsyncpa %s21, 0
    %23 = vsyncpa [#allocation9], 0
    %24 = vsyncpa [#allocation12], 0
    %25 = vsyncpa [#allocation15], 0
    %26 = vsyncpa [#allocation18], 0
    %27 = vsyncpa [#allocation21], 0
    %28 = vsyncpa [#allocation24], 0
    %29 = vsyncpa [#allocation27], 0
    %30 = vsyncpa [#allocation7], 0
    %s31 = scalar_lea.sflag [#allocation7], 1
    %32 = vsyncpa %s31, 0
    loop: start=0, step=1, limit=6
    $region2: #{tpu_custom_call.1} parent=1 // loop_pre_header
      _
    $region3: #{tpu_custom_call.1} parent=1 // loop_header
      %s34 = sphi 0, %s38
      %p35 = scmp.ge.s32.totalorder %s34, 6
      %s41 = sphi 0, %s53
      %s42 = sphi 0, %s49
      %s43 = sphi 0, %s41
      %s44 = sphi 0, %s42
      %s45 = sphi 0, %s43
      %s46 = sphi 0, %s44
      %s56 = sphi 0, %s58
      %s59 = sphi 0, %s56
      %s60 = sphi 0, %s59
      %s76 = sphi 0, %s60
      %s80 = sphi 0, %s80
      %s82 = sphi 0, %s80
      %s83 = sphi 0, %s82
      %s97 = sphi 0, %s83
      %s101 = sphi 0, %s101
      %s103 = sphi 0, %s101
      %s104 = sphi 0, %s103
      %s118 = sphi 0, %s104
      %s122 = sphi 0, %s122
      %s124 = sphi 0, %s122
      %s125 = sphi 0, %s124
      %s139 = sphi 0, %s125
      %s143 = sphi 0, %s143
      %s145 = sphi 0, %s143
      %s146 = sphi 0, %s145
      %s160 = sphi 0, %s146
      %s164 = sphi 0, %s164
      %s166 = sphi 0, %s164
      %s167 = sphi 0, %s166
      %s181 = sphi 0, %s167
      %s185 = sphi 0, %s185
      %s187 = sphi 0, %s185
      %s188 = sphi 0, %s187
      %s202 = sphi 0, %s188
      %s206 = sphi 0, %s206
      %s208 = sphi 0, %s206
      %s209 = sphi 0, %s208
      %s223 = sphi 0, %s209
      %s227 = sphi 0, %s227
      %s229 = sphi 0, %s227
      %s230 = sphi 0, %s229
      %s244 = sphi 0, %s230
      %s248 = sphi 0, %s248
      %s250 = sphi 0, %s248
      %s251 = sphi 0, %s250
      %s265 = sphi 0, %s251
      %s269 = sphi 0, %s269
      %s271 = sphi 0, %s269
      %s272 = sphi 0, %s271
      %s286 = sphi 0, %s272
      %s290 = sphi 0, %s290
      %s292 = sphi 0, %s290
      %s293 = sphi 0, %s292
      %s307 = sphi 0, %s293
      %s311 = sphi 0, %s311
      %s313 = sphi 0, %s311
      %s314 = sphi 0, %s313
      %s328 = sphi 0, %s314
      %s332 = sphi 0, %s332
      %s334 = sphi 0, %s332
      %s335 = sphi 0, %s334
      %s349 = sphi 0, %s335
      %s353 = sphi 0, %s353
      %s355 = sphi 0, %s353
      %s356 = sphi 0, %s355
      %s370 = sphi 0, %s356
      %s378 = sphi 0, %s380
      %s381 = sphi 0, %s378
      %s382 = sphi 0, %s381
      %s398 = sphi 0, %s382
    $region4: #{tpu_custom_call.1} parent=1 // loop_header_branch
      %37 = sbr.rel (%p35) target = $region8
    $region5: #{tpu_custom_call.1} parent=1 // loop_body
      %s39 = ssub.s32 %s34, 1
      %s40 = ssub.s32 %s34, 2
      %s47 = sadd.s32 1, %s42
      %p48 = scmp.ge.s32.totalorder %s47, 2
      %s49 = scalar_select %p48, 0, %s47
      %s50 = sadd.s32 1, %s41
      %s51 = scalar_select %p48, %s50, %s41
      %p52 = scmp.ge.s32.totalorder %s51, 2
      %s53 = scalar_select %p52, 0, %s51
      %s54 = ssub.s32 %s41, %s53
      %p55 = scmp.eq.s32.totalorder %s54, 0
      %s57 = sadd.s32 %s56, 1
      %s58 = scalar_select %p55, %s56, %s57
      %p61 = pneg %p55
      %p62 = scmp.eq.s32.totalorder %s34, 3
      %p63 = por %p61, %p62
      %p64 = scmp.ne.s32.totalorder %s56, %s59
      %p65 = scmp.eq.s32.totalorder %s34, 0
      %p66 = por %p64, %p65
      %p67 = scmp.ne.s32.totalorder %s56, %s59
      %p68 = scmp.eq.s32.totalorder %s39, 3
      %p69 = por %p67, %p68
      %p70 = scmp.ne.s32.totalorder %s59, %s60
      %p71 = scmp.eq.s32.totalorder %s39, 0
      %p72 = por %p70, %p71
      %p73 = scmp.ne.s32.totalorder %s59, %s60
      %p74 = scmp.eq.s32.totalorder %s40, 3
      %p75 = por %p73, %p74
      %p77 = scmp.ne.s32.totalorder %s60, %s76
      %p78 = scmp.eq.s32.totalorder %s40, 0
      %p79 = por %p77, %p78
      %s81 = sadd.s32 %s80, 1
      %p84 = scmp.eq.s32.totalorder %s34, 3
      %p85 = scmp.ne.s32.totalorder %s80, %s82
      %p86 = scmp.eq.s32.totalorder %s34, 0
      %p87 = por %p85, %p86
      %p88 = scmp.ne.s32.totalorder %s80, %s82
      %p89 = scmp.eq.s32.totalorder %s39, 3
      %p90 = por %p88, %p89
      %p91 = scmp.ne.s32.totalorder %s82, %s83
      %p92 = scmp.eq.s32.totalorder %s39, 0
      %p93 = por %p91, %p92
      %p94 = scmp.ne.s32.totalorder %s82, %s83
      %p95 = scmp.eq.s32.totalorder %s40, 3
      %p96 = por %p94, %p95
      %p98 = scmp.ne.s32.totalorder %s83, %s97
      %p99 = scmp.eq.s32.totalorder %s40, 0
      %p100 = por %p98, %p99
      %s102 = sadd.s32 %s101, 1
      %p105 = scmp.eq.s32.totalorder %s34, 3
      %p106 = scmp.ne.s32.totalorder %s101, %s103
      %p107 = scmp.eq.s32.totalorder %s34, 0
      %p108 = por %p106, %p107
      %p109 = scmp.ne.s32.totalorder %s101, %s103
      %p110 = scmp.eq.s32.totalorder %s39, 3
      %p111 = por %p109, %p110
      %p112 = scmp.ne.s32.totalorder %s103, %s104
      %p113 = scmp.eq.s32.totalorder %s39, 0
      %p114 = por %p112, %p113
      %p115 = scmp.ne.s32.totalorder %s103, %s104
      %p116 = scmp.eq.s32.totalorder %s40, 3
      %p117 = por %p115, %p116
      %p119 = scmp.ne.s32.totalorder %s104, %s118
      %p120 = scmp.eq.s32.totalorder %s40, 0
      %p121 = por %p119, %p120
      %s123 = sadd.s32 %s122, 1
      %p126 = scmp.eq.s32.totalorder %s34, 3
      %p127 = scmp.ne.s32.totalorder %s122, %s124
      %p128 = scmp.eq.s32.totalorder %s34, 0
      %p129 = por %p127, %p128
      %p130 = scmp.ne.s32.totalorder %s122, %s124
      %p131 = scmp.eq.s32.totalorder %s39, 3
      %p132 = por %p130, %p131
      %p133 = scmp.ne.s32.totalorder %s124, %s125
      %p134 = scmp.eq.s32.totalorder %s39, 0
      %p135 = por %p133, %p134
      %p136 = scmp.ne.s32.totalorder %s124, %s125
      %p137 = scmp.eq.s32.totalorder %s40, 3
      %p138 = por %p136, %p137
      %p140 = scmp.ne.s32.totalorder %s125, %s139
      %p141 = scmp.eq.s32.totalorder %s40, 0
      %p142 = por %p140, %p141
      %s144 = sadd.s32 %s143, 1
      %p147 = scmp.eq.s32.totalorder %s34, 3
      %p148 = scmp.ne.s32.totalorder %s143, %s145
      %p149 = scmp.eq.s32.totalorder %s34, 0
      %p150 = por %p148, %p149
      %p151 = scmp.ne.s32.totalorder %s143, %s145
      %p152 = scmp.eq.s32.totalorder %s39, 3
      %p153 = por %p151, %p152
      %p154 = scmp.ne.s32.totalorder %s145, %s146
      %p155 = scmp.eq.s32.totalorder %s39, 0
      %p156 = por %p154, %p155
      %p157 = scmp.ne.s32.totalorder %s145, %s146
      %p158 = scmp.eq.s32.totalorder %s40, 3
      %p159 = por %p157, %p158
      %p161 = scmp.ne.s32.totalorder %s146, %s160
      %p162 = scmp.eq.s32.totalorder %s40, 0
      %p163 = por %p161, %p162
      %s165 = sadd.s32 %s164, 1
      %p168 = scmp.eq.s32.totalorder %s34, 3
      %p169 = scmp.ne.s32.totalorder %s164, %s166
      %p170 = scmp.eq.s32.totalorder %s34, 0
      %p171 = por %p169, %p170
      %p172 = scmp.ne.s32.totalorder %s164, %s166
      %p173 = scmp.eq.s32.totalorder %s39, 3
      %p174 = por %p172, %p173
      %p175 = scmp.ne.s32.totalorder %s166, %s167
      %p176 = scmp.eq.s32.totalorder %s39, 0
      %p177 = por %p175, %p176
      %p178 = scmp.ne.s32.totalorder %s166, %s167
      %p179 = scmp.eq.s32.totalorder %s40, 3
      %p180 = por %p178, %p179
      %p182 = scmp.ne.s32.totalorder %s167, %s181
      %p183 = scmp.eq.s32.totalorder %s40, 0
      %p184 = por %p182, %p183
      %s186 = sadd.s32 %s185, 1
      %p189 = scmp.eq.s32.totalorder %s34, 3
      %p190 = scmp.ne.s32.totalorder %s185, %s187
      %p191 = scmp.eq.s32.totalorder %s34, 0
      %p192 = por %p190, %p191
      %p193 = scmp.ne.s32.totalorder %s185, %s187
      %p194 = scmp.eq.s32.totalorder %s39, 3
      %p195 = por %p193, %p194
      %p196 = scmp.ne.s32.totalorder %s187, %s188
      %p197 = scmp.eq.s32.totalorder %s39, 0
      %p198 = por %p196, %p197
      %p199 = scmp.ne.s32.totalorder %s187, %s188
      %p200 = scmp.eq.s32.totalorder %s40, 3
      %p201 = por %p199, %p200
      %p203 = scmp.ne.s32.totalorder %s188, %s202
      %p204 = scmp.eq.s32.totalorder %s40, 0
      %p205 = por %p203, %p204
      %s207 = sadd.s32 %s206, 1
      %p210 = scmp.eq.s32.totalorder %s34, 3
      %p211 = scmp.ne.s32.totalorder %s206, %s208
      %p212 = scmp.eq.s32.totalorder %s34, 0
      %p213 = por %p211, %p212
      %p214 = scmp.ne.s32.totalorder %s206, %s208
      %p215 = scmp.eq.s32.totalorder %s39, 3
      %p216 = por %p214, %p215
      %p217 = scmp.ne.s32.totalorder %s208, %s209
      %p218 = scmp.eq.s32.totalorder %s39, 0
      %p219 = por %p217, %p218
      %p220 = scmp.ne.s32.totalorder %s208, %s209
      %p221 = scmp.eq.s32.totalorder %s40, 3
      %p222 = por %p220, %p221
      %p224 = scmp.ne.s32.totalorder %s209, %s223
      %p225 = scmp.eq.s32.totalorder %s40, 0
      %p226 = por %p224, %p225
      %s228 = sadd.s32 %s227, 1
      %p231 = scmp.eq.s32.totalorder %s34, 3
      %p232 = scmp.ne.s32.totalorder %s227, %s229
      %p233 = scmp.eq.s32.totalorder %s34, 0
      %p234 = por %p232, %p233
      %p235 = scmp.ne.s32.totalorder %s227, %s229
      %p236 = scmp.eq.s32.totalorder %s39, 3
      %p237 = por %p235, %p236
      %p238 = scmp.ne.s32.totalorder %s229, %s230
      %p239 = scmp.eq.s32.totalorder %s39, 0
      %p240 = por %p238, %p239
      %p241 = scmp.ne.s32.totalorder %s229, %s230
      %p242 = scmp.eq.s32.totalorder %s40, 3
      %p243 = por %p241, %p242
      %p245 = scmp.ne.s32.totalorder %s230, %s244
      %p246 = scmp.eq.s32.totalorder %s40, 0
      %p247 = por %p245, %p246
      %s249 = sadd.s32 %s248, 1
      %p252 = scmp.eq.s32.totalorder %s34, 3
      %p253 = scmp.ne.s32.totalorder %s248, %s250
      %p254 = scmp.eq.s32.totalorder %s34, 0
      %p255 = por %p253, %p254
      %p256 = scmp.ne.s32.totalorder %s248, %s250
      %p257 = scmp.eq.s32.totalorder %s39, 3
      %p258 = por %p256, %p257
      %p259 = scmp.ne.s32.totalorder %s250, %s251
      %p260 = scmp.eq.s32.totalorder %s39, 0
      %p261 = por %p259, %p260
      %p262 = scmp.ne.s32.totalorder %s250, %s251
      %p263 = scmp.eq.s32.totalorder %s40, 3
      %p264 = por %p262, %p263
      %p266 = scmp.ne.s32.totalorder %s251, %s265
      %p267 = scmp.eq.s32.totalorder %s40, 0
      %p268 = por %p266, %p267
      %s270 = sadd.s32 %s269, 1
      %p273 = scmp.eq.s32.totalorder %s34, 3
      %p274 = scmp.ne.s32.totalorder %s269, %s271
      %p275 = scmp.eq.s32.totalorder %s34, 0
      %p276 = por %p274, %p275
      %p277 = scmp.ne.s32.totalorder %s269, %s271
      %p278 = scmp.eq.s32.totalorder %s39, 3
      %p279 = por %p277, %p278
      %p280 = scmp.ne.s32.totalorder %s271, %s272
      %p281 = scmp.eq.s32.totalorder %s39, 0
      %p282 = por %p280, %p281
      %p283 = scmp.ne.s32.totalorder %s271, %s272
      %p284 = scmp.eq.s32.totalorder %s40, 3
      %p285 = por %p283, %p284
      %p287 = scmp.ne.s32.totalorder %s272, %s286
      %p288 = scmp.eq.s32.totalorder %s40, 0
      %p289 = por %p287, %p288
      %s291 = sadd.s32 %s290, 1
      %p294 = scmp.eq.s32.totalorder %s34, 3
      %p295 = scmp.ne.s32.totalorder %s290, %s292
      %p296 = scmp.eq.s32.totalorder %s34, 0
      %p297 = por %p295, %p296
      %p298 = scmp.ne.s32.totalorder %s290, %s292
      %p299 = scmp.eq.s32.totalorder %s39, 3
      %p300 = por %p298, %p299
      %p301 = scmp.ne.s32.totalorder %s292, %s293
      %p302 = scmp.eq.s32.totalorder %s39, 0
      %p303 = por %p301, %p302
      %p304 = scmp.ne.s32.totalorder %s292, %s293
      %p305 = scmp.eq.s32.totalorder %s40, 3
      %p306 = por %p304, %p305
      %p308 = scmp.ne.s32.totalorder %s293, %s307
      %p309 = scmp.eq.s32.totalorder %s40, 0
      %p310 = por %p308, %p309
      %s312 = sadd.s32 %s311, 1
      %p315 = scmp.eq.s32.totalorder %s34, 3
      %p316 = scmp.ne.s32.totalorder %s311, %s313
      %p317 = scmp.eq.s32.totalorder %s34, 0
      %p318 = por %p316, %p317
      %p319 = scmp.ne.s32.totalorder %s311, %s313
      %p320 = scmp.eq.s32.totalorder %s39, 3
      %p321 = por %p319, %p320
      %p322 = scmp.ne.s32.totalorder %s313, %s314
      %p323 = scmp.eq.s32.totalorder %s39, 0
      %p324 = por %p322, %p323
      %p325 = scmp.ne.s32.totalorder %s313, %s314
      %p326 = scmp.eq.s32.totalorder %s40, 3
      %p327 = por %p325, %p326
      %p329 = scmp.ne.s32.totalorder %s314, %s328
      %p330 = scmp.eq.s32.totalorder %s40, 0
      %p331 = por %p329, %p330
      %s333 = sadd.s32 %s332, 1
      %p336 = scmp.eq.s32.totalorder %s34, 3
      %p337 = scmp.ne.s32.totalorder %s332, %s334
      %p338 = scmp.eq.s32.totalorder %s34, 0
      %p339 = por %p337, %p338
      %p340 = scmp.ne.s32.totalorder %s332, %s334
      %p341 = scmp.eq.s32.totalorder %s39, 3
      %p342 = por %p340, %p341
      %p343 = scmp.ne.s32.totalorder %s334, %s335
      %p344 = scmp.eq.s32.totalorder %s39, 0
      %p345 = por %p343, %p344
      %p346 = scmp.ne.s32.totalorder %s334, %s335
      %p347 = scmp.eq.s32.totalorder %s40, 3
      %p348 = por %p346, %p347
      %p350 = scmp.ne.s32.totalorder %s335, %s349
      %p351 = scmp.eq.s32.totalorder %s40, 0
      %p352 = por %p350, %p351
      %s354 = sadd.s32 %s353, 1
      %p357 = scmp.eq.s32.totalorder %s34, 3
      %p358 = scmp.ne.s32.totalorder %s353, %s355
      %p359 = scmp.eq.s32.totalorder %s34, 0
      %p360 = por %p358, %p359
      %p361 = scmp.ne.s32.totalorder %s353, %s355
      %p362 = scmp.eq.s32.totalorder %s39, 3
      %p363 = por %p361, %p362
      %p364 = scmp.ne.s32.totalorder %s355, %s356
      %p365 = scmp.eq.s32.totalorder %s39, 0
      %p366 = por %p364, %p365
      %p367 = scmp.ne.s32.totalorder %s355, %s356
      %p368 = scmp.eq.s32.totalorder %s40, 3
      %p369 = por %p367, %p368
      %p371 = scmp.ne.s32.totalorder %s356, %s370
      %p372 = scmp.eq.s32.totalorder %s40, 0
      %p373 = por %p371, %p372
      %s374 = ssub.s32 %s41, %s53
      %s375 = ssub.s32 %s42, %s49
      %s376 = sor.u32 %s374, %s375
      %p377 = scmp.eq.s32.totalorder %s376, 0
      %s379 = sadd.s32 %s378, 1
      %s380 = scalar_select %p377, %s378, %s379
      %p383 = pneg %p377
      %p384 = scmp.eq.s32.totalorder %s34, 3
      %p385 = por %p383, %p384
      %p386 = scmp.ne.s32.totalorder %s378, %s381
      %p387 = scmp.eq.s32.totalorder %s34, 0
      %p388 = por %p386, %p387
      %p389 = scmp.ne.s32.totalorder %s378, %s381
      %p390 = scmp.eq.s32.totalorder %s39, 3
      %p391 = por %p389, %p390
      %p392 = scmp.ne.s32.totalorder %s381, %s382
      %p393 = scmp.eq.s32.totalorder %s39, 0
      %p394 = por %p392, %p393
      %p395 = scmp.ne.s32.totalorder %s381, %s382
      %p396 = scmp.eq.s32.totalorder %s40, 3
      %p397 = por %p395, %p396
      %p399 = scmp.ne.s32.totalorder %s382, %s398
      %p400 = scmp.eq.s32.totalorder %s40, 0
      %p401 = por %p399, %p400
      %p402 = scmp.le.s32.totalorder 1, %s34
      %p403 = scmp.lt.s32.totalorder %s34, 5
      %p404 = pnand %p402, %p403
      %p405 = pneg %p404
      // Predicated region
      $region9: #{tpu_custom_call.1} parent=5 // pred_check
        _
      $region10: #{tpu_custom_call.1} parent=5 // pred_check_branch
        %407 = sbr.rel (%p404) target = $region12
      $region11: #{tpu_custom_call.1} parent=5 // pred_region
        %s408 = ssub.s32 %s34, 1
        // Predicated region
        $region13: #{tpu_custom_call.1} parent=11 // pred_check
          %p409 = pneg %p93
        $region14: #{tpu_custom_call.1} parent=11 // pred_check_branch
          %411 = sbr.rel (%p409) target = $region16
        $region15: #{tpu_custom_call.1} parent=11 // pred_region
          %s413 = ssub.s32 1024, 1024
          %414 = vsyncadd [#allocation9], %s413
          %s415 = sshll.u32 [#allocation8], 4
          %s416 = int_to_ptr.vmem [resolvable:$true] %s415
          %421 = dma.hbm_to_vmem [thread:$0]  %s1, 1024, %s416, [#allocation9], 64, 64, 4
        $region16: #{tpu_custom_call.1} parent=11 // pred_fallthru
          _
        // Predicated region
        $region17: #{tpu_custom_call.1} parent=11 // pred_check
          %p422 = pneg %p114
        $region18: #{tpu_custom_call.1} parent=11 // pred_check_branch
          %424 = sbr.rel (%p422) target = $region20
        $region19: #{tpu_custom_call.1} parent=11 // pred_region
          %s426 = ssub.s32 16, 16
          %427 = vsyncadd [#allocation9], %s426
          %s429 = sshll.u32 [#allocation10], 4
          %s430 = int_to_ptr.vmem [resolvable:$true] %s429
          %432 = dma.hbm_to_vmem [thread:$0]  %s2, 16, %s430, [#allocation9]
        $region20: #{tpu_custom_call.1} parent=11 // pred_fallthru
          _
        // Predicated region
        $region21: #{tpu_custom_call.1} parent=11 // pred_check
          %p433 = pneg %p135
        $region22: #{tpu_custom_call.1} parent=11 // pred_check_branch
          %435 = sbr.rel (%p433) target = $region24
        $region23: #{tpu_custom_call.1} parent=11 // pred_region
          %s437 = ssub.s32 2048, 2048
          %438 = vsyncadd [#allocation12], %s437
          %s439 = sshll.u32 [#allocation11], 4
          %s440 = int_to_ptr.vmem [resolvable:$true] %s439
          %445 = dma.hbm_to_vmem [thread:$0]  %s3, 2048, %s440, [#allocation12], 128, 128, 8
        $region24: #{tpu_custom_call.1} parent=11 // pred_fallthru
          _
        // Predicated region
        $region25: #{tpu_custom_call.1} parent=11 // pred_check
          %p446 = pneg %p156
        $region26: #{tpu_custom_call.1} parent=11 // pred_check_branch
          %448 = sbr.rel (%p446) target = $region28
        $region27: #{tpu_custom_call.1} parent=11 // pred_region
          %s450 = ssub.s32 32, 32
          %451 = vsyncadd [#allocation12], %s450
          %s453 = sshll.u32 [#allocation13], 4
          %s454 = int_to_ptr.vmem [resolvable:$true] %s453
          %456 = dma.hbm_to_vmem [thread:$0]  %s4, 32, %s454, [#allocation12]
        $region28: #{tpu_custom_call.1} parent=11 // pred_fallthru
          _
        // Predicated region
        $region29: #{tpu_custom_call.1} parent=11 // pred_check
          %p457 = pneg %p177
        $region30: #{tpu_custom_call.1} parent=11 // pred_check_branch
          %459 = sbr.rel (%p457) target = $region32
        $region31: #{tpu_custom_call.1} parent=11 // pred_region
          %s461 = ssub.s32 1024, 1024
          %462 = vsyncadd [#allocation15], %s461
          %s463 = sshll.u32 [#allocation14], 4
          %s464 = int_to_ptr.vmem [resolvable:$true] %s463
          %469 = dma.hbm_to_vmem [thread:$0]  %s5, 1024, %s464, [#allocation15], 64, 64, 4
        $region32: #{tpu_custom_call.1} parent=11 // pred_fallthru
          _
        // Predicated region
        $region33: #{tpu_custom_call.1} parent=11 // pred_check
          %p470 = pneg %p198
        $region34: #{tpu_custom_call.1} parent=11 // pred_check_branch
          %472 = sbr.rel (%p470) target = $region36
        $region35: #{tpu_custom_call.1} parent=11 // pred_region
          %s474 = ssub.s32 16, 16
          %475 = vsyncadd [#allocation15], %s474
          %s477 = sshll.u32 [#allocation16], 4
          %s478 = int_to_ptr.vmem [resolvable:$true] %s477
          %480 = dma.hbm_to_vmem [thread:$0]  %s6, 16, %s478, [#allocation15]
        $region36: #{tpu_custom_call.1} parent=11 // pred_fallthru
          _
        // Predicated region
        $region37: #{tpu_custom_call.1} parent=11 // pred_check
          %p481 = pneg %p219
        $region38: #{tpu_custom_call.1} parent=11 // pred_check_branch
          %483 = sbr.rel (%p481) target = $region40
        $region39: #{tpu_custom_call.1} parent=11 // pred_region
          %s485 = ssub.s32 16, 16
          %486 = vsyncadd [#allocation18], %s485
          %s488 = sshll.u32 [#allocation17], 4
          %s489 = int_to_ptr.vmem [resolvable:$true] %s488
          %491 = dma.hbm_to_vmem [thread:$0]  %s7, 16, %s489, [#allocation18]
        $region40: #{tpu_custom_call.1} parent=11 // pred_fallthru
          _
        // Predicated region
        $region41: #{tpu_custom_call.1} parent=11 // pred_check
          %p492 = pneg %p240
        $region42: #{tpu_custom_call.1} parent=11 // pred_check_branch
          %494 = sbr.rel (%p492) target = $region44
        $region43: #{tpu_custom_call.1} parent=11 // pred_region
          %s496 = ssub.s32 16, 16
          %497 = vsyncadd [#allocation18], %s496
          %s499 = sshll.u32 [#allocation19], 4
          %s500 = int_to_ptr.vmem [resolvable:$true] %s499
          %502 = dma.hbm_to_vmem [thread:$0]  %s8, 16, %s500, [#allocation18]
        $region44: #{tpu_custom_call.1} parent=11 // pred_fallthru
          _
        // Predicated region
        $region45: #{tpu_custom_call.1} parent=11 // pred_check
          %p503 = pneg %p261
        $region46: #{tpu_custom_call.1} parent=11 // pred_check_branch
          %505 = sbr.rel (%p503) target = $region48
        $region47: #{tpu_custom_call.1} parent=11 // pred_region
          %s507 = ssub.s32 2048, 2048
          %508 = vsyncadd [#allocation21], %s507
          %s509 = sshll.u32 [#allocation20], 4
          %s510 = int_to_ptr.vmem [resolvable:$true] %s509
          %515 = dma.hbm_to_vmem [thread:$0]  %s9, 2048, %s510, [#allocation21], 128, 128, 8
        $region48: #{tpu_custom_call.1} parent=11 // pred_fallthru
          _
        // Predicated region
        $region49: #{tpu_custom_call.1} parent=11 // pred_check
          %p516 = pneg %p282
        $region50: #{tpu_custom_call.1} parent=11 // pred_check_branch
          %518 = sbr.rel (%p516) target = $region52
        $region51: #{tpu_custom_call.1} parent=11 // pred_region
          %s520 = ssub.s32 32, 32
          %521 = vsyncadd [#allocation21], %s520
          %s523 = sshll.u32 [#allocation22], 4
          %s524 = int_to_ptr.vmem [resolvable:$true] %s523
          %526 = dma.hbm_to_vmem [thread:$0]  %s10, 32, %s524, [#allocation21]
        $region52: #{tpu_custom_call.1} parent=11 // pred_fallthru
          _
        // Predicated region
        $region53: #{tpu_custom_call.1} parent=11 // pred_check
          %p527 = pneg %p303
        $region54: #{tpu_custom_call.1} parent=11 // pred_check_branch
          %529 = sbr.rel (%p527) target = $region56
        $region55: #{tpu_custom_call.1} parent=11 // pred_region
          %s531 = ssub.s32 2048, 2048
          %532 = vsyncadd [#allocation24], %s531
          %s533 = sshll.u32 [#allocation23], 4
          %s534 = int_to_ptr.vmem [resolvable:$true] %s533
          %539 = dma.hbm_to_vmem [thread:$0]  %s11, 2048, %s534, [#allocation24], 64, 64, 4
        $region56: #{tpu_custom_call.1} parent=11 // pred_fallthru
          _
        // Predicated region
        $region57: #{tpu_custom_call.1} parent=11 // pred_check
          %p540 = pneg %p324
        $region58: #{tpu_custom_call.1} parent=11 // pred_check_branch
          %542 = sbr.rel (%p540) target = $region60
        $region59: #{tpu_custom_call.1} parent=11 // pred_region
          %s544 = ssub.s32 16, 16
          %545 = vsyncadd [#allocation24], %s544
          %s547 = sshll.u32 [#allocation25], 4
          %s548 = int_to_ptr.vmem [resolvable:$true] %s547
          %550 = dma.hbm_to_vmem [thread:$0]  %s12, 16, %s548, [#allocation24]
        $region60: #{tpu_custom_call.1} parent=11 // pred_fallthru
          _
        // Predicated region
        $region61: #{tpu_custom_call.1} parent=11 // pred_check
          %p551 = pneg %p345
        $region62: #{tpu_custom_call.1} parent=11 // pred_check_branch
          %553 = sbr.rel (%p551) target = $region64
        $region63: #{tpu_custom_call.1} parent=11 // pred_region
          %s555 = ssub.s32 16, 16
          %556 = vsyncadd [#allocation27], %s555
          %s558 = sshll.u32 [#allocation26], 4
          %s559 = int_to_ptr.vmem [resolvable:$true] %s558
          %561 = dma.hbm_to_vmem [thread:$0]  %s13, 16, %s559, [#allocation27]
        $region64: #{tpu_custom_call.1} parent=11 // pred_fallthru
          _
        // Predicated region
        $region65: #{tpu_custom_call.1} parent=11 // pred_check
          %p562 = pneg %p366
        $region66: #{tpu_custom_call.1} parent=11 // pred_check_branch
          %564 = sbr.rel (%p562) target = $region68
        $region67: #{tpu_custom_call.1} parent=11 // pred_region
          %s566 = ssub.s32 16, 16
          %567 = vsyncadd [#allocation27], %s566
          %s569 = sshll.u32 [#allocation28], 4
          %s570 = int_to_ptr.vmem [resolvable:$true] %s569
          %572 = dma.hbm_to_vmem [thread:$0]  %s14, 16, %s570, [#allocation27]
        $region68: #{tpu_custom_call.1} parent=11 // pred_fallthru
          _
      $region12: #{tpu_custom_call.1} parent=5 // pred_fallthru
        _
      %p573 = scmp.lt.s32.totalorder %s34, 4
      // Predicated region
      $region69: #{tpu_custom_call.1} parent=5 // pred_check
        %p574 = pneg %p573
      $region70: #{tpu_custom_call.1} parent=5 // pred_check_branch
        %576 = sbr.rel (%p574) target = $region72
      $region71: #{tpu_custom_call.1} parent=5 // pred_region
        // Predicated region
        $region73: #{tpu_custom_call.1} parent=71 // pred_check
          %p577 = pneg %p66
        $region74: #{tpu_custom_call.1} parent=71 // pred_check_branch
          %579 = sbr.rel (%p577) target = $region76
        $region75: #{tpu_custom_call.1} parent=71 // pred_region
          %s580 = sand.u32 %s56, 1
          %s581 = scalar_lea.sflag [#allocation6], %s580
          %s582 = sand.u32 %s56, 1
          %s583 = smul.addr %s582, 256
          %s584 = scalar_lea.vmem [#allocation5], %s583
          %s586 = ssub.s32 4096, 4096
          %587 = vsyncadd %s581, %s586
          %s588 = smul.addr %s41, 32
          %s589 = smul.addr %s588, 128
          %s590 = scalar_lea.hbm %s0, %s589
          %s591 = sshll.u32 %s584, 4
          %s592 = int_to_ptr.vmem [resolvable:$true] %s591
          %597 = dma.hbm_to_vmem [thread:$0]  %s590, 4096, %s592, %s581, 256, 256, 16
        $region76: #{tpu_custom_call.1} parent=71 // pred_fallthru
          _
      $region72: #{tpu_custom_call.1} parent=5 // pred_fallthru
        _
      %p598 = scmp.le.s32.totalorder 1, %s34
      %p599 = scmp.lt.s32.totalorder %s34, 5
      %p600 = pnand %p598, %p599
      %p601 = pneg %p600
      // Predicated region
      $region77: #{tpu_custom_call.1} parent=5 // pred_check
        _
      $region78: #{tpu_custom_call.1} parent=5 // pred_check_branch
        %603 = sbr.rel (%p600) target = $region80
      $region79: #{tpu_custom_call.1} parent=5 // pred_region
        %s604 = ssub.s32 %s34, 1
        %s605 = sand.u32 %s59, 1
        %s606 = scalar_lea.sflag [#allocation6], %s605
        %s607 = sand.u32 %s59, 1
        %s608 = smul.addr %s607, 256
        %s609 = scalar_lea.vmem [#allocation5], %s608
        // Predicated region
        $region81: #{tpu_custom_call.1} parent=79 // pred_check
          %p610 = pneg %p72
        $region82: #{tpu_custom_call.1} parent=79 // pred_check_branch
          %612 = sbr.rel (%p610) target = $region84
        $region83: #{tpu_custom_call.1} parent=79 // pred_region
          %613 = dma.done %s606, 4096
        $region84: #{tpu_custom_call.1} parent=79 // pred_fallthru
          _
        // Predicated region
        $region85: #{tpu_custom_call.1} parent=79 // pred_check
          %p614 = pneg %p93
        $region86: #{tpu_custom_call.1} parent=79 // pred_check_branch
          %616 = sbr.rel (%p614) target = $region88
        $region87: #{tpu_custom_call.1} parent=79 // pred_region
          %617 = dma.done [#allocation9], 1024
        $region88: #{tpu_custom_call.1} parent=79 // pred_fallthru
          _
        // Predicated region
        $region89: #{tpu_custom_call.1} parent=79 // pred_check
          %p618 = pneg %p114
        $region90: #{tpu_custom_call.1} parent=79 // pred_check_branch
          %620 = sbr.rel (%p618) target = $region92
        $region91: #{tpu_custom_call.1} parent=79 // pred_region
          %621 = dma.done [#allocation9], 16
        $region92: #{tpu_custom_call.1} parent=79 // pred_fallthru
          _
        // Predicated region
        $region93: #{tpu_custom_call.1} parent=79 // pred_check
          %p622 = pneg %p135
        $region94: #{tpu_custom_call.1} parent=79 // pred_check_branch
          %624 = sbr.rel (%p622) target = $region96
        $region95: #{tpu_custom_call.1} parent=79 // pred_region
          %625 = dma.done [#allocation12], 2048
        $region96: #{tpu_custom_call.1} parent=79 // pred_fallthru
          _
        // Predicated region
        $region97: #{tpu_custom_call.1} parent=79 // pred_check
          %p626 = pneg %p156
        $region98: #{tpu_custom_call.1} parent=79 // pred_check_branch
          %628 = sbr.rel (%p626) target = $region100
        $region99: #{tpu_custom_call.1} parent=79 // pred_region
          %629 = dma.done [#allocation12], 32
        $region100: #{tpu_custom_call.1} parent=79 // pred_fallthru
          _
        // Predicated region
        $region101: #{tpu_custom_call.1} parent=79 // pred_check
          %p630 = pneg %p177
        $region102: #{tpu_custom_call.1} parent=79 // pred_check_branch
          %632 = sbr.rel (%p630) target = $region104
        $region103: #{tpu_custom_call.1} parent=79 // pred_region
          %633 = dma.done [#allocation15], 1024
        $region104: #{tpu_custom_call.1} parent=79 // pred_fallthru
          _
        // Predicated region
        $region105: #{tpu_custom_call.1} parent=79 // pred_check
          %p634 = pneg %p198
        $region106: #{tpu_custom_call.1} parent=79 // pred_check_branch
          %636 = sbr.rel (%p634) target = $region108
        $region107: #{tpu_custom_call.1} parent=79 // pred_region
          %637 = dma.done [#allocation15], 16
        $region108: #{tpu_custom_call.1} parent=79 // pred_fallthru
          _
        // Predicated region
        $region109: #{tpu_custom_call.1} parent=79 // pred_check
          %p638 = pneg %p219
        $region110: #{tpu_custom_call.1} parent=79 // pred_check_branch
          %640 = sbr.rel (%p638) target = $region112
        $region111: #{tpu_custom_call.1} parent=79 // pred_region
          %641 = dma.done [#allocation18], 16
        $region112: #{tpu_custom_call.1} parent=79 // pred_fallthru
          _
        // Predicated region
        $region113: #{tpu_custom_call.1} parent=79 // pred_check
          %p642 = pneg %p240
        $region114: #{tpu_custom_call.1} parent=79 // pred_check_branch
          %644 = sbr.rel (%p642) target = $region116
        $region115: #{tpu_custom_call.1} parent=79 // pred_region
          %645 = dma.done [#allocation18], 16
        $region116: #{tpu_custom_call.1} parent=79 // pred_fallthru
          _
        // Predicated region
        $region117: #{tpu_custom_call.1} parent=79 // pred_check
          %p646 = pneg %p261
        $region118: #{tpu_custom_call.1} parent=79 // pred_check_branch
          %648 = sbr.rel (%p646) target = $region120
        $region119: #{tpu_custom_call.1} parent=79 // pred_region
          %649 = dma.done [#allocation21], 2048
        $region120: #{tpu_custom_call.1} parent=79 // pred_fallthru
          _
        // Predicated region
        $region121: #{tpu_custom_call.1} parent=79 // pred_check
          %p650 = pneg %p282
        $region122: #{tpu_custom_call.1} parent=79 // pred_check_branch
          %652 = sbr.rel (%p650) target = $region124
        $region123: #{tpu_custom_call.1} parent=79 // pred_region
          %653 = dma.done [#allocation21], 32
        $region124: #{tpu_custom_call.1} parent=79 // pred_fallthru
          _
        // Predicated region
        $region125: #{tpu_custom_call.1} parent=79 // pred_check
          %p654 = pneg %p303
        $region126: #{tpu_custom_call.1} parent=79 // pred_check_branch
          %656 = sbr.rel (%p654) target = $region128
        $region127: #{tpu_custom_call.1} parent=79 // pred_region
          %657 = dma.done [#allocation24], 2048
        $region128: #{tpu_custom_call.1} parent=79 // pred_fallthru
          _
        // Predicated region
        $region129: #{tpu_custom_call.1} parent=79 // pred_check
          %p658 = pneg %p324
        $region130: #{tpu_custom_call.1} parent=79 // pred_check_branch
          %660 = sbr.rel (%p658) target = $region132
        $region131: #{tpu_custom_call.1} parent=79 // pred_region
          %661 = dma.done [#allocation24], 16
        $region132: #{tpu_custom_call.1} parent=79 // pred_fallthru
          _
        // Predicated region
        $region133: #{tpu_custom_call.1} parent=79 // pred_check
          %p662 = pneg %p345
        $region134: #{tpu_custom_call.1} parent=79 // pred_check_branch
          %664 = sbr.rel (%p662) target = $region136
        $region135: #{tpu_custom_call.1} parent=79 // pred_region
          %665 = dma.done [#allocation27], 16
        $region136: #{tpu_custom_call.1} parent=79 // pred_fallthru
          _
        // Predicated region
        $region137: #{tpu_custom_call.1} parent=79 // pred_check
          %p666 = pneg %p366
        $region138: #{tpu_custom_call.1} parent=79 // pred_check_branch
          %668 = sbr.rel (%p666) target = $region140
        $region139: #{tpu_custom_call.1} parent=79 // pred_region
          %669 = dma.done [#allocation27], 16
        $region140: #{tpu_custom_call.1} parent=79 // pred_fallthru
          _
        %s670 = sand.u32 %s59, 1
        %s671 = scalar_lea.sflag [#allocation6], %s670
        %s672 = sand.u32 %s59, 1
        %s673 = smul.addr %s672, 256
        %s674 = scalar_lea.vmem [#allocation5], %s673
        %p675 = pneg %p72
        %p676 = pneg %p69
        %p677 = pneg %p93
        %p678 = pneg %p90
        %p679 = pneg %p114
        %p680 = pneg %p111
        %p681 = pneg %p135
        %p682 = pneg %p132
        %p683 = pneg %p156
        %p684 = pneg %p153
        %p685 = pneg %p177
        %p686 = pneg %p174
        %p687 = pneg %p198
        %p688 = pneg %p195
        %p689 = pneg %p219
        %p690 = pneg %p216
        %p691 = pneg %p240
        %p692 = pneg %p237
        %p693 = pneg %p261
        %p694 = pneg %p258
        %p695 = pneg %p282
        %p696 = pneg %p279
        %p697 = pneg %p303
        %p698 = pneg %p300
        %p699 = pneg %p324
        %p700 = pneg %p321
        %p701 = pneg %p345
        %p702 = pneg %p342
        %p703 = pneg %p366
        %p704 = pneg %p363
        %p705 = pneg %p394
        %p706 = pneg %p391
        %s707 = sand.u32 %s381, 1
        %s708 = scalar_lea.sflag [#allocation7], %s707
        %s709 = sand.u32 %s381, 1
        %s710 = smul.addr %s709, 128
        %s711 = scalar_lea.vmem [#allocation29], %s710
        %p713 = scmp.eq.s32.totalorder %s44, 0
        // Predicated region
        $region141: #{tpu_custom_call.1} parent=79 // pred_check
          %p714 = pneg %p713
        $region142: #{tpu_custom_call.1} parent=79 // pred_check_branch
          %716 = sbr.rel (%p714) target = $region144
        $region143: #{tpu_custom_call.1} parent=79 // pred_region
          %v717 = vld [vmem:[%s609] sm:$0xff]
          %v718 = vld [vmem:[%s609 + $0x8] sm:$0xff]
          %v719 = vld [vmem:[%s609 + $0x10] sm:$0xff]
          %v720 = vld [vmem:[%s609 + $0x18] sm:$0xff]
          %v721 = vld [vmem:[%s609 + $0x20] sm:$0xff]
          %v722 = vld [vmem:[%s609 + $0x28] sm:$0xff]
          %v723 = vld [vmem:[%s609 + $0x30] sm:$0xff]
          %v724 = vld [vmem:[%s609 + $0x38] sm:$0xff]
          %v725 = vld [vmem:[%s609 + $0x40] sm:$0xff]
          %v726 = vld [vmem:[%s609 + $0x48] sm:$0xff]
          %v727 = vld [vmem:[%s609 + $0x50] sm:$0xff]
          %v728 = vld [vmem:[%s609 + $0x58] sm:$0xff]
          %v729 = vld [vmem:[%s609 + $0x60] sm:$0xff]
          %v730 = vld [vmem:[%s609 + $0x68] sm:$0xff]
          %v731 = vld [vmem:[%s609 + $0x70] sm:$0xff]
          %v732 = vld [vmem:[%s609 + $0x78] sm:$0xff]
          %v733 = vld [vmem:[%s609 + $0x80] sm:$0xff]
          %v734 = vld [vmem:[%s609 + $0x88] sm:$0xff]
          %v735 = vld [vmem:[%s609 + $0x90] sm:$0xff]
          %v736 = vld [vmem:[%s609 + $0x98] sm:$0xff]
          %v737 = vld [vmem:[%s609 + $0xa0] sm:$0xff]
          %v738 = vld [vmem:[%s609 + $0xa8] sm:$0xff]
          %v739 = vld [vmem:[%s609 + $0xb0] sm:$0xff]
          %v740 = vld [vmem:[%s609 + $0xb8] sm:$0xff]
          %v741 = vld [vmem:[%s609 + $0xc0] sm:$0xff]
          %v742 = vld [vmem:[%s609 + $0xc8] sm:$0xff]
          %v743 = vld [vmem:[%s609 + $0xd0] sm:$0xff]
          %v744 = vld [vmem:[%s609 + $0xd8] sm:$0xff]
          %v745 = vld [vmem:[%s609 + $0xe0] sm:$0xff]
          %v746 = vld [vmem:[%s609 + $0xe8] sm:$0xff]
          %v747 = vld [vmem:[%s609 + $0xf0] sm:$0xff]
          %v748 = vld [vmem:[%s609 + $0xf8] sm:$0xff]
          %749 = vxpose.xlu0.b32.start [1/16] %v717, 128
          %750 = vxpose.xlu0.b32.cont [2/16] %v719, 128
          %751 = vxpose.xlu0.b32.cont [3/16] %v721, 128
          %752 = vxpose.xlu0.b32.cont [4/16] %v723, 128
          %753 = vxpose.xlu0.b32.cont [5/16] %v725, 128
          %754 = vxpose.xlu0.b32.cont [6/16] %v727, 128
          %755 = vxpose.xlu0.b32.cont [7/16] %v729, 128
          %756 = vxpose.xlu0.b32.cont [8/16] %v731, 128
          %757 = vxpose.xlu0.b32.cont [9/16] %v733, 128
          %758 = vxpose.xlu0.b32.cont [10/16] %v735, 128
          %759 = vxpose.xlu0.b32.cont [11/16] %v737, 128
          %760 = vxpose.xlu0.b32.cont [12/16] %v739, 128
          %761 = vxpose.xlu0.b32.cont [13/16] %v741, 128
          %762 = vxpose.xlu0.b32.cont [14/16] %v743, 128
          %763 = vxpose.xlu0.b32.cont [15/16] %v745, 128
          %764 = vxpose.xlu0.b32.end [16/16] %v747, 128
          %v765 = vpop.trf.xlu0
          %v766 = vpop.trf.xlu0
          %v767 = vpop.trf.xlu0
          %v768 = vpop.trf.xlu0
          %v769 = vpop.trf.xlu0
          %v770 = vpop.trf.xlu0
          %v771 = vpop.trf.xlu0
          %v772 = vpop.trf.xlu0
          %v773 = vpop.trf.xlu0
          %v774 = vpop.trf.xlu0
          %v775 = vpop.trf.xlu0
          %v776 = vpop.trf.xlu0
          %v777 = vpop.trf.xlu0
          %v778 = vpop.trf.xlu0
          %v779 = vpop.trf.xlu0
          %v780 = vpop.trf.xlu0
          %781 = vxpose.xlu0.b32.start [1/16] %v718, 128
          %782 = vxpose.xlu0.b32.cont [2/16] %v720, 128
          %783 = vxpose.xlu0.b32.cont [3/16] %v722, 128
          %784 = vxpose.xlu0.b32.cont [4/16] %v724, 128
          %785 = vxpose.xlu0.b32.cont [5/16] %v726, 128
          %786 = vxpose.xlu0.b32.cont [6/16] %v728, 128
          %787 = vxpose.xlu0.b32.cont [7/16] %v730, 128
          %788 = vxpose.xlu0.b32.cont [8/16] %v732, 128
          %789 = vxpose.xlu0.b32.cont [9/16] %v734, 128
          %790 = vxpose.xlu0.b32.cont [10/16] %v736, 128
          %791 = vxpose.xlu0.b32.cont [11/16] %v738, 128
          %792 = vxpose.xlu0.b32.cont [12/16] %v740, 128
          %793 = vxpose.xlu0.b32.cont [13/16] %v742, 128
          %794 = vxpose.xlu0.b32.cont [14/16] %v744, 128
          %795 = vxpose.xlu0.b32.cont [15/16] %v746, 128
          %796 = vxpose.xlu0.b32.end [16/16] %v748, 128
          %v797 = vpop.trf.xlu0
          %v798 = vpop.trf.xlu0
          %v799 = vpop.trf.xlu0
          %v800 = vpop.trf.xlu0
          %v801 = vpop.trf.xlu0
          %v802 = vpop.trf.xlu0
          %v803 = vpop.trf.xlu0
          %v804 = vpop.trf.xlu0
          %v805 = vpop.trf.xlu0
          %v806 = vpop.trf.xlu0
          %v807 = vpop.trf.xlu0
          %v808 = vpop.trf.xlu0
          %v809 = vpop.trf.xlu0
          %v810 = vpop.trf.xlu0
          %v811 = vpop.trf.xlu0
          %v812 = vpop.trf.xlu0
          %813 = vst [vmem:[#allocation2] sm:$0xff] %v765
          %814 = vst [vmem:[#allocation2 + $0x8] sm:$0xff] %v766
          %815 = vst [vmem:[#allocation2 + $0x10] sm:$0xff] %v767
          %816 = vst [vmem:[#allocation2 + $0x18] sm:$0xff] %v768
          %817 = vst [vmem:[#allocation2 + $0x20] sm:$0xff] %v769
          %818 = vst [vmem:[#allocation2 + $0x28] sm:$0xff] %v770
          %819 = vst [vmem:[#allocation2 + $0x30] sm:$0xff] %v771
          %820 = vst [vmem:[#allocation2 + $0x38] sm:$0xff] %v772
          %821 = vst [vmem:[#allocation2 + $0x40] sm:$0xff] %v773
          %822 = vst [vmem:[#allocation2 + $0x48] sm:$0xff] %v774
          %823 = vst [vmem:[#allocation2 + $0x50] sm:$0xff] %v775
          %824 = vst [vmem:[#allocation2 + $0x58] sm:$0xff] %v776
          %825 = vst [vmem:[#allocation2 + $0x60] sm:$0xff] %v777
          %826 = vst [vmem:[#allocation2 + $0x68] sm:$0xff] %v778
          %827 = vst [vmem:[#allocation2 + $0x70] sm:$0xff] %v779
          %828 = vst [vmem:[#allocation2 + $0x78] sm:$0xff] %v780
          %829 = vst [vmem:[#allocation2 + $0x80] sm:$0xff] %v797
          %830 = vst [vmem:[#allocation2 + $0x88] sm:$0xff] %v798
          %831 = vst [vmem:[#allocation2 + $0x90] sm:$0xff] %v799
          %832 = vst [vmem:[#allocation2 + $0x98] sm:$0xff] %v800
          %833 = vst [vmem:[#allocation2 + $0xa0] sm:$0xff] %v801
          %834 = vst [vmem:[#allocation2 + $0xa8] sm:$0xff] %v802
          %835 = vst [vmem:[#allocation2 + $0xb0] sm:$0xff] %v803
          %836 = vst [vmem:[#allocation2 + $0xb8] sm:$0xff] %v804
          %837 = vst [vmem:[#allocation2 + $0xc0] sm:$0xff] %v805
          %838 = vst [vmem:[#allocation2 + $0xc8] sm:$0xff] %v806
          %839 = vst [vmem:[#allocation2 + $0xd0] sm:$0xff] %v807
          %840 = vst [vmem:[#allocation2 + $0xd8] sm:$0xff] %v808
          %841 = vst [vmem:[#allocation2 + $0xe0] sm:$0xff] %v809
          %842 = vst [vmem:[#allocation2 + $0xe8] sm:$0xff] %v810
          %843 = vst [vmem:[#allocation2 + $0xf0] sm:$0xff] %v811
          %844 = vst [vmem:[#allocation2 + $0xf8] sm:$0xff] %v812
          %v845 = vpack.c.bf16 %v766, %v765
          %v846 = vpack.c.bf16 %v768, %v767
          %v847 = vpack.c.bf16 %v770, %v769
          %v848 = vpack.c.bf16 %v772, %v771
          %v849 = vpack.c.bf16 %v774, %v773
          %v850 = vpack.c.bf16 %v776, %v775
          %v851 = vpack.c.bf16 %v778, %v777
          %v852 = vpack.c.bf16 %v780, %v779
          %v853 = vpack.c.bf16 %v798, %v797
          %v854 = vpack.c.bf16 %v800, %v799
          %v855 = vpack.c.bf16 %v802, %v801
          %v856 = vpack.c.bf16 %v804, %v803
          %v857 = vpack.c.bf16 %v806, %v805
          %v858 = vpack.c.bf16 %v808, %v807
          %v859 = vpack.c.bf16 %v810, %v809
          %v860 = vpack.c.bf16 %v812, %v811
          %v861 = vld [vmem:[#allocation11] sm:$0xff]
          %v862 = vld [vmem:[#allocation11 + $0x8] sm:$0xff]
          %v863 = vld [vmem:[#allocation11 + $0x10] sm:$0xff]
          %v864 = vld [vmem:[#allocation11 + $0x18] sm:$0xff]
          %v865 = vld [vmem:[#allocation11 + $0x20] sm:$0xff]
          %v866 = vld [vmem:[#allocation11 + $0x28] sm:$0xff]
          %v867 = vld [vmem:[#allocation11 + $0x30] sm:$0xff]
          %v868 = vld [vmem:[#allocation11 + $0x38] sm:$0xff]
          %v869 = vld [vmem:[#allocation11 + $0x40] sm:$0xff]
          %v870 = vld [vmem:[#allocation11 + $0x48] sm:$0xff]
          %v871 = vld [vmem:[#allocation11 + $0x50] sm:$0xff]
          %v872 = vld [vmem:[#allocation11 + $0x58] sm:$0xff]
          %v873 = vld [vmem:[#allocation11 + $0x60] sm:$0xff]
          %v874 = vld [vmem:[#allocation11 + $0x68] sm:$0xff]
          %v875 = vld [vmem:[#allocation11 + $0x70] sm:$0xff]
          %v876 = vld [vmem:[#allocation11 + $0x78] sm:$0xff]
          %v877 = vld [vmem:[#allocation13] sm:$0x3]
          %v879 = vlaneseq
          %v880 = vshrl.u32 %v879, 7
          %v881 = vsub.s32 0, %v880
          %v882 = vrot.slane %v877, %v881
          %v883 = vlaneseq
          %v884 = vshrl.u32 %v883, 7
          %v885 = vsub.s32 1, %v884
          %v886 = vrot.slane %v877, %v885
          %v905 = vunpack.c.l.b16 %v861
          %v906 = vunpack.c.h.b16 %v861
          %v907 = vunpack.c.l.b16 %v862
          %v908 = vunpack.c.h.b16 %v862
          %v909 = vunpack.c.l.b16 %v863
          %v910 = vunpack.c.h.b16 %v863
          %v911 = vunpack.c.l.b16 %v864
          %v912 = vunpack.c.h.b16 %v864
          %v913 = vunpack.c.l.b16 %v865
          %v914 = vunpack.c.h.b16 %v865
          %v915 = vunpack.c.l.b16 %v866
          %v916 = vunpack.c.h.b16 %v866
          %v917 = vunpack.c.l.b16 %v867
          %v918 = vunpack.c.h.b16 %v867
          %v919 = vunpack.c.l.b16 %v868
          %v920 = vunpack.c.h.b16 %v868
          %v921 = vunpack.c.l.b16 %v869
          %v922 = vunpack.c.h.b16 %v869
          %v923 = vunpack.c.l.b16 %v870
          %v924 = vunpack.c.h.b16 %v870
          %v925 = vunpack.c.l.b16 %v871
          %v926 = vunpack.c.h.b16 %v871
          %v927 = vunpack.c.l.b16 %v872
          %v928 = vunpack.c.h.b16 %v872
          %v929 = vunpack.c.l.b16 %v873
          %v930 = vunpack.c.h.b16 %v873
          %v931 = vunpack.c.l.b16 %v874
          %v932 = vunpack.c.h.b16 %v874
          %v933 = vunpack.c.l.b16 %v875
          %v934 = vunpack.c.h.b16 %v875
          %v935 = vunpack.c.l.b16 %v876
          %v936 = vunpack.c.h.b16 %v876
          %v937 = vpack.c.b16 %v907, %v905
          %v938 = vpack.c.b16 %v908, %v906
          %v939 = vpack.c.b16 %v911, %v909
          %v940 = vpack.c.b16 %v912, %v910
          %v941 = vpack.c.b16 %v915, %v913
          %v942 = vpack.c.b16 %v916, %v914
          %v943 = vpack.c.b16 %v919, %v917
          %v944 = vpack.c.b16 %v920, %v918
          %v945 = vpack.c.b16 %v923, %v921
          %v946 = vpack.c.b16 %v924, %v922
          %v947 = vpack.c.b16 %v927, %v925
          %v948 = vpack.c.b16 %v928, %v926
          %v949 = vpack.c.b16 %v931, %v929
          %v950 = vpack.c.b16 %v932, %v930
          %v951 = vpack.c.b16 %v935, %v933
          %v952 = vpack.c.b16 %v936, %v934
          %969 = vmatprep.subr.bf16.mxu0 %v938
          %970 = vmatpush1.bf16.msra.mxu0 %v937
          %971 = vmatprep.subr.bf16.mxu0 %v940
          %972 = vmatpush1.bf16.msra.mxu0 %v939
          %973 = vmatprep.subr.bf16.mxu0 %v942
          %974 = vmatpush1.bf16.msra.mxu0 %v941
          %975 = vmatprep.subr.bf16.mxu0 %v944
          %976 = vmatpush1.bf16.msra.mxu0 %v943
          %977 = vmatprep.subr.bf16.mxu0 %v946
          %978 = vmatpush1.bf16.msra.mxu0 %v945
          %979 = vmatprep.subr.bf16.mxu0 %v948
          %980 = vmatpush1.bf16.msra.mxu0 %v947
          %981 = vmatprep.subr.bf16.mxu0 %v950
          %982 = vmatpush1.bf16.msra.mxu0 %v949
          %983 = vmatprep.subr.bf16.mxu0 %v952
          %984 = vmatpush1.bf16.msra.mxu0 %v951
          %985 = vmatprep.subr.bf16.mxu0 0
          %986 = vmatpush1.bf16.msra.mxu0 0
          %987 = vmatprep.subr.bf16.mxu0 0
          %988 = vmatpush1.bf16.msra.mxu0 0
          %989 = vmatprep.subr.bf16.mxu0 0
          %990 = vmatpush1.bf16.msra.mxu0 0
          %991 = vmatprep.subr.bf16.mxu0 0
          %992 = vmatpush1.bf16.msra.mxu0 0
          %993 = vmatprep.subr.bf16.mxu0 0
          %994 = vmatpush1.bf16.msra.mxu0 0
          %995 = vmatprep.subr.bf16.mxu0 0
          %996 = vmatpush1.bf16.msra.mxu0 0
          %997 = vmatprep.subr.bf16.mxu0 0
          %998 = vmatpush1.bf16.msra.mxu0 0
          %999 = vmatprep.subr.bf16.mxu0 0
          %1000 = vmatpush1.bf16.msra.mxu0 0
          %1001 = vmatprep.mubr.bf16.mxu0 0
          %1002 = vmatmul.mubr.bf16.gmra.mrb[0].mxu0 %v845
          %v1003 = vpop.f32.mrb[0].mxu0
          %v1004 = vadd.f32 %v882, %v1003
          %v1005 = vpop.f32.mrb[0].mxu0
          %v1006 = vadd.f32 %v886, %v1005
          %v1007 = vpop.f32.mrb[0].mxu0
          %v1008 = vadd.f32 %v882, %v1007
          %v1009 = vpop.f32.mrb[0].mxu0
          %v1010 = vadd.f32 %v886, %v1009
          %1011 = vmatprep.mubr.bf16.mxu0 0
          %1012 = vmatmul.mubr.bf16.gmra.mrb[0].mxu0 %v846
          %v1013 = vpop.f32.mrb[0].mxu0
          %v1014 = vadd.f32 %v882, %v1013
          %v1015 = vpop.f32.mrb[0].mxu0
          %v1016 = vadd.f32 %v886, %v1015
          %v1017 = vpop.f32.mrb[0].mxu0
          %v1018 = vadd.f32 %v882, %v1017
          %v1019 = vpop.f32.mrb[0].mxu0
          %v1020 = vadd.f32 %v886, %v1019
          %1021 = vmatprep.mubr.bf16.mxu0 0
          %1022 = vmatmul.mubr.bf16.gmra.mrb[0].mxu0 %v847
          %v1023 = vpop.f32.mrb[0].mxu0
          %v1024 = vadd.f32 %v882, %v1023
          %v1025 = vpop.f32.mrb[0].mxu0
          %v1026 = vadd.f32 %v886, %v1025
          %v1027 = vpop.f32.mrb[0].mxu0
          %v1028 = vadd.f32 %v882, %v1027
          %v1029 = vpop.f32.mrb[0].mxu0
          %v1030 = vadd.f32 %v886, %v1029
          %1031 = vmatprep.mubr.bf16.mxu0 0
          %1032 = vmatmul.mubr.bf16.gmra.mrb[0].mxu0 %v848
          %v1033 = vpop.f32.mrb[0].mxu0
          %v1034 = vadd.f32 %v882, %v1033
          %v1035 = vpop.f32.mrb[0].mxu0
          %v1036 = vadd.f32 %v886, %v1035
          %v1037 = vpop.f32.mrb[0].mxu0
          %v1038 = vadd.f32 %v882, %v1037
          %v1039 = vpop.f32.mrb[0].mxu0
          %v1040 = vadd.f32 %v886, %v1039
          %1041 = vmatprep.mubr.bf16.mxu0 0
          %1042 = vmatmul.mubr.bf16.gmra.mrb[0].mxu0 %v849
          %v1043 = vpop.f32.mrb[0].mxu0
          %v1044 = vadd.f32 %v882, %v1043
          %v1045 = vpop.f32.mrb[0].mxu0
          %v1046 = vadd.f32 %v886, %v1045
          %v1047 = vpop.f32.mrb[0].mxu0
          %v1048 = vadd.f32 %v882, %v1047
          %v1049 = vpop.f32.mrb[0].mxu0
          %v1050 = vadd.f32 %v886, %v1049
          %1051 = vmatprep.mubr.bf16.mxu0 0
          %1052 = vmatmul.mubr.bf16.gmra.mrb[0].mxu0 %v850
          %v1053 = vpop.f32.mrb[0].mxu0
          %v1054 = vadd.f32 %v882, %v1053
          %v1055 = vpop.f32.mrb[0].mxu0
          %v1056 = vadd.f32 %v886, %v1055
          %v1057 = vpop.f32.mrb[0].mxu0
          %v1058 = vadd.f32 %v882, %v1057
          %v1059 = vpop.f32.mrb[0].mxu0
          %v1060 = vadd.f32 %v886, %v1059
          %1061 = vmatprep.mubr.bf16.mxu0 0
          %1062 = vmatmul.mubr.bf16.gmra.mrb[0].mxu0 %v851
          %v1063 = vpop.f32.mrb[0].mxu0
          %v1064 = vadd.f32 %v882, %v1063
          %v1065 = vpop.f32.mrb[0].mxu0
          %v1066 = vadd.f32 %v886, %v1065
          %v1067 = vpop.f32.mrb[0].mxu0
          %v1068 = vadd.f32 %v882, %v1067
          %v1069 = vpop.f32.mrb[0].mxu0
          %v1070 = vadd.f32 %v886, %v1069
          %1071 = vmatprep.mubr.bf16.mxu0 0
          %1072 = vmatmul.mubr.bf16.gmra.mrb[0].mxu0 %v852
          %v1073 = vpop.f32.mrb[0].mxu0
          %v1074 = vadd.f32 %v882, %v1073
          %v1075 = vpop.f32.mrb[0].mxu0
          %v1076 = vadd.f32 %v886, %v1075
          %v1077 = vpop.f32.mrb[0].mxu0
          %v1078 = vadd.f32 %v882, %v1077
          %v1079 = vpop.f32.mrb[0].mxu0
          %v1080 = vadd.f32 %v886, %v1079
          %1081 = vmatprep.mubr.bf16.mxu0 0
          %1082 = vmatmul.mubr.bf16.gmra.mrb[0].mxu0 %v853
          %v1083 = vpop.f32.mrb[0].mxu0
          %v1084 = vadd.f32 %v882, %v1083
          %v1085 = vpop.f32.mrb[0].mxu0
          %v1086 = vadd.f32 %v886, %v1085
          %v1087 = vpop.f32.mrb[0].mxu0
          %v1088 = vadd.f32 %v882, %v1087
          %v1089 = vpop.f32.mrb[0].mxu0
          %v1090 = vadd.f32 %v886, %v1089
          %1091 = vmatprep.mubr.bf16.mxu0 0
          %1092 = vmatmul.mubr.bf16.gmra.mrb[0].mxu0 %v854
          %v1093 = vpop.f32.mrb[0].mxu0
          %v1094 = vadd.f32 %v882, %v1093
          %v1095 = vpop.f32.mrb[0].mxu0
          %v1096 = vadd.f32 %v886, %v1095
          %v1097 = vpop.f32.mrb[0].mxu0
          %v1098 = vadd.f32 %v882, %v1097
          %v1099 = vpop.f32.mrb[0].mxu0
          %v1100 = vadd.f32 %v886, %v1099
          %1101 = vmatprep.mubr.bf16.mxu0 0
          %1102 = vmatmul.mubr.bf16.gmra.mrb[0].mxu0 %v855
          %v1103 = vpop.f32.mrb[0].mxu0
          %v1104 = vadd.f32 %v882, %v1103
          %v1105 = vpop.f32.mrb[0].mxu0
          %v1106 = vadd.f32 %v886, %v1105
          %v1107 = vpop.f32.mrb[0].mxu0
          %v1108 = vadd.f32 %v882, %v1107
          %v1109 = vpop.f32.mrb[0].mxu0
          %v1110 = vadd.f32 %v886, %v1109
          %1111 = vmatprep.mubr.bf16.mxu0 0
          %1112 = vmatmul.mubr.bf16.gmra.mrb[0].mxu0 %v856
          %v1113 = vpop.f32.mrb[0].mxu0
          %v1114 = vadd.f32 %v882, %v1113
          %v1115 = vpop.f32.mrb[0].mxu0
          %v1116 = vadd.f32 %v886, %v1115
          %v1117 = vpop.f32.mrb[0].mxu0
          %v1118 = vadd.f32 %v882, %v1117
          %v1119 = vpop.f32.mrb[0].mxu0
          %v1120 = vadd.f32 %v886, %v1119
          %1121 = vmatprep.mubr.bf16.mxu0 0
          %1122 = vmatmul.mubr.bf16.gmra.mrb[0].mxu0 %v857
          %v1123 = vpop.f32.mrb[0].mxu0
          %v1124 = vadd.f32 %v882, %v1123
          %v1125 = vpop.f32.mrb[0].mxu0
          %v1126 = vadd.f32 %v886, %v1125
          %v1127 = vpop.f32.mrb[0].mxu0
          %v1128 = vadd.f32 %v882, %v1127
          %v1129 = vpop.f32.mrb[0].mxu0
          %v1130 = vadd.f32 %v886, %v1129
          %1131 = vmatprep.mubr.bf16.mxu0 0
          %1132 = vmatmul.mubr.bf16.gmra.mrb[0].mxu0 %v858
          %v1133 = vpop.f32.mrb[0].mxu0
          %v1134 = vadd.f32 %v882, %v1133
          %v1135 = vpop.f32.mrb[0].mxu0
          %v1136 = vadd.f32 %v886, %v1135
          %v1137 = vpop.f32.mrb[0].mxu0
          %v1138 = vadd.f32 %v882, %v1137
          %v1139 = vpop.f32.mrb[0].mxu0
          %v1140 = vadd.f32 %v886, %v1139
          %1141 = vmatprep.mubr.bf16.mxu0 0
          %1142 = vmatmul.mubr.bf16.gmra.mrb[0].mxu0 %v859
          %v1143 = vpop.f32.mrb[0].mxu0
          %v1144 = vadd.f32 %v882, %v1143
          %v1145 = vpop.f32.mrb[0].mxu0
          %v1146 = vadd.f32 %v886, %v1145
          %v1147 = vpop.f32.mrb[0].mxu0
          %v1148 = vadd.f32 %v882, %v1147
          %v1149 = vpop.f32.mrb[0].mxu0
          %v1150 = vadd.f32 %v886, %v1149
          %1151 = vmatprep.mubr.bf16.mxu0 0
          %1152 = vmatmul.mubr.bf16.gmra.mrb[0].mxu0 %v860
          %v1153 = vpop.f32.mrb[0].mxu0
          %v1154 = vadd.f32 %v882, %v1153
          %v1155 = vpop.f32.mrb[0].mxu0
          %v1156 = vadd.f32 %v886, %v1155
          %v1157 = vpop.f32.mrb[0].mxu0
          %v1158 = vadd.f32 %v882, %v1157
          %v1159 = vpop.f32.mrb[0].mxu0
          %v1160 = vadd.f32 %v886, %v1159
          %1161 = vdwg.mxu0
          %v1162 = vpack.c.bf16 %v1008, %v1004
          %v1163 = vpack.c.bf16 %v1010, %v1006
          %v1164 = vpack.c.bf16 %v1018, %v1014
          %v1165 = vpack.c.bf16 %v1020, %v1016
          %v1166 = vpack.c.bf16 %v1028, %v1024
          %v1167 = vpack.c.bf16 %v1030, %v1026
          %v1168 = vpack.c.bf16 %v1038, %v1034
          %v1169 = vpack.c.bf16 %v1040, %v1036
          %v1170 = vpack.c.bf16 %v1048, %v1044
          %v1171 = vpack.c.bf16 %v1050, %v1046
          %v1172 = vpack.c.bf16 %v1058, %v1054
          %v1173 = vpack.c.bf16 %v1060, %v1056
          %v1174 = vpack.c.bf16 %v1068, %v1064
          %v1175 = vpack.c.bf16 %v1070, %v1066
          %v1176 = vpack.c.bf16 %v1078, %v1074
          %v1177 = vpack.c.bf16 %v1080, %v1076
          %v1178 = vpack.c.bf16 %v1088, %v1084
          %v1179 = vpack.c.bf16 %v1090, %v1086
          %v1180 = vpack.c.bf16 %v1098, %v1094
          %v1181 = vpack.c.bf16 %v1100, %v1096
          %v1182 = vpack.c.bf16 %v1108, %v1104
          %v1183 = vpack.c.bf16 %v1110, %v1106
          %v1184 = vpack.c.bf16 %v1118, %v1114
          %v1185 = vpack.c.bf16 %v1120, %v1116
          %v1186 = vpack.c.bf16 %v1128, %v1124
          %v1187 = vpack.c.bf16 %v1130, %v1126
          %v1188 = vpack.c.bf16 %v1138, %v1134
          %v1189 = vpack.c.bf16 %v1140, %v1136
          %v1190 = vpack.c.bf16 %v1148, %v1144
          %v1191 = vpack.c.bf16 %v1150, %v1146
          %v1192 = vpack.c.bf16 %v1158, %v1154
          %v1193 = vpack.c.bf16 %v1160, %v1156
          %vm1194 = vcmask 261120
          %1195 = vst.msk [vmem:[#allocation3] sm:$0xff] %vm1194, %v1162
          %1196 = vst.msk [vmem:[#allocation3 + $0x8] sm:$0xff] %vm1194, %v1164
          %1197 = vst.msk [vmem:[#allocation3 + $0x10] sm:$0xff] %vm1194, %v1166
          %1198 = vst.msk [vmem:[#allocation3 + $0x18] sm:$0xff] %vm1194, %v1168
          %1199 = vst.msk [vmem:[#allocation3 + $0x20] sm:$0xff] %vm1194, %v1170
          %1200 = vst.msk [vmem:[#allocation3 + $0x28] sm:$0xff] %vm1194, %v1172
          %1201 = vst.msk [vmem:[#allocation3 + $0x30] sm:$0xff] %vm1194, %v1174
          %1202 = vst.msk [vmem:[#allocation3 + $0x38] sm:$0xff] %vm1194, %v1176
          %1203 = vst.msk [vmem:[#allocation3 + $0x40] sm:$0xff] %vm1194, %v1178
          %1204 = vst.msk [vmem:[#allocation3 + $0x48] sm:$0xff] %vm1194, %v1180
          %1205 = vst.msk [vmem:[#allocation3 + $0x50] sm:$0xff] %vm1194, %v1182
          %1206 = vst.msk [vmem:[#allocation3 + $0x58] sm:$0xff] %vm1194, %v1184
          %1207 = vst.msk [vmem:[#allocation3 + $0x60] sm:$0xff] %vm1194, %v1186
          %1208 = vst.msk [vmem:[#allocation3 + $0x68] sm:$0xff] %vm1194, %v1188
          %1209 = vst.msk [vmem:[#allocation3 + $0x70] sm:$0xff] %vm1194, %v1190
          %1210 = vst.msk [vmem:[#allocation3 + $0x78] sm:$0xff] %vm1194, %v1192
          %1211 = vst.msk [vmem:[#allocation4] sm:$0xff] %vm1194, %v1163
          %1212 = vst.msk [vmem:[#allocation4 + $0x8] sm:$0xff] %vm1194, %v1165
          %1213 = vst.msk [vmem:[#allocation4 + $0x10] sm:$0xff] %vm1194, %v1167
          %1214 = vst.msk [vmem:[#allocation4 + $0x18] sm:$0xff] %vm1194, %v1169
          %1215 = vst.msk [vmem:[#allocation4 + $0x20] sm:$0xff] %vm1194, %v1171
          %1216 = vst.msk [vmem:[#allocation4 + $0x28] sm:$0xff] %vm1194, %v1173
          %1217 = vst.msk [vmem:[#allocation4 + $0x30] sm:$0xff] %vm1194, %v1175
          %1218 = vst.msk [vmem:[#allocation4 + $0x38] sm:$0xff] %vm1194, %v1177
          %1219 = vst.msk [vmem:[#allocation4 + $0x40] sm:$0xff] %vm1194, %v1179
          %1220 = vst.msk [vmem:[#allocation4 + $0x48] sm:$0xff] %vm1194, %v1181
          %1221 = vst.msk [vmem:[#allocation4 + $0x50] sm:$0xff] %vm1194, %v1183
          %1222 = vst.msk [vmem:[#allocation4 + $0x58] sm:$0xff] %vm1194, %v1185
          %1223 = vst.msk [vmem:[#allocation4 + $0x60] sm:$0xff] %vm1194, %v1187
          %1224 = vst.msk [vmem:[#allocation4 + $0x68] sm:$0xff] %vm1194, %v1189
          %1225 = vst.msk [vmem:[#allocation4 + $0x70] sm:$0xff] %vm1194, %v1191
          %1226 = vst.msk [vmem:[#allocation4 + $0x78] sm:$0xff] %vm1194, %v1193
          %1243 = vrot.lane.b32.xlu0 %v1162, 96
          %v1244 = vpop.permute.xlu0 %1243
          %1245 = vrot.lane.b32.xlu0 %v1164, 96
          %v1246 = vpop.permute.xlu0 %1245
          %1247 = vrot.lane.b32.xlu0 %v1166, 96
          %v1248 = vpop.permute.xlu0 %1247
          %1249 = vrot.lane.b32.xlu0 %v1168, 96
          %v1250 = vpop.permute.xlu0 %1249
          %1251 = vrot.lane.b32.xlu0 %v1170, 96
          %v1252 = vpop.permute.xlu0 %1251
          %1253 = vrot.lane.b32.xlu0 %v1172, 96
          %v1254 = vpop.permute.xlu0 %1253
          %1255 = vrot.lane.b32.xlu0 %v1174, 96
          %v1256 = vpop.permute.xlu0 %1255
          %1257 = vrot.lane.b32.xlu0 %v1176, 96
          %v1258 = vpop.permute.xlu0 %1257
          %1259 = vrot.lane.b32.xlu0 %v1178, 96
          %v1260 = vpop.permute.xlu0 %1259
          %1261 = vrot.lane.b32.xlu0 %v1180, 96
          %v1262 = vpop.permute.xlu0 %1261
          %1263 = vrot.lane.b32.xlu0 %v1182, 96
          %v1264 = vpop.permute.xlu0 %1263
          %1265 = vrot.lane.b32.xlu0 %v1184, 96
          %v1266 = vpop.permute.xlu0 %1265
          %1267 = vrot.lane.b32.xlu0 %v1186, 96
          %v1268 = vpop.permute.xlu0 %1267
          %1269 = vrot.lane.b32.xlu0 %v1188, 96
          %v1270 = vpop.permute.xlu0 %1269
          %1271 = vrot.lane.b32.xlu0 %v1190, 96
          %v1272 = vpop.permute.xlu0 %1271
          %1273 = vrot.lane.b32.xlu0 %v1192, 96
          %v1274 = vpop.permute.xlu0 %1273
          %s1291 = scalar_lea.vmem [#allocation3], 128
          %1292 = vst.msk [vmem:[%s1291] sm:$0xff] %vm1194, %v1244
          %1293 = vst.msk [vmem:[%s1291 + $0x8] sm:$0xff] %vm1194, %v1246
          %1294 = vst.msk [vmem:[%s1291 + $0x10] sm:$0xff] %vm1194, %v1248
          %1295 = vst.msk [vmem:[%s1291 + $0x18] sm:$0xff] %vm1194, %v1250
          %1296 = vst.msk [vmem:[%s1291 + $0x20] sm:$0xff] %vm1194, %v1252
          %1297 = vst.msk [vmem:[%s1291 + $0x28] sm:$0xff] %vm1194, %v1254
          %1298 = vst.msk [vmem:[%s1291 + $0x30] sm:$0xff] %vm1194, %v1256
          %1299 = vst.msk [vmem:[%s1291 + $0x38] sm:$0xff] %vm1194, %v1258
          %1300 = vst.msk [vmem:[%s1291 + $0x40] sm:$0xff] %vm1194, %v1260
          %1301 = vst.msk [vmem:[%s1291 + $0x48] sm:$0xff] %vm1194, %v1262
          %1302 = vst.msk [vmem:[%s1291 + $0x50] sm:$0xff] %vm1194, %v1264
          %1303 = vst.msk [vmem:[%s1291 + $0x58] sm:$0xff] %vm1194, %v1266
          %1304 = vst.msk [vmem:[%s1291 + $0x60] sm:$0xff] %vm1194, %v1268
          %1305 = vst.msk [vmem:[%s1291 + $0x68] sm:$0xff] %vm1194, %v1270
          %1306 = vst.msk [vmem:[%s1291 + $0x70] sm:$0xff] %vm1194, %v1272
          %1307 = vst.msk [vmem:[%s1291 + $0x78] sm:$0xff] %vm1194, %v1274
          %1324 = vrot.lane.b32.xlu0 %v1163, 96
          %v1325 = vpop.permute.xlu0 %1324
          %1326 = vrot.lane.b32.xlu0 %v1165, 96
          %v1327 = vpop.permute.xlu0 %1326
          %1328 = vrot.lane.b32.xlu0 %v1167, 96
          %v1329 = vpop.permute.xlu0 %1328
          %1330 = vrot.lane.b32.xlu0 %v1169, 96
          %v1331 = vpop.permute.xlu0 %1330
          %1332 = vrot.lane.b32.xlu0 %v1171, 96
          %v1333 = vpop.permute.xlu0 %1332
          %1334 = vrot.lane.b32.xlu0 %v1173, 96
          %v1335 = vpop.permute.xlu0 %1334
          %1336 = vrot.lane.b32.xlu0 %v1175, 96
          %v1337 = vpop.permute.xlu0 %1336
          %1338 = vrot.lane.b32.xlu0 %v1177, 96
          %v1339 = vpop.permute.xlu0 %1338
          %1340 = vrot.lane.b32.xlu0 %v1179, 96
          %v1341 = vpop.permute.xlu0 %1340
          %1342 = vrot.lane.b32.xlu0 %v1181, 96
          %v1343 = vpop.permute.xlu0 %1342
          %1344 = vrot.lane.b32.xlu0 %v1183, 96
          %v1345 = vpop.permute.xlu0 %1344
          %1346 = vrot.lane.b32.xlu0 %v1185, 96
          %v1347 = vpop.permute.xlu0 %1346
          %1348 = vrot.lane.b32.xlu0 %v1187, 96
          %v1349 = vpop.permute.xlu0 %1348
          %1350 = vrot.lane.b32.xlu0 %v1189, 96
          %v1351 = vpop.permute.xlu0 %1350
          %1352 = vrot.lane.b32.xlu0 %v1191, 96
          %v1353 = vpop.permute.xlu0 %1352
          %1354 = vrot.lane.b32.xlu0 %v1193, 96
          %v1355 = vpop.permute.xlu0 %1354
          %s1372 = scalar_lea.vmem [#allocation4], 128
          %1373 = vst.msk [vmem:[%s1372] sm:$0xff] %vm1194, %v1325
          %1374 = vst.msk [vmem:[%s1372 + $0x8] sm:$0xff] %vm1194, %v1327
          %1375 = vst.msk [vmem:[%s1372 + $0x10] sm:$0xff] %vm1194, %v1329
          %1376 = vst.msk [vmem:[%s1372 + $0x18] sm:$0xff] %vm1194, %v1331
          %1377 = vst.msk [vmem:[%s1372 + $0x20] sm:$0xff] %vm1194, %v1333
          %1378 = vst.msk [vmem:[%s1372 + $0x28] sm:$0xff] %vm1194, %v1335
          %1379 = vst.msk [vmem:[%s1372 + $0x30] sm:$0xff] %vm1194, %v1337
          %1380 = vst.msk [vmem:[%s1372 + $0x38] sm:$0xff] %vm1194, %v1339
          %1381 = vst.msk [vmem:[%s1372 + $0x40] sm:$0xff] %vm1194, %v1341
          %1382 = vst.msk [vmem:[%s1372 + $0x48] sm:$0xff] %vm1194, %v1343
          %1383 = vst.msk [vmem:[%s1372 + $0x50] sm:$0xff] %vm1194, %v1345
          %1384 = vst.msk [vmem:[%s1372 + $0x58] sm:$0xff] %vm1194, %v1347
          %1385 = vst.msk [vmem:[%s1372 + $0x60] sm:$0xff] %vm1194, %v1349
          %1386 = vst.msk [vmem:[%s1372 + $0x68] sm:$0xff] %vm1194, %v1351
          %1387 = vst.msk [vmem:[%s1372 + $0x70] sm:$0xff] %vm1194, %v1353
          %1388 = vst.msk [vmem:[%s1372 + $0x78] sm:$0xff] %vm1194, %v1355
          %1389 = vrot.lane.b32.xlu0 %v1162, 64
          %v1390 = vpop.permute.xlu0 %1389
          %1391 = vrot.lane.b32.xlu0 %v1164, 64
          %v1392 = vpop.permute.xlu0 %1391
          %1393 = vrot.lane.b32.xlu0 %v1166, 64
          %v1394 = vpop.permute.xlu0 %1393
          %1395 = vrot.lane.b32.xlu0 %v1168, 64
          %v1396 = vpop.permute.xlu0 %1395
          %1397 = vrot.lane.b32.xlu0 %v1170, 64
          %v1398 = vpop.permute.xlu0 %1397
          %1399 = vrot.lane.b32.xlu0 %v1172, 64
          %v1400 = vpop.permute.xlu0 %1399
          %1401 = vrot.lane.b32.xlu0 %v1174, 64
          %v1402 = vpop.permute.xlu0 %1401
          %1403 = vrot.lane.b32.xlu0 %v1176, 64
          %v1404 = vpop.permute.xlu0 %1403
          %1405 = vrot.lane.b32.xlu0 %v1178, 64
          %v1406 = vpop.permute.xlu0 %1405
          %1407 = vrot.lane.b32.xlu0 %v1180, 64
          %v1408 = vpop.permute.xlu0 %1407
          %1409 = vrot.lane.b32.xlu0 %v1182, 64
          %v1410 = vpop.permute.xlu0 %1409
          %1411 = vrot.lane.b32.xlu0 %v1184, 64
          %v1412 = vpop.permute.xlu0 %1411
          %1413 = vrot.lane.b32.xlu0 %v1186, 64
          %v1414 = vpop.permute.xlu0 %1413
          %1415 = vrot.lane.b32.xlu0 %v1188, 64
          %v1416 = vpop.permute.xlu0 %1415
          %1417 = vrot.lane.b32.xlu0 %v1190, 64
          %v1418 = vpop.permute.xlu0 %1417
          %1419 = vrot.lane.b32.xlu0 %v1192, 64
          %v1420 = vpop.permute.xlu0 %1419
          %s1437 = scalar_lea.vmem [#allocation3], 256
          %1438 = vst.msk [vmem:[%s1437] sm:$0xff] %vm1194, %v1390
          %1439 = vst.msk [vmem:[%s1437 + $0x8] sm:$0xff] %vm1194, %v1392
          %1440 = vst.msk [vmem:[%s1437 + $0x10] sm:$0xff] %vm1194, %v1394
          %1441 = vst.msk [vmem:[%s1437 + $0x18] sm:$0xff] %vm1194, %v1396
          %1442 = vst.msk [vmem:[%s1437 + $0x20] sm:$0xff] %vm1194, %v1398
          %1443 = vst.msk [vmem:[%s1437 + $0x28] sm:$0xff] %vm1194, %v1400
          %1444 = vst.msk [vmem:[%s1437 + $0x30] sm:$0xff] %vm1194, %v1402
          %1445 = vst.msk [vmem:[%s1437 + $0x38] sm:$0xff] %vm1194, %v1404
          %1446 = vst.msk [vmem:[%s1437 + $0x40] sm:$0xff] %vm1194, %v1406
          %1447 = vst.msk [vmem:[%s1437 + $0x48] sm:$0xff] %vm1194, %v1408
          %1448 = vst.msk [vmem:[%s1437 + $0x50] sm:$0xff] %vm1194, %v1410
          %1449 = vst.msk [vmem:[%s1437 + $0x58] sm:$0xff] %vm1194, %v1412
          %1450 = vst.msk [vmem:[%s1437 + $0x60] sm:$0xff] %vm1194, %v1414
          %1451 = vst.msk [vmem:[%s1437 + $0x68] sm:$0xff] %vm1194, %v1416
          %1452 = vst.msk [vmem:[%s1437 + $0x70] sm:$0xff] %vm1194, %v1418
          %1453 = vst.msk [vmem:[%s1437 + $0x78] sm:$0xff] %vm1194, %v1420
          %1454 = vrot.lane.b32.xlu0 %v1163, 64
          %v1455 = vpop.permute.xlu0 %1454
          %1456 = vrot.lane.b32.xlu0 %v1165, 64
          %v1457 = vpop.permute.xlu0 %1456
          %1458 = vrot.lane.b32.xlu0 %v1167, 64
          %v1459 = vpop.permute.xlu0 %1458
          %1460 = vrot.lane.b32.xlu0 %v1169, 64
          %v1461 = vpop.permute.xlu0 %1460
          %1462 = vrot.lane.b32.xlu0 %v1171, 64
          %v1463 = vpop.permute.xlu0 %1462
          %1464 = vrot.lane.b32.xlu0 %v1173, 64
          %v1465 = vpop.permute.xlu0 %1464
          %1466 = vrot.lane.b32.xlu0 %v1175, 64
          %v1467 = vpop.permute.xlu0 %1466
          %1468 = vrot.lane.b32.xlu0 %v1177, 64
          %v1469 = vpop.permute.xlu0 %1468
          %1470 = vrot.lane.b32.xlu0 %v1179, 64
          %v1471 = vpop.permute.xlu0 %1470
          %1472 = vrot.lane.b32.xlu0 %v1181, 64
          %v1473 = vpop.permute.xlu0 %1472
          %1474 = vrot.lane.b32.xlu0 %v1183, 64
          %v1475 = vpop.permute.xlu0 %1474
          %1476 = vrot.lane.b32.xlu0 %v1185, 64
          %v1477 = vpop.permute.xlu0 %1476
          %1478 = vrot.lane.b32.xlu0 %v1187, 64
          %v1479 = vpop.permute.xlu0 %1478
          %1480 = vrot.lane.b32.xlu0 %v1189, 64
          %v1481 = vpop.permute.xlu0 %1480
          %1482 = vrot.lane.b32.xlu0 %v1191, 64
          %v1483 = vpop.permute.xlu0 %1482
          %1484 = vrot.lane.b32.xlu0 %v1193, 64
          %v1485 = vpop.permute.xlu0 %1484
          %s1502 = scalar_lea.vmem [#allocation4], 256
          %1503 = vst.msk [vmem:[%s1502] sm:$0xff] %vm1194, %v1455
          %1504 = vst.msk [vmem:[%s1502 + $0x8] sm:$0xff] %vm1194, %v1457
          %1505 = vst.msk [vmem:[%s1502 + $0x10] sm:$0xff] %vm1194, %v1459
          %1506 = vst.msk [vmem:[%s1502 + $0x18] sm:$0xff] %vm1194, %v1461
          %1507 = vst.msk [vmem:[%s1502 + $0x20] sm:$0xff] %vm1194, %v1463
          %1508 = vst.msk [vmem:[%s1502 + $0x28] sm:$0xff] %vm1194, %v1465
          %1509 = vst.msk [vmem:[%s1502 + $0x30] sm:$0xff] %vm1194, %v1467
          %1510 = vst.msk [vmem:[%s1502 + $0x38] sm:$0xff] %vm1194, %v1469
          %1511 = vst.msk [vmem:[%s1502 + $0x40] sm:$0xff] %vm1194, %v1471
          %1512 = vst.msk [vmem:[%s1502 + $0x48] sm:$0xff] %vm1194, %v1473
          %1513 = vst.msk [vmem:[%s1502 + $0x50] sm:$0xff] %vm1194, %v1475
          %1514 = vst.msk [vmem:[%s1502 + $0x58] sm:$0xff] %vm1194, %v1477
          %1515 = vst.msk [vmem:[%s1502 + $0x60] sm:$0xff] %vm1194, %v1479
          %1516 = vst.msk [vmem:[%s1502 + $0x68] sm:$0xff] %vm1194, %v1481
          %1517 = vst.msk [vmem:[%s1502 + $0x70] sm:$0xff] %vm1194, %v1483
          %1518 = vst.msk [vmem:[%s1502 + $0x78] sm:$0xff] %vm1194, %v1485
          %1519 = vrot.lane.b32.xlu0 %v1162, 32
          %v1520 = vpop.permute.xlu0 %1519
          %1521 = vrot.lane.b32.xlu0 %v1164, 32
          %v1522 = vpop.permute.xlu0 %1521
          %1523 = vrot.lane.b32.xlu0 %v1166, 32
          %v1524 = vpop.permute.xlu0 %1523
          %1525 = vrot.lane.b32.xlu0 %v1168, 32
          %v1526 = vpop.permute.xlu0 %1525
          %1527 = vrot.lane.b32.xlu0 %v1170, 32
          %v1528 = vpop.permute.xlu0 %1527
          %1529 = vrot.lane.b32.xlu0 %v1172, 32
          %v1530 = vpop.permute.xlu0 %1529
          %1531 = vrot.lane.b32.xlu0 %v1174, 32
          %v1532 = vpop.permute.xlu0 %1531
          %1533 = vrot.lane.b32.xlu0 %v1176, 32
          %v1534 = vpop.permute.xlu0 %1533
          %1535 = vrot.lane.b32.xlu0 %v1178, 32
          %v1536 = vpop.permute.xlu0 %1535
          %1537 = vrot.lane.b32.xlu0 %v1180, 32
          %v1538 = vpop.permute.xlu0 %1537
          %1539 = vrot.lane.b32.xlu0 %v1182, 32
          %v1540 = vpop.permute.xlu0 %1539
          %1541 = vrot.lane.b32.xlu0 %v1184, 32
          %v1542 = vpop.permute.xlu0 %1541
          %1543 = vrot.lane.b32.xlu0 %v1186, 32
          %v1544 = vpop.permute.xlu0 %1543
          %1545 = vrot.lane.b32.xlu0 %v1188, 32
          %v1546 = vpop.permute.xlu0 %1545
          %1547 = vrot.lane.b32.xlu0 %v1190, 32
          %v1548 = vpop.permute.xlu0 %1547
          %1549 = vrot.lane.b32.xlu0 %v1192, 32
          %v1550 = vpop.permute.xlu0 %1549
          %s1567 = scalar_lea.vmem [#allocation3], 384
          %1568 = vst.msk [vmem:[%s1567] sm:$0xff] %vm1194, %v1520
          %1569 = vst.msk [vmem:[%s1567 + $0x8] sm:$0xff] %vm1194, %v1522
          %1570 = vst.msk [vmem:[%s1567 + $0x10] sm:$0xff] %vm1194, %v1524
          %1571 = vst.msk [vmem:[%s1567 + $0x18] sm:$0xff] %vm1194, %v1526
          %1572 = vst.msk [vmem:[%s1567 + $0x20] sm:$0xff] %vm1194, %v1528
          %1573 = vst.msk [vmem:[%s1567 + $0x28] sm:$0xff] %vm1194, %v1530
          %1574 = vst.msk [vmem:[%s1567 + $0x30] sm:$0xff] %vm1194, %v1532
          %1575 = vst.msk [vmem:[%s1567 + $0x38] sm:$0xff] %vm1194, %v1534
          %1576 = vst.msk [vmem:[%s1567 + $0x40] sm:$0xff] %vm1194, %v1536
          %1577 = vst.msk [vmem:[%s1567 + $0x48] sm:$0xff] %vm1194, %v1538
          %1578 = vst.msk [vmem:[%s1567 + $0x50] sm:$0xff] %vm1194, %v1540
          %1579 = vst.msk [vmem:[%s1567 + $0x58] sm:$0xff] %vm1194, %v1542
          %1580 = vst.msk [vmem:[%s1567 + $0x60] sm:$0xff] %vm1194, %v1544
          %1581 = vst.msk [vmem:[%s1567 + $0x68] sm:$0xff] %vm1194, %v1546
          %1582 = vst.msk [vmem:[%s1567 + $0x70] sm:$0xff] %vm1194, %v1548
          %1583 = vst.msk [vmem:[%s1567 + $0x78] sm:$0xff] %vm1194, %v1550
          %1584 = vrot.lane.b32.xlu0 %v1163, 32
          %v1585 = vpop.permute.xlu0 %1584
          %1586 = vrot.lane.b32.xlu0 %v1165, 32
          %v1587 = vpop.permute.xlu0 %1586
          %1588 = vrot.lane.b32.xlu0 %v1167, 32
          %v1589 = vpop.permute.xlu0 %1588
          %1590 = vrot.lane.b32.xlu0 %v1169, 32
          %v1591 = vpop.permute.xlu0 %1590
          %1592 = vrot.lane.b32.xlu0 %v1171, 32
          %v1593 = vpop.permute.xlu0 %1592
          %1594 = vrot.lane.b32.xlu0 %v1173, 32
          %v1595 = vpop.permute.xlu0 %1594
          %1596 = vrot.lane.b32.xlu0 %v1175, 32
          %v1597 = vpop.permute.xlu0 %1596
          %1598 = vrot.lane.b32.xlu0 %v1177, 32
          %v1599 = vpop.permute.xlu0 %1598
          %1600 = vrot.lane.b32.xlu0 %v1179, 32
          %v1601 = vpop.permute.xlu0 %1600
          %1602 = vrot.lane.b32.xlu0 %v1181, 32
          %v1603 = vpop.permute.xlu0 %1602
          %1604 = vrot.lane.b32.xlu0 %v1183, 32
          %v1605 = vpop.permute.xlu0 %1604
          %1606 = vrot.lane.b32.xlu0 %v1185, 32
          %v1607 = vpop.permute.xlu0 %1606
          %1608 = vrot.lane.b32.xlu0 %v1187, 32
          %v1609 = vpop.permute.xlu0 %1608
          %1610 = vrot.lane.b32.xlu0 %v1189, 32
          %v1611 = vpop.permute.xlu0 %1610
          %1612 = vrot.lane.b32.xlu0 %v1191, 32
          %v1613 = vpop.permute.xlu0 %1612
          %1614 = vrot.lane.b32.xlu0 %v1193, 32
          %v1615 = vpop.permute.xlu0 %1614
          %s1632 = scalar_lea.vmem [#allocation4], 384
          %1633 = vst.msk [vmem:[%s1632] sm:$0xff] %vm1194, %v1585
          %1634 = vst.msk [vmem:[%s1632 + $0x8] sm:$0xff] %vm1194, %v1587
          %1635 = vst.msk [vmem:[%s1632 + $0x10] sm:$0xff] %vm1194, %v1589
          %1636 = vst.msk [vmem:[%s1632 + $0x18] sm:$0xff] %vm1194, %v1591
          %1637 = vst.msk [vmem:[%s1632 + $0x20] sm:$0xff] %vm1194, %v1593
          %1638 = vst.msk [vmem:[%s1632 + $0x28] sm:$0xff] %vm1194, %v1595
          %1639 = vst.msk [vmem:[%s1632 + $0x30] sm:$0xff] %vm1194, %v1597
          %1640 = vst.msk [vmem:[%s1632 + $0x38] sm:$0xff] %vm1194, %v1599
          %1641 = vst.msk [vmem:[%s1632 + $0x40] sm:$0xff] %vm1194, %v1601
          %1642 = vst.msk [vmem:[%s1632 + $0x48] sm:$0xff] %vm1194, %v1603
          %1643 = vst.msk [vmem:[%s1632 + $0x50] sm:$0xff] %vm1194, %v1605
          %1644 = vst.msk [vmem:[%s1632 + $0x58] sm:$0xff] %vm1194, %v1607
          %1645 = vst.msk [vmem:[%s1632 + $0x60] sm:$0xff] %vm1194, %v1609
          %1646 = vst.msk [vmem:[%s1632 + $0x68] sm:$0xff] %vm1194, %v1611
          %1647 = vst.msk [vmem:[%s1632 + $0x70] sm:$0xff] %vm1194, %v1613
          %1648 = vst.msk [vmem:[%s1632 + $0x78] sm:$0xff] %vm1194, %v1615
        $region144: #{tpu_custom_call.1} parent=79 // pred_fallthru
          _
        %s1649 = smul.u32 %s44, 128
        %s1650 = scalar_lea.vmem [#allocation2], %s1649
        %v1651 = vld [vmem:[%s1650] sm:$0xff]
        %v1652 = vld [vmem:[%s1650 + $0x8] sm:$0xff]
        %v1653 = vld [vmem:[%s1650 + $0x10] sm:$0xff]
        %v1654 = vld [vmem:[%s1650 + $0x18] sm:$0xff]
        %v1655 = vld [vmem:[%s1650 + $0x20] sm:$0xff]
        %v1656 = vld [vmem:[%s1650 + $0x28] sm:$0xff]
        %v1657 = vld [vmem:[%s1650 + $0x30] sm:$0xff]
        %v1658 = vld [vmem:[%s1650 + $0x38] sm:$0xff]
        %v1659 = vld [vmem:[%s1650 + $0x40] sm:$0xff]
        %v1660 = vld [vmem:[%s1650 + $0x48] sm:$0xff]
        %v1661 = vld [vmem:[%s1650 + $0x50] sm:$0xff]
        %v1662 = vld [vmem:[%s1650 + $0x58] sm:$0xff]
        %v1663 = vld [vmem:[%s1650 + $0x60] sm:$0xff]
        %v1664 = vld [vmem:[%s1650 + $0x68] sm:$0xff]
        %v1665 = vld [vmem:[%s1650 + $0x70] sm:$0xff]
        %v1666 = vld [vmem:[%s1650 + $0x78] sm:$0xff]
        %v1667 = vpack.c.bf16 %v1652, %v1651
        %v1668 = vpack.c.bf16 %v1654, %v1653
        %v1669 = vpack.c.bf16 %v1656, %v1655
        %v1670 = vpack.c.bf16 %v1658, %v1657
        %v1671 = vpack.c.bf16 %v1660, %v1659
        %v1672 = vpack.c.bf16 %v1662, %v1661
        %v1673 = vpack.c.bf16 %v1664, %v1663
        %v1674 = vpack.c.bf16 %v1666, %v1665
        %v1675 = vld [vmem:[#allocation8] sm:$0xf]
        %v1676 = vld [vmem:[#allocation8 + $0x4] sm:$0xf]
        %v1677 = vld [vmem:[#allocation8 + $0x8] sm:$0xf]
        %v1678 = vld [vmem:[#allocation8 + $0xc] sm:$0xf]
        %v1679 = vld [vmem:[#allocation8 + $0x10] sm:$0xf]
        %v1680 = vld [vmem:[#allocation8 + $0x14] sm:$0xf]
        %v1681 = vld [vmem:[#allocation8 + $0x18] sm:$0xf]
        %v1682 = vld [vmem:[#allocation8 + $0x1c] sm:$0xf]
        %v1683 = vld [vmem:[#allocation8 + $0x20] sm:$0xf]
        %v1684 = vld [vmem:[#allocation8 + $0x24] sm:$0xf]
        %v1685 = vld [vmem:[#allocation8 + $0x28] sm:$0xf]
        %v1686 = vld [vmem:[#allocation8 + $0x2c] sm:$0xf]
        %v1687 = vld [vmem:[#allocation8 + $0x30] sm:$0xf]
        %v1688 = vld [vmem:[#allocation8 + $0x34] sm:$0xf]
        %v1689 = vld [vmem:[#allocation8 + $0x38] sm:$0xf]
        %v1690 = vld [vmem:[#allocation8 + $0x3c] sm:$0xf]
        %v1691 = vld [vmem:[#allocation10] sm:$0x1]
        %v1693 = vlaneseq
        %v1694 = vshrl.u32 %v1693, 7
        %v1695 = vsub.s32 0, %v1694
        %v1696 = vrot.slane %v1691, %v1695
        %v1714 = vunpack.c.l.b16 %v1675
        %v1715 = vunpack.c.l.b16 %v1676
        %v1716 = vunpack.c.l.b16 %v1677
        %v1717 = vunpack.c.l.b16 %v1678
        %v1718 = vunpack.c.l.b16 %v1679
        %v1719 = vunpack.c.l.b16 %v1680
        %v1720 = vunpack.c.l.b16 %v1681
        %v1721 = vunpack.c.l.b16 %v1682
        %v1722 = vunpack.c.l.b16 %v1683
        %v1723 = vunpack.c.l.b16 %v1684
        %v1724 = vunpack.c.l.b16 %v1685
        %v1725 = vunpack.c.l.b16 %v1686
        %v1726 = vunpack.c.l.b16 %v1687
        %v1727 = vunpack.c.l.b16 %v1688
        %v1728 = vunpack.c.l.b16 %v1689
        %v1729 = vunpack.c.l.b16 %v1690
        %v1730 = vpack.c.b16 %v1715, %v1714
        %v1731 = vpack.c.b16 %v1717, %v1716
        %v1732 = vpack.c.b16 %v1719, %v1718
        %v1733 = vpack.c.b16 %v1721, %v1720
        %v1734 = vpack.c.b16 %v1723, %v1722
        %v1735 = vpack.c.b16 %v1725, %v1724
        %v1736 = vpack.c.b16 %v1727, %v1726
        %v1737 = vpack.c.b16 %v1729, %v1728
        %1746 = vmatprep.subr.bf16.mxu0 0
        %1747 = vmatpush1.bf16.msra.mxu0 %v1730
        %1748 = vmatprep.subr.bf16.mxu0 0
        %1749 = vmatpush1.bf16.msra.mxu0 %v1731
        %1750 = vmatprep.subr.bf16.mxu0 0
        %1751 = vmatpush1.bf16.msra.mxu0 %v1732
        %1752 = vmatprep.subr.bf16.mxu0 0
        %1753 = vmatpush1.bf16.msra.mxu0 %v1733
        %1754 = vmatprep.subr.bf16.mxu0 0
        %1755 = vmatpush1.bf16.msra.mxu0 %v1734
        %1756 = vmatprep.subr.bf16.mxu0 0
        %1757 = vmatpush1.bf16.msra.mxu0 %v1735
        %1758 = vmatprep.subr.bf16.mxu0 0
        %1759 = vmatpush1.bf16.msra.mxu0 %v1736
        %1760 = vmatprep.subr.bf16.mxu0 0
        %1761 = vmatpush1.bf16.msra.mxu0 %v1737
        %1762 = vmatprep.subr.bf16.mxu0 0
        %1763 = vmatpush1.bf16.msra.mxu0 0
        %1764 = vmatprep.subr.bf16.mxu0 0
        %1765 = vmatpush1.bf16.msra.mxu0 0
        %1766 = vmatprep.subr.bf16.mxu0 0
        %1767 = vmatpush1.bf16.msra.mxu0 0
        %1768 = vmatprep.subr.bf16.mxu0 0
        %1769 = vmatpush1.bf16.msra.mxu0 0
        %1770 = vmatprep.subr.bf16.mxu0 0
        %1771 = vmatpush1.bf16.msra.mxu0 0
        %1772 = vmatprep.subr.bf16.mxu0 0
        %1773 = vmatpush1.bf16.msra.mxu0 0
        %1774 = vmatprep.subr.bf16.mxu0 0
        %1775 = vmatpush1.bf16.msra.mxu0 0
        %1776 = vmatprep.subr.bf16.mxu0 0
        %1777 = vmatpush1.bf16.msra.mxu0 0
        %1778 = vmatprep.mubr.bf16.mxu0 0
        %1779 = vmatmul.mubr.bf16.gmra.mrb[0].mxu0 %v1667
        %v1780 = vpop.f32.mrb[0].mxu0
        %v1781 = vadd.f32 %v1696, %v1780
        %v1782 = vpop.f32.mrb[0].mxu0
        %v1783 = vpop.f32.mrb[0].mxu0
        %v1784 = vadd.f32 %v1696, %v1783
        %v1785 = vpop.f32.mrb[0].mxu0
        %1786 = vmatprep.mubr.bf16.mxu0 0
        %1787 = vmatmul.mubr.bf16.gmra.mrb[0].mxu0 %v1668
        %v1788 = vpop.f32.mrb[0].mxu0
        %v1789 = vadd.f32 %v1696, %v1788
        %v1790 = vpop.f32.mrb[0].mxu0
        %v1791 = vpop.f32.mrb[0].mxu0
        %v1792 = vadd.f32 %v1696, %v1791
        %v1793 = vpop.f32.mrb[0].mxu0
        %1794 = vmatprep.mubr.bf16.mxu0 0
        %1795 = vmatmul.mubr.bf16.gmra.mrb[0].mxu0 %v1669
        %v1796 = vpop.f32.mrb[0].mxu0
        %v1797 = vadd.f32 %v1696, %v1796
        %v1798 = vpop.f32.mrb[0].mxu0
        %v1799 = vpop.f32.mrb[0].mxu0
        %v1800 = vadd.f32 %v1696, %v1799
        %v1801 = vpop.f32.mrb[0].mxu0
        %1802 = vmatprep.mubr.bf16.mxu0 0
        %1803 = vmatmul.mubr.bf16.gmra.mrb[0].mxu0 %v1670
        %v1804 = vpop.f32.mrb[0].mxu0
        %v1805 = vadd.f32 %v1696, %v1804
        %v1806 = vpop.f32.mrb[0].mxu0
        %v1807 = vpop.f32.mrb[0].mxu0
        %v1808 = vadd.f32 %v1696, %v1807
        %v1809 = vpop.f32.mrb[0].mxu0
        %1810 = vmatprep.mubr.bf16.mxu0 0
        %1811 = vmatmul.mubr.bf16.gmra.mrb[0].mxu0 %v1671
        %v1812 = vpop.f32.mrb[0].mxu0
        %v1813 = vadd.f32 %v1696, %v1812
        %v1814 = vpop.f32.mrb[0].mxu0
        %v1815 = vpop.f32.mrb[0].mxu0
        %v1816 = vadd.f32 %v1696, %v1815
        %v1817 = vpop.f32.mrb[0].mxu0
        %1818 = vmatprep.mubr.bf16.mxu0 0
        %1819 = vmatmul.mubr.bf16.gmra.mrb[0].mxu0 %v1672
        %v1820 = vpop.f32.mrb[0].mxu0
        %v1821 = vadd.f32 %v1696, %v1820
        %v1822 = vpop.f32.mrb[0].mxu0
        %v1823 = vpop.f32.mrb[0].mxu0
        %v1824 = vadd.f32 %v1696, %v1823
        %v1825 = vpop.f32.mrb[0].mxu0
        %1826 = vmatprep.mubr.bf16.mxu0 0
        %1827 = vmatmul.mubr.bf16.gmra.mrb[0].mxu0 %v1673
        %v1828 = vpop.f32.mrb[0].mxu0
        %v1829 = vadd.f32 %v1696, %v1828
        %v1830 = vpop.f32.mrb[0].mxu0
        %v1831 = vpop.f32.mrb[0].mxu0
        %v1832 = vadd.f32 %v1696, %v1831
        %v1833 = vpop.f32.mrb[0].mxu0
        %1834 = vmatprep.mubr.bf16.mxu0 0
        %1835 = vmatmul.mubr.bf16.gmra.mrb[0].mxu0 %v1674
        %v1836 = vpop.f32.mrb[0].mxu0
        %v1837 = vadd.f32 %v1696, %v1836
        %v1838 = vpop.f32.mrb[0].mxu0
        %v1839 = vpop.f32.mrb[0].mxu0
        %v1840 = vadd.f32 %v1696, %v1839
        %v1841 = vpop.f32.mrb[0].mxu0
        %1842 = vdwg.mxu0
        %v1843 = vpack.c.bf16 %v1784, %v1781
        %v1844 = vpack.c.bf16 %v1792, %v1789
        %v1845 = vpack.c.bf16 %v1800, %v1797
        %v1846 = vpack.c.bf16 %v1808, %v1805
        %v1847 = vpack.c.bf16 %v1816, %v1813
        %v1848 = vpack.c.bf16 %v1824, %v1821
        %v1849 = vpack.c.bf16 %v1832, %v1829
        %v1850 = vpack.c.bf16 %v1840, %v1837
        %1859 = vrot.lane.b32.xlu0 %v1843, 96
        %v1860 = vpop.permute.xlu0 %1859
        %1861 = vrot.lane.b32.xlu0 %v1844, 96
        %v1862 = vpop.permute.xlu0 %1861
        %1863 = vrot.lane.b32.xlu0 %v1845, 96
        %v1864 = vpop.permute.xlu0 %1863
        %1865 = vrot.lane.b32.xlu0 %v1846, 96
        %v1866 = vpop.permute.xlu0 %1865
        %1867 = vrot.lane.b32.xlu0 %v1847, 96
        %v1868 = vpop.permute.xlu0 %1867
        %1869 = vrot.lane.b32.xlu0 %v1848, 96
        %v1870 = vpop.permute.xlu0 %1869
        %1871 = vrot.lane.b32.xlu0 %v1849, 96
        %v1872 = vpop.permute.xlu0 %1871
        %1873 = vrot.lane.b32.xlu0 %v1850, 96
        %v1874 = vpop.permute.xlu0 %1873
        %1875 = vrot.lane.b32.xlu0 %v1843, 64
        %v1876 = vpop.permute.xlu0 %1875
        %1877 = vrot.lane.b32.xlu0 %v1844, 64
        %v1878 = vpop.permute.xlu0 %1877
        %1879 = vrot.lane.b32.xlu0 %v1845, 64
        %v1880 = vpop.permute.xlu0 %1879
        %1881 = vrot.lane.b32.xlu0 %v1846, 64
        %v1882 = vpop.permute.xlu0 %1881
        %1883 = vrot.lane.b32.xlu0 %v1847, 64
        %v1884 = vpop.permute.xlu0 %1883
        %1885 = vrot.lane.b32.xlu0 %v1848, 64
        %v1886 = vpop.permute.xlu0 %1885
        %1887 = vrot.lane.b32.xlu0 %v1849, 64
        %v1888 = vpop.permute.xlu0 %1887
        %1889 = vrot.lane.b32.xlu0 %v1850, 64
        %v1890 = vpop.permute.xlu0 %1889
        %1891 = vrot.lane.b32.xlu0 %v1843, 32
        %v1892 = vpop.permute.xlu0 %1891
        %1893 = vrot.lane.b32.xlu0 %v1844, 32
        %v1894 = vpop.permute.xlu0 %1893
        %1895 = vrot.lane.b32.xlu0 %v1845, 32
        %v1896 = vpop.permute.xlu0 %1895
        %1897 = vrot.lane.b32.xlu0 %v1846, 32
        %v1898 = vpop.permute.xlu0 %1897
        %1899 = vrot.lane.b32.xlu0 %v1847, 32
        %v1900 = vpop.permute.xlu0 %1899
        %1901 = vrot.lane.b32.xlu0 %v1848, 32
        %v1902 = vpop.permute.xlu0 %1901
        %1903 = vrot.lane.b32.xlu0 %v1849, 32
        %v1904 = vpop.permute.xlu0 %1903
        %1905 = vrot.lane.b32.xlu0 %v1850, 32
        %v1906 = vpop.permute.xlu0 %1905
        %v1907 = vld [vmem:[#allocation3] sm:$0xff]
        %v1908 = vld [vmem:[#allocation3 + $0x8] sm:$0xff]
        %v1909 = vld [vmem:[#allocation3 + $0x10] sm:$0xff]
        %v1910 = vld [vmem:[#allocation3 + $0x18] sm:$0xff]
        %v1911 = vld [vmem:[#allocation3 + $0x20] sm:$0xff]
        %v1912 = vld [vmem:[#allocation3 + $0x28] sm:$0xff]
        %v1913 = vld [vmem:[#allocation3 + $0x30] sm:$0xff]
        %v1914 = vld [vmem:[#allocation3 + $0x38] sm:$0xff]
        %v1915 = vld [vmem:[#allocation3 + $0x40] sm:$0xff]
        %v1916 = vld [vmem:[#allocation3 + $0x48] sm:$0xff]
        %v1917 = vld [vmem:[#allocation3 + $0x50] sm:$0xff]
        %v1918 = vld [vmem:[#allocation3 + $0x58] sm:$0xff]
        %v1919 = vld [vmem:[#allocation3 + $0x60] sm:$0xff]
        %v1920 = vld [vmem:[#allocation3 + $0x68] sm:$0xff]
        %v1921 = vld [vmem:[#allocation3 + $0x70] sm:$0xff]
        %v1922 = vld [vmem:[#allocation3 + $0x78] sm:$0xff]
        %v1923 = vld [vmem:[#allocation3 + $0x80] sm:$0xff]
        %v1924 = vld [vmem:[#allocation3 + $0x88] sm:$0xff]
        %v1925 = vld [vmem:[#allocation3 + $0x90] sm:$0xff]
        %v1926 = vld [vmem:[#allocation3 + $0x98] sm:$0xff]
        %v1927 = vld [vmem:[#allocation3 + $0xa0] sm:$0xff]
        %v1928 = vld [vmem:[#allocation3 + $0xa8] sm:$0xff]
        %v1929 = vld [vmem:[#allocation3 + $0xb0] sm:$0xff]
        %v1930 = vld [vmem:[#allocation3 + $0xb8] sm:$0xff]
        %v1931 = vld [vmem:[#allocation3 + $0xc0] sm:$0xff]
        %v1932 = vld [vmem:[#allocation3 + $0xc8] sm:$0xff]
        %v1933 = vld [vmem:[#allocation3 + $0xd0] sm:$0xff]
        %v1934 = vld [vmem:[#allocation3 + $0xd8] sm:$0xff]
        %v1935 = vld [vmem:[#allocation3 + $0xe0] sm:$0xff]
        %v1936 = vld [vmem:[#allocation3 + $0xe8] sm:$0xff]
        %v1937 = vld [vmem:[#allocation3 + $0xf0] sm:$0xff]
        %v1938 = vld [vmem:[#allocation3 + $0xf8] sm:$0xff]
        %v1939 = vld [vmem:[#allocation3 + $0x100] sm:$0xff]
        %v1940 = vld [vmem:[#allocation3 + $0x108] sm:$0xff]
        %v1941 = vld [vmem:[#allocation3 + $0x110] sm:$0xff]
        %v1942 = vld [vmem:[#allocation3 + $0x118] sm:$0xff]
        %v1943 = vld [vmem:[#allocation3 + $0x120] sm:$0xff]
        %v1944 = vld [vmem:[#allocation3 + $0x128] sm:$0xff]
        %v1945 = vld [vmem:[#allocation3 + $0x130] sm:$0xff]
        %v1946 = vld [vmem:[#allocation3 + $0x138] sm:$0xff]
        %v1947 = vld [vmem:[#allocation3 + $0x140] sm:$0xff]
        %v1948 = vld [vmem:[#allocation3 + $0x148] sm:$0xff]
        %v1949 = vld [vmem:[#allocation3 + $0x150] sm:$0xff]
        %v1950 = vld [vmem:[#allocation3 + $0x158] sm:$0xff]
        %v1951 = vld [vmem:[#allocation3 + $0x160] sm:$0xff]
        %v1952 = vld [vmem:[#allocation3 + $0x168] sm:$0xff]
        %v1953 = vld [vmem:[#allocation3 + $0x170] sm:$0xff]
        %v1954 = vld [vmem:[#allocation3 + $0x178] sm:$0xff]
        %v1955 = vld [vmem:[#allocation3 + $0x180] sm:$0xff]
        %v1956 = vld [vmem:[#allocation3 + $0x188] sm:$0xff]
        %v1957 = vld [vmem:[#allocation3 + $0x190] sm:$0xff]
        %v1958 = vld [vmem:[#allocation3 + $0x198] sm:$0xff]
        %v1959 = vld [vmem:[#allocation3 + $0x1a0] sm:$0xff]
        %v1960 = vld [vmem:[#allocation3 + $0x1a8] sm:$0xff]
        %v1961 = vld [vmem:[#allocation3 + $0x1b0] sm:$0xff]
        %v1962 = vld [vmem:[#allocation3 + $0x1b8] sm:$0xff]
        %v1963 = vld [vmem:[#allocation3 + $0x1c0] sm:$0xff]
        %v1964 = vld [vmem:[#allocation3 + $0x1c8] sm:$0xff]
        %v1965 = vld [vmem:[#allocation3 + $0x1d0] sm:$0xff]
        %v1966 = vld [vmem:[#allocation3 + $0x1d8] sm:$0xff]
        %v1967 = vld [vmem:[#allocation3 + $0x1e0] sm:$0xff]
        %v1968 = vld [vmem:[#allocation3 + $0x1e8] sm:$0xff]
        %v1969 = vld [vmem:[#allocation3 + $0x1f0] sm:$0xff]
        %v1970 = vld [vmem:[#allocation3 + $0x1f8] sm:$0xff]
        %vm1971 = vcmask 261120
        %v1973 = vsel %vm1971, %v1843, 0
        %v1976 = vsel %vm1971, %v1844, 0
        %v1979 = vsel %vm1971, %v1845, 0
        %v1982 = vsel %vm1971, %v1846, 0
        %v1985 = vsel %vm1971, %v1847, 0
        %v1988 = vsel %vm1971, %v1848, 0
        %v1991 = vsel %vm1971, %v1849, 0
        %v1994 = vsel %vm1971, %v1850, 0
        %v1997 = vsel %vm1971, %v1907, 0
        %v2000 = vsel %vm1971, %v1908, 0
        %v2003 = vsel %vm1971, %v1909, 0
        %v2006 = vsel %vm1971, %v1910, 0
        %v2009 = vsel %vm1971, %v1911, 0
        %v2012 = vsel %vm1971, %v1912, 0
        %v2015 = vsel %vm1971, %v1913, 0
        %v2018 = vsel %vm1971, %v1914, 0
        %v2021 = vsel %vm1971, %v1915, 0
        %v2024 = vsel %vm1971, %v1916, 0
        %v2027 = vsel %vm1971, %v1917, 0
        %v2030 = vsel %vm1971, %v1918, 0
        %v2033 = vsel %vm1971, %v1919, 0
        %v2036 = vsel %vm1971, %v1920, 0
        %v2039 = vsel %vm1971, %v1921, 0
        %v2042 = vsel %vm1971, %v1922, 0
        %2044 = vmatprep.subr.bf16.mxu0 0
        %2045 = vmatpush1.bf16.xpose.msra.mxu0 %v1997
        %2046 = vmatprep.subr.bf16.mxu0 0
        %2047 = vmatpush1.bf16.xpose.msra.mxu0 %v2000
        %2048 = vmatprep.subr.bf16.mxu0 0
        %2049 = vmatpush1.bf16.xpose.msra.mxu0 %v2003
        %2050 = vmatprep.subr.bf16.mxu0 0
        %2051 = vmatpush1.bf16.xpose.msra.mxu0 %v2006
        %2052 = vmatprep.subr.bf16.mxu0 0
        %2053 = vmatpush1.bf16.xpose.msra.mxu0 %v2009
        %2054 = vmatprep.subr.bf16.mxu0 0
        %2055 = vmatpush1.bf16.xpose.msra.mxu0 %v2012
        %2056 = vmatprep.subr.bf16.mxu0 0
        %2057 = vmatpush1.bf16.xpose.msra.mxu0 %v2015
        %2058 = vmatprep.subr.bf16.mxu0 0
        %2059 = vmatpush1.bf16.xpose.msra.mxu0 %v2018
        %2060 = vmatprep.subr.bf16.mxu0 0
        %2061 = vmatpush1.bf16.xpose.msra.mxu0 %v2021
        %2062 = vmatprep.subr.bf16.mxu0 0
        %2063 = vmatpush1.bf16.xpose.msra.mxu0 %v2024
        %2064 = vmatprep.subr.bf16.mxu0 0
        %2065 = vmatpush1.bf16.xpose.msra.mxu0 %v2027
        %2066 = vmatprep.subr.bf16.mxu0 0
        %2067 = vmatpush1.bf16.xpose.msra.mxu0 %v2030
        %2068 = vmatprep.subr.bf16.mxu0 0
        %2069 = vmatpush1.bf16.xpose.msra.mxu0 %v2033
        %2070 = vmatprep.subr.bf16.mxu0 0
        %2071 = vmatpush1.bf16.xpose.msra.mxu0 %v2036
        %2072 = vmatprep.subr.bf16.mxu0 0
        %2073 = vmatpush1.bf16.xpose.msra.mxu0 %v2039
        %2074 = vmatprep.subr.bf16.mxu0 0
        %2075 = vmatpush1.bf16.xpose.msra.mxu0 %v2042
        %2076 = vmatprep.mubr.bf16.mxu0 0
        %2077 = vmatmul.mubr.bf16.gmra.mrb[0].mxu0 %v1973
        %v2078 = vpop.f32.mrb[0].mxu0
        %v2079 = vadd.f32 0.0, %v2078
        %v2080 = vpop.f32.mrb[0].mxu0
        %v2081 = vadd.f32 0.0, %v2080
        %v2082 = vpop.f32.mrb[0].mxu0
        %v2083 = vadd.f32 0.0, %v2082
        %v2084 = vpop.f32.mrb[0].mxu0
        %v2085 = vadd.f32 0.0, %v2084
        %2086 = vmatprep.mubr.bf16.mxu0 0
        %2087 = vmatmul.mubr.bf16.gmra.mrb[0].mxu0 %v1976
        %v2088 = vpop.f32.mrb[0].mxu0
        %v2089 = vadd.f32 0.0, %v2088
        %v2090 = vpop.f32.mrb[0].mxu0
        %v2091 = vadd.f32 0.0, %v2090
        %v2092 = vpop.f32.mrb[0].mxu0
        %v2093 = vadd.f32 0.0, %v2092
        %v2094 = vpop.f32.mrb[0].mxu0
        %v2095 = vadd.f32 0.0, %v2094
        %2096 = vmatprep.mubr.bf16.mxu0 0
        %2097 = vmatmul.mubr.bf16.gmra.mrb[0].mxu0 %v1979
        %v2098 = vpop.f32.mrb[0].mxu0
        %v2099 = vadd.f32 0.0, %v2098
        %v2100 = vpop.f32.mrb[0].mxu0
        %v2101 = vadd.f32 0.0, %v2100
        %v2102 = vpop.f32.mrb[0].mxu0
        %v2103 = vadd.f32 0.0, %v2102
        %v2104 = vpop.f32.mrb[0].mxu0
        %v2105 = vadd.f32 0.0, %v2104
        %2106 = vmatprep.mubr.bf16.mxu0 0
        %2107 = vmatmul.mubr.bf16.gmra.mrb[0].mxu0 %v1982
        %v2108 = vpop.f32.mrb[0].mxu0
        %v2109 = vadd.f32 0.0, %v2108
        %v2110 = vpop.f32.mrb[0].mxu0
        %v2111 = vadd.f32 0.0, %v2110
        %v2112 = vpop.f32.mrb[0].mxu0
        %v2113 = vadd.f32 0.0, %v2112
        %v2114 = vpop.f32.mrb[0].mxu0
        %v2115 = vadd.f32 0.0, %v2114
        %2116 = vmatprep.mubr.bf16.mxu0 0
        %2117 = vmatmul.mubr.bf16.gmra.mrb[0].mxu0 %v1985
        %v2118 = vpop.f32.mrb[0].mxu0
        %v2119 = vadd.f32 0.0, %v2118
        %v2120 = vpop.f32.mrb[0].mxu0
        %v2121 = vadd.f32 0.0, %v2120
        %v2122 = vpop.f32.mrb[0].mxu0
        %v2123 = vadd.f32 0.0, %v2122
        %v2124 = vpop.f32.mrb[0].mxu0
        %v2125 = vadd.f32 0.0, %v2124
        %2126 = vmatprep.mubr.bf16.mxu0 0
        %2127 = vmatmul.mubr.bf16.gmra.mrb[0].mxu0 %v1988
        %v2128 = vpop.f32.mrb[0].mxu0
        %v2129 = vadd.f32 0.0, %v2128
        %v2130 = vpop.f32.mrb[0].mxu0
        %v2131 = vadd.f32 0.0, %v2130
        %v2132 = vpop.f32.mrb[0].mxu0
        %v2133 = vadd.f32 0.0, %v2132
        %v2134 = vpop.f32.mrb[0].mxu0
        %v2135 = vadd.f32 0.0, %v2134
        %2136 = vmatprep.mubr.bf16.mxu0 0
        %2137 = vmatmul.mubr.bf16.gmra.mrb[0].mxu0 %v1991
        %v2138 = vpop.f32.mrb[0].mxu0
        %v2139 = vadd.f32 0.0, %v2138
        %v2140 = vpop.f32.mrb[0].mxu0
        %v2141 = vadd.f32 0.0, %v2140
        %v2142 = vpop.f32.mrb[0].mxu0
        %v2143 = vadd.f32 0.0, %v2142
        %v2144 = vpop.f32.mrb[0].mxu0
        %v2145 = vadd.f32 0.0, %v2144
        %2146 = vmatprep.mubr.bf16.mxu0 0
        %2147 = vmatmul.mubr.bf16.gmra.mrb[0].mxu0 %v1994
        %v2148 = vpop.f32.mrb[0].mxu0
        %v2149 = vadd.f32 0.0, %v2148
        %v2150 = vpop.f32.mrb[0].mxu0
        %v2151 = vadd.f32 0.0, %v2150
        %v2152 = vpop.f32.mrb[0].mxu0
        %v2153 = vadd.f32 0.0, %v2152
        %v2154 = vpop.f32.mrb[0].mxu0
        %v2155 = vadd.f32 0.0, %v2154
        %2156 = vdwg.mxu0
        %v2158 = vsel %vm1971, %v1860, 0
        %v2161 = vsel %vm1971, %v1862, 0
        %v2164 = vsel %vm1971, %v1864, 0
        %v2167 = vsel %vm1971, %v1866, 0
        %v2170 = vsel %vm1971, %v1868, 0
        %v2173 = vsel %vm1971, %v1870, 0
        %v2176 = vsel %vm1971, %v1872, 0
        %v2179 = vsel %vm1971, %v1874, 0
        %v2182 = vsel %vm1971, %v1923, 0
        %v2185 = vsel %vm1971, %v1924, 0
        %v2188 = vsel %vm1971, %v1925, 0
        %v2191 = vsel %vm1971, %v1926, 0
        %v2194 = vsel %vm1971, %v1927, 0
        %v2197 = vsel %vm1971, %v1928, 0
        %v2200 = vsel %vm1971, %v1929, 0
        %v2203 = vsel %vm1971, %v1930, 0
        %v2206 = vsel %vm1971, %v1931, 0
        %v2209 = vsel %vm1971, %v1932, 0
        %v2212 = vsel %vm1971, %v1933, 0
        %v2215 = vsel %vm1971, %v1934, 0
        %v2218 = vsel %vm1971, %v1935, 0
        %v2221 = vsel %vm1971, %v1936, 0
        %v2224 = vsel %vm1971, %v1937, 0
        %v2227 = vsel %vm1971, %v1938, 0
        %2229 = vmatprep.subr.bf16.mxu0 0
        %2230 = vmatpush1.bf16.xpose.msra.mxu0 %v2182
        %2231 = vmatprep.subr.bf16.mxu0 0
        %2232 = vmatpush1.bf16.xpose.msra.mxu0 %v2185
        %2233 = vmatprep.subr.bf16.mxu0 0
        %2234 = vmatpush1.bf16.xpose.msra.mxu0 %v2188
        %2235 = vmatprep.subr.bf16.mxu0 0
        %2236 = vmatpush1.bf16.xpose.msra.mxu0 %v2191
        %2237 = vmatprep.subr.bf16.mxu0 0
        %2238 = vmatpush1.bf16.xpose.msra.mxu0 %v2194
        %2239 = vmatprep.subr.bf16.mxu0 0
        %2240 = vmatpush1.bf16.xpose.msra.mxu0 %v2197
        %2241 = vmatprep.subr.bf16.mxu0 0
        %2242 = vmatpush1.bf16.xpose.msra.mxu0 %v2200
        %2243 = vmatprep.subr.bf16.mxu0 0
        %2244 = vmatpush1.bf16.xpose.msra.mxu0 %v2203
        %2245 = vmatprep.subr.bf16.mxu0 0
        %2246 = vmatpush1.bf16.xpose.msra.mxu0 %v2206
        %2247 = vmatprep.subr.bf16.mxu0 0
        %2248 = vmatpush1.bf16.xpose.msra.mxu0 %v2209
        %2249 = vmatprep.subr.bf16.mxu0 0
        %2250 = vmatpush1.bf16.xpose.msra.mxu0 %v2212
        %2251 = vmatprep.subr.bf16.mxu0 0
        %2252 = vmatpush1.bf16.xpose.msra.mxu0 %v2215
        %2253 = vmatprep.subr.bf16.mxu0 0
        %2254 = vmatpush1.bf16.xpose.msra.mxu0 %v2218
        %2255 = vmatprep.subr.bf16.mxu0 0
        %2256 = vmatpush1.bf16.xpose.msra.mxu0 %v2221
        %2257 = vmatprep.subr.bf16.mxu0 0
        %2258 = vmatpush1.bf16.xpose.msra.mxu0 %v2224
        %2259 = vmatprep.subr.bf16.mxu0 0
        %2260 = vmatpush1.bf16.xpose.msra.mxu0 %v2227
        %2261 = vmatprep.mubr.bf16.mxu0 0
        %2262 = vmatmul.mubr.bf16.gmra.mrb[0].mxu0 %v2158
        %v2263 = vpop.f32.mrb[0].mxu0
        %v2264 = vadd.f32 0.0, %v2263
        %v2265 = vpop.f32.mrb[0].mxu0
        %v2266 = vadd.f32 0.0, %v2265
        %v2267 = vpop.f32.mrb[0].mxu0
        %v2268 = vadd.f32 0.0, %v2267
        %v2269 = vpop.f32.mrb[0].mxu0
        %v2270 = vadd.f32 0.0, %v2269
        %2271 = vmatprep.mubr.bf16.mxu0 0
        %2272 = vmatmul.mubr.bf16.gmra.mrb[0].mxu0 %v2161
        %v2273 = vpop.f32.mrb[0].mxu0
        %v2274 = vadd.f32 0.0, %v2273
        %v2275 = vpop.f32.mrb[0].mxu0
        %v2276 = vadd.f32 0.0, %v2275
        %v2277 = vpop.f32.mrb[0].mxu0
        %v2278 = vadd.f32 0.0, %v2277
        %v2279 = vpop.f32.mrb[0].mxu0
        %v2280 = vadd.f32 0.0, %v2279
        %2281 = vmatprep.mubr.bf16.mxu0 0
        %2282 = vmatmul.mubr.bf16.gmra.mrb[0].mxu0 %v2164
        %v2283 = vpop.f32.mrb[0].mxu0
        %v2284 = vadd.f32 0.0, %v2283
        %v2285 = vpop.f32.mrb[0].mxu0
        %v2286 = vadd.f32 0.0, %v2285
        %v2287 = vpop.f32.mrb[0].mxu0
        %v2288 = vadd.f32 0.0, %v2287
        %v2289 = vpop.f32.mrb[0].mxu0
        %v2290 = vadd.f32 0.0, %v2289
        %2291 = vmatprep.mubr.bf16.mxu0 0
        %2292 = vmatmul.mubr.bf16.gmra.mrb[0].mxu0 %v2167
        %v2293 = vpop.f32.mrb[0].mxu0
        %v2294 = vadd.f32 0.0, %v2293
        %v2295 = vpop.f32.mrb[0].mxu0
        %v2296 = vadd.f32 0.0, %v2295
        %v2297 = vpop.f32.mrb[0].mxu0
        %v2298 = vadd.f32 0.0, %v2297
        %v2299 = vpop.f32.mrb[0].mxu0
        %v2300 = vadd.f32 0.0, %v2299
        %2301 = vmatprep.mubr.bf16.mxu0 0
        %2302 = vmatmul.mubr.bf16.gmra.mrb[0].mxu0 %v2170
        %v2303 = vpop.f32.mrb[0].mxu0
        %v2304 = vadd.f32 0.0, %v2303
        %v2305 = vpop.f32.mrb[0].mxu0
        %v2306 = vadd.f32 0.0, %v2305
        %v2307 = vpop.f32.mrb[0].mxu0
        %v2308 = vadd.f32 0.0, %v2307
        %v2309 = vpop.f32.mrb[0].mxu0
        %v2310 = vadd.f32 0.0, %v2309
        %2311 = vmatprep.mubr.bf16.mxu0 0
        %2312 = vmatmul.mubr.bf16.gmra.mrb[0].mxu0 %v2173
        %v2313 = vpop.f32.mrb[0].mxu0
        %v2314 = vadd.f32 0.0, %v2313
        %v2315 = vpop.f32.mrb[0].mxu0
        %v2316 = vadd.f32 0.0, %v2315
        %v2317 = vpop.f32.mrb[0].mxu0
        %v2318 = vadd.f32 0.0, %v2317
        %v2319 = vpop.f32.mrb[0].mxu0
        %v2320 = vadd.f32 0.0, %v2319
        %2321 = vmatprep.mubr.bf16.mxu0 0
        %2322 = vmatmul.mubr.bf16.gmra.mrb[0].mxu0 %v2176
        %v2323 = vpop.f32.mrb[0].mxu0
        %v2324 = vadd.f32 0.0, %v2323
        %v2325 = vpop.f32.mrb[0].mxu0
        %v2326 = vadd.f32 0.0, %v2325
        %v2327 = vpop.f32.mrb[0].mxu0
        %v2328 = vadd.f32 0.0, %v2327
        %v2329 = vpop.f32.mrb[0].mxu0
        %v2330 = vadd.f32 0.0, %v2329
        %2331 = vmatprep.mubr.bf16.mxu0 0
        %2332 = vmatmul.mubr.bf16.gmra.mrb[0].mxu0 %v2179
        %v2333 = vpop.f32.mrb[0].mxu0
        %v2334 = vadd.f32 0.0, %v2333
        %v2335 = vpop.f32.mrb[0].mxu0
        %v2336 = vadd.f32 0.0, %v2335
        %v2337 = vpop.f32.mrb[0].mxu0
        %v2338 = vadd.f32 0.0, %v2337
        %v2339 = vpop.f32.mrb[0].mxu0
        %v2340 = vadd.f32 0.0, %v2339
        %2341 = vdwg.mxu0
        %v2343 = vsel %vm1971, %v1876, 0
        %v2346 = vsel %vm1971, %v1878, 0
        %v2349 = vsel %vm1971, %v1880, 0
        %v2352 = vsel %vm1971, %v1882, 0
        %v2355 = vsel %vm1971, %v1884, 0
        %v2358 = vsel %vm1971, %v1886, 0
        %v2361 = vsel %vm1971, %v1888, 0
        %v2364 = vsel %vm1971, %v1890, 0
        %v2367 = vsel %vm1971, %v1939, 0
        %v2370 = vsel %vm1971, %v1940, 0
        %v2373 = vsel %vm1971, %v1941, 0
        %v2376 = vsel %vm1971, %v1942, 0
        %v2379 = vsel %vm1971, %v1943, 0
        %v2382 = vsel %vm1971, %v1944, 0
        %v2385 = vsel %vm1971, %v1945, 0
        %v2388 = vsel %vm1971, %v1946, 0
        %v2391 = vsel %vm1971, %v1947, 0
        %v2394 = vsel %vm1971, %v1948, 0
        %v2397 = vsel %vm1971, %v1949, 0
        %v2400 = vsel %vm1971, %v1950, 0
        %v2403 = vsel %vm1971, %v1951, 0
        %v2406 = vsel %vm1971, %v1952, 0
        %v2409 = vsel %vm1971, %v1953, 0
        %v2412 = vsel %vm1971, %v1954, 0
        %2414 = vmatprep.subr.bf16.mxu0 0
        %2415 = vmatpush1.bf16.xpose.msra.mxu0 %v2367
        %2416 = vmatprep.subr.bf16.mxu0 0
        %2417 = vmatpush1.bf16.xpose.msra.mxu0 %v2370
        %2418 = vmatprep.subr.bf16.mxu0 0
        %2419 = vmatpush1.bf16.xpose.msra.mxu0 %v2373
        %2420 = vmatprep.subr.bf16.mxu0 0
        %2421 = vmatpush1.bf16.xpose.msra.mxu0 %v2376
        %2422 = vmatprep.subr.bf16.mxu0 0
        %2423 = vmatpush1.bf16.xpose.msra.mxu0 %v2379
        %2424 = vmatprep.subr.bf16.mxu0 0
        %2425 = vmatpush1.bf16.xpose.msra.mxu0 %v2382
        %2426 = vmatprep.subr.bf16.mxu0 0
        %2427 = vmatpush1.bf16.xpose.msra.mxu0 %v2385
        %2428 = vmatprep.subr.bf16.mxu0 0
        %2429 = vmatpush1.bf16.xpose.msra.mxu0 %v2388
        %2430 = vmatprep.subr.bf16.mxu0 0
        %2431 = vmatpush1.bf16.xpose.msra.mxu0 %v2391
        %2432 = vmatprep.subr.bf16.mxu0 0
        %2433 = vmatpush1.bf16.xpose.msra.mxu0 %v2394
        %2434 = vmatprep.subr.bf16.mxu0 0
        %2435 = vmatpush1.bf16.xpose.msra.mxu0 %v2397
        %2436 = vmatprep.subr.bf16.mxu0 0
        %2437 = vmatpush1.bf16.xpose.msra.mxu0 %v2400
        %2438 = vmatprep.subr.bf16.mxu0 0
        %2439 = vmatpush1.bf16.xpose.msra.mxu0 %v2403
        %2440 = vmatprep.subr.bf16.mxu0 0
        %2441 = vmatpush1.bf16.xpose.msra.mxu0 %v2406
        %2442 = vmatprep.subr.bf16.mxu0 0
        %2443 = vmatpush1.bf16.xpose.msra.mxu0 %v2409
        %2444 = vmatprep.subr.bf16.mxu0 0
        %2445 = vmatpush1.bf16.xpose.msra.mxu0 %v2412
        %2446 = vmatprep.mubr.bf16.mxu0 0
        %2447 = vmatmul.mubr.bf16.gmra.mrb[0].mxu0 %v2343
        %v2448 = vpop.f32.mrb[0].mxu0
        %v2449 = vadd.f32 0.0, %v2448
        %v2450 = vpop.f32.mrb[0].mxu0
        %v2451 = vadd.f32 0.0, %v2450
        %v2452 = vpop.f32.mrb[0].mxu0
        %v2453 = vadd.f32 0.0, %v2452
        %v2454 = vpop.f32.mrb[0].mxu0
        %v2455 = vadd.f32 0.0, %v2454
        %2456 = vmatprep.mubr.bf16.mxu0 0
        %2457 = vmatmul.mubr.bf16.gmra.mrb[0].mxu0 %v2346
        %v2458 = vpop.f32.mrb[0].mxu0
        %v2459 = vadd.f32 0.0, %v2458
        %v2460 = vpop.f32.mrb[0].mxu0
        %v2461 = vadd.f32 0.0, %v2460
        %v2462 = vpop.f32.mrb[0].mxu0
        %v2463 = vadd.f32 0.0, %v2462
        %v2464 = vpop.f32.mrb[0].mxu0
        %v2465 = vadd.f32 0.0, %v2464
        %2466 = vmatprep.mubr.bf16.mxu0 0
        %2467 = vmatmul.mubr.bf16.gmra.mrb[0].mxu0 %v2349
        %v2468 = vpop.f32.mrb[0].mxu0
        %v2469 = vadd.f32 0.0, %v2468
        %v2470 = vpop.f32.mrb[0].mxu0
        %v2471 = vadd.f32 0.0, %v2470
        %v2472 = vpop.f32.mrb[0].mxu0
        %v2473 = vadd.f32 0.0, %v2472
        %v2474 = vpop.f32.mrb[0].mxu0
        %v2475 = vadd.f32 0.0, %v2474
        %2476 = vmatprep.mubr.bf16.mxu0 0
        %2477 = vmatmul.mubr.bf16.gmra.mrb[0].mxu0 %v2352
        %v2478 = vpop.f32.mrb[0].mxu0
        %v2479 = vadd.f32 0.0, %v2478
        %v2480 = vpop.f32.mrb[0].mxu0
        %v2481 = vadd.f32 0.0, %v2480
        %v2482 = vpop.f32.mrb[0].mxu0
        %v2483 = vadd.f32 0.0, %v2482
        %v2484 = vpop.f32.mrb[0].mxu0
        %v2485 = vadd.f32 0.0, %v2484
        %2486 = vmatprep.mubr.bf16.mxu0 0
        %2487 = vmatmul.mubr.bf16.gmra.mrb[0].mxu0 %v2355
        %v2488 = vpop.f32.mrb[0].mxu0
        %v2489 = vadd.f32 0.0, %v2488
        %v2490 = vpop.f32.mrb[0].mxu0
        %v2491 = vadd.f32 0.0, %v2490
        %v2492 = vpop.f32.mrb[0].mxu0
        %v2493 = vadd.f32 0.0, %v2492
        %v2494 = vpop.f32.mrb[0].mxu0
        %v2495 = vadd.f32 0.0, %v2494
        %2496 = vmatprep.mubr.bf16.mxu0 0
        %2497 = vmatmul.mubr.bf16.gmra.mrb[0].mxu0 %v2358
        %v2498 = vpop.f32.mrb[0].mxu0
        %v2499 = vadd.f32 0.0, %v2498
        %v2500 = vpop.f32.mrb[0].mxu0
        %v2501 = vadd.f32 0.0, %v2500
        %v2502 = vpop.f32.mrb[0].mxu0
        %v2503 = vadd.f32 0.0, %v2502
        %v2504 = vpop.f32.mrb[0].mxu0
        %v2505 = vadd.f32 0.0, %v2504
        %2506 = vmatprep.mubr.bf16.mxu0 0
        %2507 = vmatmul.mubr.bf16.gmra.mrb[0].mxu0 %v2361
        %v2508 = vpop.f32.mrb[0].mxu0
        %v2509 = vadd.f32 0.0, %v2508
        %v2510 = vpop.f32.mrb[0].mxu0
        %v2511 = vadd.f32 0.0, %v2510
        %v2512 = vpop.f32.mrb[0].mxu0
        %v2513 = vadd.f32 0.0, %v2512
        %v2514 = vpop.f32.mrb[0].mxu0
        %v2515 = vadd.f32 0.0, %v2514
        %2516 = vmatprep.mubr.bf16.mxu0 0
        %2517 = vmatmul.mubr.bf16.gmra.mrb[0].mxu0 %v2364
        %v2518 = vpop.f32.mrb[0].mxu0
        %v2519 = vadd.f32 0.0, %v2518
        %v2520 = vpop.f32.mrb[0].mxu0
        %v2521 = vadd.f32 0.0, %v2520
        %v2522 = vpop.f32.mrb[0].mxu0
        %v2523 = vadd.f32 0.0, %v2522
        %v2524 = vpop.f32.mrb[0].mxu0
        %v2525 = vadd.f32 0.0, %v2524
        %2526 = vdwg.mxu0
        %v2528 = vsel %vm1971, %v1892, 0
        %v2531 = vsel %vm1971, %v1894, 0
        %v2534 = vsel %vm1971, %v1896, 0
        %v2537 = vsel %vm1971, %v1898, 0
        %v2540 = vsel %vm1971, %v1900, 0
        %v2543 = vsel %vm1971, %v1902, 0
        %v2546 = vsel %vm1971, %v1904, 0
        %v2549 = vsel %vm1971, %v1906, 0
        %v2552 = vsel %vm1971, %v1955, 0
        %v2555 = vsel %vm1971, %v1956, 0
        %v2558 = vsel %vm1971, %v1957, 0
        %v2561 = vsel %vm1971, %v1958, 0
        %v2564 = vsel %vm1971, %v1959, 0
        %v2567 = vsel %vm1971, %v1960, 0
        %v2570 = vsel %vm1971, %v1961, 0
        %v2573 = vsel %vm1971, %v1962, 0
        %v2576 = vsel %vm1971, %v1963, 0
        %v2579 = vsel %vm1971, %v1964, 0
        %v2582 = vsel %vm1971, %v1965, 0
        %v2585 = vsel %vm1971, %v1966, 0
        %v2588 = vsel %vm1971, %v1967, 0
        %v2591 = vsel %vm1971, %v1968, 0
        %v2594 = vsel %vm1971, %v1969, 0
        %v2597 = vsel %vm1971, %v1970, 0
        %2599 = vmatprep.subr.bf16.mxu0 0
        %2600 = vmatpush1.bf16.xpose.msra.mxu0 %v2552
        %2601 = vmatprep.subr.bf16.mxu0 0
        %2602 = vmatpush1.bf16.xpose.msra.mxu0 %v2555
        %2603 = vmatprep.subr.bf16.mxu0 0
        %2604 = vmatpush1.bf16.xpose.msra.mxu0 %v2558
        %2605 = vmatprep.subr.bf16.mxu0 0
        %2606 = vmatpush1.bf16.xpose.msra.mxu0 %v2561
        %2607 = vmatprep.subr.bf16.mxu0 0
        %2608 = vmatpush1.bf16.xpose.msra.mxu0 %v2564
        %2609 = vmatprep.subr.bf16.mxu0 0
        %2610 = vmatpush1.bf16.xpose.msra.mxu0 %v2567
        %2611 = vmatprep.subr.bf16.mxu0 0
        %2612 = vmatpush1.bf16.xpose.msra.mxu0 %v2570
        %2613 = vmatprep.subr.bf16.mxu0 0
        %2614 = vmatpush1.bf16.xpose.msra.mxu0 %v2573
        %2615 = vmatprep.subr.bf16.mxu0 0
        %2616 = vmatpush1.bf16.xpose.msra.mxu0 %v2576
        %2617 = vmatprep.subr.bf16.mxu0 0
        %2618 = vmatpush1.bf16.xpose.msra.mxu0 %v2579
        %2619 = vmatprep.subr.bf16.mxu0 0
        %2620 = vmatpush1.bf16.xpose.msra.mxu0 %v2582
        %2621 = vmatprep.subr.bf16.mxu0 0
        %2622 = vmatpush1.bf16.xpose.msra.mxu0 %v2585
        %2623 = vmatprep.subr.bf16.mxu0 0
        %2624 = vmatpush1.bf16.xpose.msra.mxu0 %v2588
        %2625 = vmatprep.subr.bf16.mxu0 0
        %2626 = vmatpush1.bf16.xpose.msra.mxu0 %v2591
        %2627 = vmatprep.subr.bf16.mxu0 0
        %2628 = vmatpush1.bf16.xpose.msra.mxu0 %v2594
        %2629 = vmatprep.subr.bf16.mxu0 0
        %2630 = vmatpush1.bf16.xpose.msra.mxu0 %v2597
        %2631 = vmatprep.mubr.bf16.mxu0 0
        %2632 = vmatmul.mubr.bf16.gmra.mrb[0].mxu0 %v2528
        %v2633 = vpop.f32.mrb[0].mxu0
        %v2634 = vadd.f32 0.0, %v2633
        %v2635 = vpop.f32.mrb[0].mxu0
        %v2636 = vadd.f32 0.0, %v2635
        %v2637 = vpop.f32.mrb[0].mxu0
        %v2638 = vadd.f32 0.0, %v2637
        %v2639 = vpop.f32.mrb[0].mxu0
        %v2640 = vadd.f32 0.0, %v2639
        %2641 = vmatprep.mubr.bf16.mxu0 0
        %2642 = vmatmul.mubr.bf16.gmra.mrb[0].mxu0 %v2531
        %v2643 = vpop.f32.mrb[0].mxu0
        %v2644 = vadd.f32 0.0, %v2643
        %v2645 = vpop.f32.mrb[0].mxu0
        %v2646 = vadd.f32 0.0, %v2645
        %v2647 = vpop.f32.mrb[0].mxu0
        %v2648 = vadd.f32 0.0, %v2647
        %v2649 = vpop.f32.mrb[0].mxu0
        %v2650 = vadd.f32 0.0, %v2649
        %2651 = vmatprep.mubr.bf16.mxu0 0
        %2652 = vmatmul.mubr.bf16.gmra.mrb[0].mxu0 %v2534
        %v2653 = vpop.f32.mrb[0].mxu0
        %v2654 = vadd.f32 0.0, %v2653
        %v2655 = vpop.f32.mrb[0].mxu0
        %v2656 = vadd.f32 0.0, %v2655
        %v2657 = vpop.f32.mrb[0].mxu0
        %v2658 = vadd.f32 0.0, %v2657
        %v2659 = vpop.f32.mrb[0].mxu0
        %v2660 = vadd.f32 0.0, %v2659
        %2661 = vmatprep.mubr.bf16.mxu0 0
        %2662 = vmatmul.mubr.bf16.gmra.mrb[0].mxu0 %v2537
        %v2663 = vpop.f32.mrb[0].mxu0
        %v2664 = vadd.f32 0.0, %v2663
        %v2665 = vpop.f32.mrb[0].mxu0
        %v2666 = vadd.f32 0.0, %v2665
        %v2667 = vpop.f32.mrb[0].mxu0
        %v2668 = vadd.f32 0.0, %v2667
        %v2669 = vpop.f32.mrb[0].mxu0
        %v2670 = vadd.f32 0.0, %v2669
        %2671 = vmatprep.mubr.bf16.mxu0 0
        %2672 = vmatmul.mubr.bf16.gmra.mrb[0].mxu0 %v2540
        %v2673 = vpop.f32.mrb[0].mxu0
        %v2674 = vadd.f32 0.0, %v2673
        %v2675 = vpop.f32.mrb[0].mxu0
        %v2676 = vadd.f32 0.0, %v2675
        %v2677 = vpop.f32.mrb[0].mxu0
        %v2678 = vadd.f32 0.0, %v2677
        %v2679 = vpop.f32.mrb[0].mxu0
        %v2680 = vadd.f32 0.0, %v2679
        %2681 = vmatprep.mubr.bf16.mxu0 0
        %2682 = vmatmul.mubr.bf16.gmra.mrb[0].mxu0 %v2543
        %v2683 = vpop.f32.mrb[0].mxu0
        %v2684 = vadd.f32 0.0, %v2683
        %v2685 = vpop.f32.mrb[0].mxu0
        %v2686 = vadd.f32 0.0, %v2685
        %v2687 = vpop.f32.mrb[0].mxu0
        %v2688 = vadd.f32 0.0, %v2687
        %v2689 = vpop.f32.mrb[0].mxu0
        %v2690 = vadd.f32 0.0, %v2689
        %2691 = vmatprep.mubr.bf16.mxu0 0
        %2692 = vmatmul.mubr.bf16.gmra.mrb[0].mxu0 %v2546
        %v2693 = vpop.f32.mrb[0].mxu0
        %v2694 = vadd.f32 0.0, %v2693
        %v2695 = vpop.f32.mrb[0].mxu0
        %v2696 = vadd.f32 0.0, %v2695
        %v2697 = vpop.f32.mrb[0].mxu0
        %v2698 = vadd.f32 0.0, %v2697
        %v2699 = vpop.f32.mrb[0].mxu0
        %v2700 = vadd.f32 0.0, %v2699
        %2701 = vmatprep.mubr.bf16.mxu0 0
        %2702 = vmatmul.mubr.bf16.gmra.mrb[0].mxu0 %v2549
        %v2703 = vpop.f32.mrb[0].mxu0
        %v2704 = vadd.f32 0.0, %v2703
        %v2705 = vpop.f32.mrb[0].mxu0
        %v2706 = vadd.f32 0.0, %v2705
        %v2707 = vpop.f32.mrb[0].mxu0
        %v2708 = vadd.f32 0.0, %v2707
        %v2709 = vpop.f32.mrb[0].mxu0
        %v2710 = vadd.f32 0.0, %v2709
        %2711 = vdwg.mxu0
        %v2712 = vmax.f32 %v2079, %v2081
        %2713 = vmax.xlane.f32.xlu0 %v2712
        %v2714 = vpop.xlane.xlu0 %2713
        %v2715 = vmax.f32 %v2083, %v2085
        %2716 = vmax.xlane.f32.xlu0 %v2715
        %v2717 = vpop.xlane.xlu0 %2716
        %v2718 = vmax.f32 %v2089, %v2091
        %2719 = vmax.xlane.f32.xlu0 %v2718
        %v2720 = vpop.xlane.xlu0 %2719
        %v2721 = vmax.f32 %v2093, %v2095
        %2722 = vmax.xlane.f32.xlu0 %v2721
        %v2723 = vpop.xlane.xlu0 %2722
        %v2724 = vmax.f32 %v2099, %v2101
        %2725 = vmax.xlane.f32.xlu0 %v2724
        %v2726 = vpop.xlane.xlu0 %2725
        %v2727 = vmax.f32 %v2103, %v2105
        %2728 = vmax.xlane.f32.xlu0 %v2727
        %v2729 = vpop.xlane.xlu0 %2728
        %v2730 = vmax.f32 %v2109, %v2111
        %2731 = vmax.xlane.f32.xlu0 %v2730
        %v2732 = vpop.xlane.xlu0 %2731
        %v2733 = vmax.f32 %v2113, %v2115
        %2734 = vmax.xlane.f32.xlu0 %v2733
        %v2735 = vpop.xlane.xlu0 %2734
        %v2736 = vmax.f32 %v2119, %v2121
        %2737 = vmax.xlane.f32.xlu0 %v2736
        %v2738 = vpop.xlane.xlu0 %2737
        %v2739 = vmax.f32 %v2123, %v2125
        %2740 = vmax.xlane.f32.xlu0 %v2739
        %v2741 = vpop.xlane.xlu0 %2740
        %v2742 = vmax.f32 %v2129, %v2131
        %2743 = vmax.xlane.f32.xlu0 %v2742
        %v2744 = vpop.xlane.xlu0 %2743
        %v2745 = vmax.f32 %v2133, %v2135
        %2746 = vmax.xlane.f32.xlu0 %v2745
        %v2747 = vpop.xlane.xlu0 %2746
        %v2748 = vmax.f32 %v2139, %v2141
        %2749 = vmax.xlane.f32.xlu0 %v2748
        %v2750 = vpop.xlane.xlu0 %2749
        %v2751 = vmax.f32 %v2143, %v2145
        %2752 = vmax.xlane.f32.xlu0 %v2751
        %v2753 = vpop.xlane.xlu0 %2752
        %v2754 = vmax.f32 %v2149, %v2151
        %2755 = vmax.xlane.f32.xlu0 %v2754
        %v2756 = vpop.xlane.xlu0 %2755
        %v2757 = vmax.f32 %v2153, %v2155
        %2758 = vmax.xlane.f32.xlu0 %v2757
        %v2759 = vpop.xlane.xlu0 %2758
        %v2760 = vmax.f32 %v2264, %v2266
        %2761 = vmax.xlane.f32.xlu0 %v2760
        %v2762 = vpop.xlane.xlu0 %2761
        %v2763 = vmax.f32 %v2268, %v2270
        %2764 = vmax.xlane.f32.xlu0 %v2763
        %v2765 = vpop.xlane.xlu0 %2764
        %v2766 = vmax.f32 %v2274, %v2276
        %2767 = vmax.xlane.f32.xlu0 %v2766
        %v2768 = vpop.xlane.xlu0 %2767
        %v2769 = vmax.f32 %v2278, %v2280
        %2770 = vmax.xlane.f32.xlu0 %v2769
        %v2771 = vpop.xlane.xlu0 %2770
        %v2772 = vmax.f32 %v2284, %v2286
        %2773 = vmax.xlane.f32.xlu0 %v2772
        %v2774 = vpop.xlane.xlu0 %2773
        %v2775 = vmax.f32 %v2288, %v2290
        %2776 = vmax.xlane.f32.xlu0 %v2775
        %v2777 = vpop.xlane.xlu0 %2776
        %v2778 = vmax.f32 %v2294, %v2296
        %2779 = vmax.xlane.f32.xlu0 %v2778
        %v2780 = vpop.xlane.xlu0 %2779
        %v2781 = vmax.f32 %v2298, %v2300
        %2782 = vmax.xlane.f32.xlu0 %v2781
        %v2783 = vpop.xlane.xlu0 %2782
        %v2784 = vmax.f32 %v2304, %v2306
        %2785 = vmax.xlane.f32.xlu0 %v2784
        %v2786 = vpop.xlane.xlu0 %2785
        %v2787 = vmax.f32 %v2308, %v2310
        %2788 = vmax.xlane.f32.xlu0 %v2787
        %v2789 = vpop.xlane.xlu0 %2788
        %v2790 = vmax.f32 %v2314, %v2316
        %2791 = vmax.xlane.f32.xlu0 %v2790
        %v2792 = vpop.xlane.xlu0 %2791
        %v2793 = vmax.f32 %v2318, %v2320
        %2794 = vmax.xlane.f32.xlu0 %v2793
        %v2795 = vpop.xlane.xlu0 %2794
        %v2796 = vmax.f32 %v2324, %v2326
        %2797 = vmax.xlane.f32.xlu0 %v2796
        %v2798 = vpop.xlane.xlu0 %2797
        %v2799 = vmax.f32 %v2328, %v2330
        %2800 = vmax.xlane.f32.xlu0 %v2799
        %v2801 = vpop.xlane.xlu0 %2800
        %v2802 = vmax.f32 %v2334, %v2336
        %2803 = vmax.xlane.f32.xlu0 %v2802
        %v2804 = vpop.xlane.xlu0 %2803
        %v2805 = vmax.f32 %v2338, %v2340
        %2806 = vmax.xlane.f32.xlu0 %v2805
        %v2807 = vpop.xlane.xlu0 %2806
        %v2808 = vmax.f32 %v2449, %v2451
        %2809 = vmax.xlane.f32.xlu0 %v2808
        %v2810 = vpop.xlane.xlu0 %2809
        %v2811 = vmax.f32 %v2453, %v2455
        %2812 = vmax.xlane.f32.xlu0 %v2811
        %v2813 = vpop.xlane.xlu0 %2812
        %v2814 = vmax.f32 %v2459, %v2461
        %2815 = vmax.xlane.f32.xlu0 %v2814
        %v2816 = vpop.xlane.xlu0 %2815
        %v2817 = vmax.f32 %v2463, %v2465
        %2818 = vmax.xlane.f32.xlu0 %v2817
        %v2819 = vpop.xlane.xlu0 %2818
        %v2820 = vmax.f32 %v2469, %v2471
        %2821 = vmax.xlane.f32.xlu0 %v2820
        %v2822 = vpop.xlane.xlu0 %2821
        %v2823 = vmax.f32 %v2473, %v2475
        %2824 = vmax.xlane.f32.xlu0 %v2823
        %v2825 = vpop.xlane.xlu0 %2824
        %v2826 = vmax.f32 %v2479, %v2481
        %2827 = vmax.xlane.f32.xlu0 %v2826
        %v2828 = vpop.xlane.xlu0 %2827
        %v2829 = vmax.f32 %v2483, %v2485
        %2830 = vmax.xlane.f32.xlu0 %v2829
        %v2831 = vpop.xlane.xlu0 %2830
        %v2832 = vmax.f32 %v2489, %v2491
        %2833 = vmax.xlane.f32.xlu0 %v2832
        %v2834 = vpop.xlane.xlu0 %2833
        %v2835 = vmax.f32 %v2493, %v2495
        %2836 = vmax.xlane.f32.xlu0 %v2835
        %v2837 = vpop.xlane.xlu0 %2836
        %v2838 = vmax.f32 %v2499, %v2501
        %2839 = vmax.xlane.f32.xlu0 %v2838
        %v2840 = vpop.xlane.xlu0 %2839
        %v2841 = vmax.f32 %v2503, %v2505
        %2842 = vmax.xlane.f32.xlu0 %v2841
        %v2843 = vpop.xlane.xlu0 %2842
        %v2844 = vmax.f32 %v2509, %v2511
        %2845 = vmax.xlane.f32.xlu0 %v2844
        %v2846 = vpop.xlane.xlu0 %2845
        %v2847 = vmax.f32 %v2513, %v2515
        %2848 = vmax.xlane.f32.xlu0 %v2847
        %v2849 = vpop.xlane.xlu0 %2848
        %v2850 = vmax.f32 %v2519, %v2521
        %2851 = vmax.xlane.f32.xlu0 %v2850
        %v2852 = vpop.xlane.xlu0 %2851
        %v2853 = vmax.f32 %v2523, %v2525
        %2854 = vmax.xlane.f32.xlu0 %v2853
        %v2855 = vpop.xlane.xlu0 %2854
        %v2856 = vmax.f32 %v2634, %v2636
        %2857 = vmax.xlane.f32.xlu0 %v2856
        %v2858 = vpop.xlane.xlu0 %2857
        %v2859 = vmax.f32 %v2638, %v2640
        %2860 = vmax.xlane.f32.xlu0 %v2859
        %v2861 = vpop.xlane.xlu0 %2860
        %v2862 = vmax.f32 %v2644, %v2646
        %2863 = vmax.xlane.f32.xlu0 %v2862
        %v2864 = vpop.xlane.xlu0 %2863
        %v2865 = vmax.f32 %v2648, %v2650
        %2866 = vmax.xlane.f32.xlu0 %v2865
        %v2867 = vpop.xlane.xlu0 %2866
        %v2868 = vmax.f32 %v2654, %v2656
        %2869 = vmax.xlane.f32.xlu0 %v2868
        %v2870 = vpop.xlane.xlu0 %2869
        %v2871 = vmax.f32 %v2658, %v2660
        %2872 = vmax.xlane.f32.xlu0 %v2871
        %v2873 = vpop.xlane.xlu0 %2872
        %v2874 = vmax.f32 %v2664, %v2666
        %2875 = vmax.xlane.f32.xlu0 %v2874
        %v2876 = vpop.xlane.xlu0 %2875
        %v2877 = vmax.f32 %v2668, %v2670
        %2878 = vmax.xlane.f32.xlu0 %v2877
        %v2879 = vpop.xlane.xlu0 %2878
        %v2880 = vmax.f32 %v2674, %v2676
        %2881 = vmax.xlane.f32.xlu0 %v2880
        %v2882 = vpop.xlane.xlu0 %2881
        %v2883 = vmax.f32 %v2678, %v2680
        %2884 = vmax.xlane.f32.xlu0 %v2883
        %v2885 = vpop.xlane.xlu0 %2884
        %v2886 = vmax.f32 %v2684, %v2686
        %2887 = vmax.xlane.f32.xlu0 %v2886
        %v2888 = vpop.xlane.xlu0 %2887
        %v2889 = vmax.f32 %v2688, %v2690
        %2890 = vmax.xlane.f32.xlu0 %v2889
        %v2891 = vpop.xlane.xlu0 %2890
        %v2892 = vmax.f32 %v2694, %v2696
        %2893 = vmax.xlane.f32.xlu0 %v2892
        %v2894 = vpop.xlane.xlu0 %2893
        %v2895 = vmax.f32 %v2698, %v2700
        %2896 = vmax.xlane.f32.xlu0 %v2895
        %v2897 = vpop.xlane.xlu0 %2896
        %v2898 = vmax.f32 %v2704, %v2706
        %2899 = vmax.xlane.f32.xlu0 %v2898
        %v2900 = vpop.xlane.xlu0 %2899
        %v2901 = vmax.f32 %v2708, %v2710
        %2902 = vmax.xlane.f32.xlu0 %v2901
        %v2903 = vpop.xlane.xlu0 %2902
        %v2904 = vsub.f32 %v2079, %v2714
        %v2905 = vsub.f32 %v2081, %v2714
        %v2906 = vsub.f32 %v2083, %v2717
        %v2907 = vsub.f32 %v2085, %v2717
        %v2908 = vsub.f32 %v2089, %v2720
        %v2909 = vsub.f32 %v2091, %v2720
        %v2910 = vsub.f32 %v2093, %v2723
        %v2911 = vsub.f32 %v2095, %v2723
        %v2912 = vsub.f32 %v2099, %v2726
        %v2913 = vsub.f32 %v2101, %v2726
        %v2914 = vsub.f32 %v2103, %v2729
        %v2915 = vsub.f32 %v2105, %v2729
        %v2916 = vsub.f32 %v2109, %v2732
        %v2917 = vsub.f32 %v2111, %v2732
        %v2918 = vsub.f32 %v2113, %v2735
        %v2919 = vsub.f32 %v2115, %v2735
        %v2920 = vsub.f32 %v2119, %v2738
        %v2921 = vsub.f32 %v2121, %v2738
        %v2922 = vsub.f32 %v2123, %v2741
        %v2923 = vsub.f32 %v2125, %v2741
        %v2924 = vsub.f32 %v2129, %v2744
        %v2925 = vsub.f32 %v2131, %v2744
        %v2926 = vsub.f32 %v2133, %v2747
        %v2927 = vsub.f32 %v2135, %v2747
        %v2928 = vsub.f32 %v2139, %v2750
        %v2929 = vsub.f32 %v2141, %v2750
        %v2930 = vsub.f32 %v2143, %v2753
        %v2931 = vsub.f32 %v2145, %v2753
        %v2932 = vsub.f32 %v2149, %v2756
        %v2933 = vsub.f32 %v2151, %v2756
        %v2934 = vsub.f32 %v2153, %v2759
        %v2935 = vsub.f32 %v2155, %v2759
        %v2936 = vsub.f32 %v2264, %v2762
        %v2937 = vsub.f32 %v2266, %v2762
        %v2938 = vsub.f32 %v2268, %v2765
        %v2939 = vsub.f32 %v2270, %v2765
        %v2940 = vsub.f32 %v2274, %v2768
        %v2941 = vsub.f32 %v2276, %v2768
        %v2942 = vsub.f32 %v2278, %v2771
        %v2943 = vsub.f32 %v2280, %v2771
        %v2944 = vsub.f32 %v2284, %v2774
        %v2945 = vsub.f32 %v2286, %v2774
        %v2946 = vsub.f32 %v2288, %v2777
        %v2947 = vsub.f32 %v2290, %v2777
        %v2948 = vsub.f32 %v2294, %v2780
        %v2949 = vsub.f32 %v2296, %v2780
        %v2950 = vsub.f32 %v2298, %v2783
        %v2951 = vsub.f32 %v2300, %v2783
        %v2952 = vsub.f32 %v2304, %v2786
        %v2953 = vsub.f32 %v2306, %v2786
        %v2954 = vsub.f32 %v2308, %v2789
        %v2955 = vsub.f32 %v2310, %v2789
        %v2956 = vsub.f32 %v2314, %v2792
        %v2957 = vsub.f32 %v2316, %v2792
        %v2958 = vsub.f32 %v2318, %v2795
        %v2959 = vsub.f32 %v2320, %v2795
        %v2960 = vsub.f32 %v2324, %v2798
        %v2961 = vsub.f32 %v2326, %v2798
        %v2962 = vsub.f32 %v2328, %v2801
        %v2963 = vsub.f32 %v2330, %v2801
        %v2964 = vsub.f32 %v2334, %v2804
        %v2965 = vsub.f32 %v2336, %v2804
        %v2966 = vsub.f32 %v2338, %v2807
        %v2967 = vsub.f32 %v2340, %v2807
        %v2968 = vsub.f32 %v2449, %v2810
        %v2969 = vsub.f32 %v2451, %v2810
        %v2970 = vsub.f32 %v2453, %v2813
        %v2971 = vsub.f32 %v2455, %v2813
        %v2972 = vsub.f32 %v2459, %v2816
        %v2973 = vsub.f32 %v2461, %v2816
        %v2974 = vsub.f32 %v2463, %v2819
        %v2975 = vsub.f32 %v2465, %v2819
        %v2976 = vsub.f32 %v2469, %v2822
        %v2977 = vsub.f32 %v2471, %v2822
        %v2978 = vsub.f32 %v2473, %v2825
        %v2979 = vsub.f32 %v2475, %v2825
        %v2980 = vsub.f32 %v2479, %v2828
        %v2981 = vsub.f32 %v2481, %v2828
        %v2982 = vsub.f32 %v2483, %v2831
        %v2983 = vsub.f32 %v2485, %v2831
        %v2984 = vsub.f32 %v2489, %v2834
        %v2985 = vsub.f32 %v2491, %v2834
        %v2986 = vsub.f32 %v2493, %v2837
        %v2987 = vsub.f32 %v2495, %v2837
        %v2988 = vsub.f32 %v2499, %v2840
        %v2989 = vsub.f32 %v2501, %v2840
        %v2990 = vsub.f32 %v2503, %v2843
        %v2991 = vsub.f32 %v2505, %v2843
        %v2992 = vsub.f32 %v2509, %v2846
        %v2993 = vsub.f32 %v2511, %v2846
        %v2994 = vsub.f32 %v2513, %v2849
        %v2995 = vsub.f32 %v2515, %v2849
        %v2996 = vsub.f32 %v2519, %v2852
        %v2997 = vsub.f32 %v2521, %v2852
        %v2998 = vsub.f32 %v2523, %v2855
        %v2999 = vsub.f32 %v2525, %v2855
        %v3000 = vsub.f32 %v2634, %v2858
        %v3001 = vsub.f32 %v2636, %v2858
        %v3002 = vsub.f32 %v2638, %v2861
        %v3003 = vsub.f32 %v2640, %v2861
        %v3004 = vsub.f32 %v2644, %v2864
        %v3005 = vsub.f32 %v2646, %v2864
        %v3006 = vsub.f32 %v2648, %v2867
        %v3007 = vsub.f32 %v2650, %v2867
        %v3008 = vsub.f32 %v2654, %v2870
        %v3009 = vsub.f32 %v2656, %v2870
        %v3010 = vsub.f32 %v2658, %v2873
        %v3011 = vsub.f32 %v2660, %v2873
        %v3012 = vsub.f32 %v2664, %v2876
        %v3013 = vsub.f32 %v2666, %v2876
        %v3014 = vsub.f32 %v2668, %v2879
        %v3015 = vsub.f32 %v2670, %v2879
        %v3016 = vsub.f32 %v2674, %v2882
        %v3017 = vsub.f32 %v2676, %v2882
        %v3018 = vsub.f32 %v2678, %v2885
        %v3019 = vsub.f32 %v2680, %v2885
        %v3020 = vsub.f32 %v2684, %v2888
        %v3021 = vsub.f32 %v2686, %v2888
        %v3022 = vsub.f32 %v2688, %v2891
        %v3023 = vsub.f32 %v2690, %v2891
        %v3024 = vsub.f32 %v2694, %v2894
        %v3025 = vsub.f32 %v2696, %v2894
        %v3026 = vsub.f32 %v2698, %v2897
        %v3027 = vsub.f32 %v2700, %v2897
        %v3028 = vsub.f32 %v2704, %v2900
        %v3029 = vsub.f32 %v2706, %v2900
        %v3030 = vsub.f32 %v2708, %v2903
        %v3031 = vsub.f32 %v2710, %v2903
        %v3032 = vmul.f32 %v2904, 1.442695
        %v3033 = vpow.pop %v3032
        %v3034 = vmul.f32 %v2905, 1.442695
        %v3035 = vpow.pop %v3034
        %v3036 = vmul.f32 %v2906, 1.442695
        %v3037 = vpow.pop %v3036
        %v3038 = vmul.f32 %v2907, 1.442695
        %v3039 = vpow.pop %v3038
        %v3040 = vmul.f32 %v2908, 1.442695
        %v3041 = vpow.pop %v3040
        %v3042 = vmul.f32 %v2909, 1.442695
        %v3043 = vpow.pop %v3042
        %v3044 = vmul.f32 %v2910, 1.442695
        %v3045 = vpow.pop %v3044
        %v3046 = vmul.f32 %v2911, 1.442695
        %v3047 = vpow.pop %v3046
        %v3048 = vmul.f32 %v2912, 1.442695
        %v3049 = vpow.pop %v3048
        %v3050 = vmul.f32 %v2913, 1.442695
        %v3051 = vpow.pop %v3050
        %v3052 = vmul.f32 %v2914, 1.442695
        %v3053 = vpow.pop %v3052
        %v3054 = vmul.f32 %v2915, 1.442695
        %v3055 = vpow.pop %v3054
        %v3056 = vmul.f32 %v2916, 1.442695
        %v3057 = vpow.pop %v3056
        %v3058 = vmul.f32 %v2917, 1.442695
        %v3059 = vpow.pop %v3058
        %v3060 = vmul.f32 %v2918, 1.442695
        %v3061 = vpow.pop %v3060
        %v3062 = vmul.f32 %v2919, 1.442695
        %v3063 = vpow.pop %v3062
        %v3064 = vmul.f32 %v2920, 1.442695
        %v3065 = vpow.pop %v3064
        %v3066 = vmul.f32 %v2921, 1.442695
        %v3067 = vpow.pop %v3066
        %v3068 = vmul.f32 %v2922, 1.442695
        %v3069 = vpow.pop %v3068
        %v3070 = vmul.f32 %v2923, 1.442695
        %v3071 = vpow.pop %v3070
        %v3072 = vmul.f32 %v2924, 1.442695
        %v3073 = vpow.pop %v3072
        %v3074 = vmul.f32 %v2925, 1.442695
        %v3075 = vpow.pop %v3074
        %v3076 = vmul.f32 %v2926, 1.442695
        %v3077 = vpow.pop %v3076
        %v3078 = vmul.f32 %v2927, 1.442695
        %v3079 = vpow.pop %v3078
        %v3080 = vmul.f32 %v2928, 1.442695
        %v3081 = vpow.pop %v3080
        %v3082 = vmul.f32 %v2929, 1.442695
        %v3083 = vpow.pop %v3082
        %v3084 = vmul.f32 %v2930, 1.442695
        %v3085 = vpow.pop %v3084
        %v3086 = vmul.f32 %v2931, 1.442695
        %v3087 = vpow.pop %v3086
        %v3088 = vmul.f32 %v2932, 1.442695
        %v3089 = vpow.pop %v3088
        %v3090 = vmul.f32 %v2933, 1.442695
        %v3091 = vpow.pop %v3090
        %v3092 = vmul.f32 %v2934, 1.442695
        %v3093 = vpow.pop %v3092
        %v3094 = vmul.f32 %v2935, 1.442695
        %v3095 = vpow.pop %v3094
        %v3096 = vmul.f32 %v2936, 1.442695
        %v3097 = vpow.pop %v3096
        %v3098 = vmul.f32 %v2937, 1.442695
        %v3099 = vpow.pop %v3098
        %v3100 = vmul.f32 %v2938, 1.442695
        %v3101 = vpow.pop %v3100
        %v3102 = vmul.f32 %v2939, 1.442695
        %v3103 = vpow.pop %v3102
        %v3104 = vmul.f32 %v2940, 1.442695
        %v3105 = vpow.pop %v3104
        %v3106 = vmul.f32 %v2941, 1.442695
        %v3107 = vpow.pop %v3106
        %v3108 = vmul.f32 %v2942, 1.442695
        %v3109 = vpow.pop %v3108
        %v3110 = vmul.f32 %v2943, 1.442695
        %v3111 = vpow.pop %v3110
        %v3112 = vmul.f32 %v2944, 1.442695
        %v3113 = vpow.pop %v3112
        %v3114 = vmul.f32 %v2945, 1.442695
        %v3115 = vpow.pop %v3114
        %v3116 = vmul.f32 %v2946, 1.442695
        %v3117 = vpow.pop %v3116
        %v3118 = vmul.f32 %v2947, 1.442695
        %v3119 = vpow.pop %v3118
        %v3120 = vmul.f32 %v2948, 1.442695
        %v3121 = vpow.pop %v3120
        %v3122 = vmul.f32 %v2949, 1.442695
        %v3123 = vpow.pop %v3122
        %v3124 = vmul.f32 %v2950, 1.442695
        %v3125 = vpow.pop %v3124
        %v3126 = vmul.f32 %v2951, 1.442695
        %v3127 = vpow.pop %v3126
        %v3128 = vmul.f32 %v2952, 1.442695
        %v3129 = vpow.pop %v3128
        %v3130 = vmul.f32 %v2953, 1.442695
        %v3131 = vpow.pop %v3130
        %v3132 = vmul.f32 %v2954, 1.442695
        %v3133 = vpow.pop %v3132
        %v3134 = vmul.f32 %v2955, 1.442695
        %v3135 = vpow.pop %v3134
        %v3136 = vmul.f32 %v2956, 1.442695
        %v3137 = vpow.pop %v3136
        %v3138 = vmul.f32 %v2957, 1.442695
        %v3139 = vpow.pop %v3138
        %v3140 = vmul.f32 %v2958, 1.442695
        %v3141 = vpow.pop %v3140
        %v3142 = vmul.f32 %v2959, 1.442695
        %v3143 = vpow.pop %v3142
        %v3144 = vmul.f32 %v2960, 1.442695
        %v3145 = vpow.pop %v3144
        %v3146 = vmul.f32 %v2961, 1.442695
        %v3147 = vpow.pop %v3146
        %v3148 = vmul.f32 %v2962, 1.442695
        %v3149 = vpow.pop %v3148
        %v3150 = vmul.f32 %v2963, 1.442695
        %v3151 = vpow.pop %v3150
        %v3152 = vmul.f32 %v2964, 1.442695
        %v3153 = vpow.pop %v3152
        %v3154 = vmul.f32 %v2965, 1.442695
        %v3155 = vpow.pop %v3154
        %v3156 = vmul.f32 %v2966, 1.442695
        %v3157 = vpow.pop %v3156
        %v3158 = vmul.f32 %v2967, 1.442695
        %v3159 = vpow.pop %v3158
        %v3160 = vmul.f32 %v2968, 1.442695
        %v3161 = vpow.pop %v3160
        %v3162 = vmul.f32 %v2969, 1.442695
        %v3163 = vpow.pop %v3162
        %v3164 = vmul.f32 %v2970, 1.442695
        %v3165 = vpow.pop %v3164
        %v3166 = vmul.f32 %v2971, 1.442695
        %v3167 = vpow.pop %v3166
        %v3168 = vmul.f32 %v2972, 1.442695
        %v3169 = vpow.pop %v3168
        %v3170 = vmul.f32 %v2973, 1.442695
        %v3171 = vpow.pop %v3170
        %v3172 = vmul.f32 %v2974, 1.442695
        %v3173 = vpow.pop %v3172
        %v3174 = vmul.f32 %v2975, 1.442695
        %v3175 = vpow.pop %v3174
        %v3176 = vmul.f32 %v2976, 1.442695
        %v3177 = vpow.pop %v3176
        %v3178 = vmul.f32 %v2977, 1.442695
        %v3179 = vpow.pop %v3178
        %v3180 = vmul.f32 %v2978, 1.442695
        %v3181 = vpow.pop %v3180
        %v3182 = vmul.f32 %v2979, 1.442695
        %v3183 = vpow.pop %v3182
        %v3184 = vmul.f32 %v2980, 1.442695
        %v3185 = vpow.pop %v3184
        %v3186 = vmul.f32 %v2981, 1.442695
        %v3187 = vpow.pop %v3186
        %v3188 = vmul.f32 %v2982, 1.442695
        %v3189 = vpow.pop %v3188
        %v3190 = vmul.f32 %v2983, 1.442695
        %v3191 = vpow.pop %v3190
        %v3192 = vmul.f32 %v2984, 1.442695
        %v3193 = vpow.pop %v3192
        %v3194 = vmul.f32 %v2985, 1.442695
        %v3195 = vpow.pop %v3194
        %v3196 = vmul.f32 %v2986, 1.442695
        %v3197 = vpow.pop %v3196
        %v3198 = vmul.f32 %v2987, 1.442695
        %v3199 = vpow.pop %v3198
        %v3200 = vmul.f32 %v2988, 1.442695
        %v3201 = vpow.pop %v3200
        %v3202 = vmul.f32 %v2989, 1.442695
        %v3203 = vpow.pop %v3202
        %v3204 = vmul.f32 %v2990, 1.442695
        %v3205 = vpow.pop %v3204
        %v3206 = vmul.f32 %v2991, 1.442695
        %v3207 = vpow.pop %v3206
        %v3208 = vmul.f32 %v2992, 1.442695
        %v3209 = vpow.pop %v3208
        %v3210 = vmul.f32 %v2993, 1.442695
        %v3211 = vpow.pop %v3210
        %v3212 = vmul.f32 %v2994, 1.442695
        %v3213 = vpow.pop %v3212
        %v3214 = vmul.f32 %v2995, 1.442695
        %v3215 = vpow.pop %v3214
        %v3216 = vmul.f32 %v2996, 1.442695
        %v3217 = vpow.pop %v3216
        %v3218 = vmul.f32 %v2997, 1.442695
        %v3219 = vpow.pop %v3218
        %v3220 = vmul.f32 %v2998, 1.442695
        %v3221 = vpow.pop %v3220
        %v3222 = vmul.f32 %v2999, 1.442695
        %v3223 = vpow.pop %v3222
        %v3224 = vmul.f32 %v3000, 1.442695
        %v3225 = vpow.pop %v3224
        %v3226 = vmul.f32 %v3001, 1.442695
        %v3227 = vpow.pop %v3226
        %v3228 = vmul.f32 %v3002, 1.442695
        %v3229 = vpow.pop %v3228
        %v3230 = vmul.f32 %v3003, 1.442695
        %v3231 = vpow.pop %v3230
        %v3232 = vmul.f32 %v3004, 1.442695
        %v3233 = vpow.pop %v3232
        %v3234 = vmul.f32 %v3005, 1.442695
        %v3235 = vpow.pop %v3234
        %v3236 = vmul.f32 %v3006, 1.442695
        %v3237 = vpow.pop %v3236
        %v3238 = vmul.f32 %v3007, 1.442695
        %v3239 = vpow.pop %v3238
        %v3240 = vmul.f32 %v3008, 1.442695
        %v3241 = vpow.pop %v3240
        %v3242 = vmul.f32 %v3009, 1.442695
        %v3243 = vpow.pop %v3242
        %v3244 = vmul.f32 %v3010, 1.442695
        %v3245 = vpow.pop %v3244
        %v3246 = vmul.f32 %v3011, 1.442695
        %v3247 = vpow.pop %v3246
        %v3248 = vmul.f32 %v3012, 1.442695
        %v3249 = vpow.pop %v3248
        %v3250 = vmul.f32 %v3013, 1.442695
        %v3251 = vpow.pop %v3250
        %v3252 = vmul.f32 %v3014, 1.442695
        %v3253 = vpow.pop %v3252
        %v3254 = vmul.f32 %v3015, 1.442695
        %v3255 = vpow.pop %v3254
        %v3256 = vmul.f32 %v3016, 1.442695
        %v3257 = vpow.pop %v3256
        %v3258 = vmul.f32 %v3017, 1.442695
        %v3259 = vpow.pop %v3258
        %v3260 = vmul.f32 %v3018, 1.442695
        %v3261 = vpow.pop %v3260
        %v3262 = vmul.f32 %v3019, 1.442695
        %v3263 = vpow.pop %v3262
        %v3264 = vmul.f32 %v3020, 1.442695
        %v3265 = vpow.pop %v3264
        %v3266 = vmul.f32 %v3021, 1.442695
        %v3267 = vpow.pop %v3266
        %v3268 = vmul.f32 %v3022, 1.442695
        %v3269 = vpow.pop %v3268
        %v3270 = vmul.f32 %v3023, 1.442695
        %v3271 = vpow.pop %v3270
        %v3272 = vmul.f32 %v3024, 1.442695
        %v3273 = vpow.pop %v3272
        %v3274 = vmul.f32 %v3025, 1.442695
        %v3275 = vpow.pop %v3274
        %v3276 = vmul.f32 %v3026, 1.442695
        %v3277 = vpow.pop %v3276
        %v3278 = vmul.f32 %v3027, 1.442695
        %v3279 = vpow.pop %v3278
        %v3280 = vmul.f32 %v3028, 1.442695
        %v3281 = vpow.pop %v3280
        %v3282 = vmul.f32 %v3029, 1.442695
        %v3283 = vpow.pop %v3282
        %v3284 = vmul.f32 %v3030, 1.442695
        %v3285 = vpow.pop %v3284
        %v3286 = vmul.f32 %v3031, 1.442695
        %v3287 = vpow.pop %v3286
        %v3288 = vadd.f32 %v3033, %v3035
        %3289 = vadd.xlane.f32.xlu0 %v3288
        %v3290 = vpop.xlane.xlu0 %3289
        %v3291 = vadd.f32 %v3037, %v3039
        %3292 = vadd.xlane.f32.xlu0 %v3291
        %v3293 = vpop.xlane.xlu0 %3292
        %v3294 = vadd.f32 %v3041, %v3043
        %3295 = vadd.xlane.f32.xlu0 %v3294
        %v3296 = vpop.xlane.xlu0 %3295
        %v3297 = vadd.f32 %v3045, %v3047
        %3298 = vadd.xlane.f32.xlu0 %v3297
        %v3299 = vpop.xlane.xlu0 %3298
        %v3300 = vadd.f32 %v3049, %v3051
        %3301 = vadd.xlane.f32.xlu0 %v3300
        %v3302 = vpop.xlane.xlu0 %3301
        %v3303 = vadd.f32 %v3053, %v3055
        %3304 = vadd.xlane.f32.xlu0 %v3303
        %v3305 = vpop.xlane.xlu0 %3304
        %v3306 = vadd.f32 %v3057, %v3059
        %3307 = vadd.xlane.f32.xlu0 %v3306
        %v3308 = vpop.xlane.xlu0 %3307
        %v3309 = vadd.f32 %v3061, %v3063
        %3310 = vadd.xlane.f32.xlu0 %v3309
        %v3311 = vpop.xlane.xlu0 %3310
        %v3312 = vadd.f32 %v3065, %v3067
        %3313 = vadd.xlane.f32.xlu0 %v3312
        %v3314 = vpop.xlane.xlu0 %3313
        %v3315 = vadd.f32 %v3069, %v3071
        %3316 = vadd.xlane.f32.xlu0 %v3315
        %v3317 = vpop.xlane.xlu0 %3316
        %v3318 = vadd.f32 %v3073, %v3075
        %3319 = vadd.xlane.f32.xlu0 %v3318
        %v3320 = vpop.xlane.xlu0 %3319
        %v3321 = vadd.f32 %v3077, %v3079
        %3322 = vadd.xlane.f32.xlu0 %v3321
        %v3323 = vpop.xlane.xlu0 %3322
        %v3324 = vadd.f32 %v3081, %v3083
        %3325 = vadd.xlane.f32.xlu0 %v3324
        %v3326 = vpop.xlane.xlu0 %3325
        %v3327 = vadd.f32 %v3085, %v3087
        %3328 = vadd.xlane.f32.xlu0 %v3327
        %v3329 = vpop.xlane.xlu0 %3328
        %v3330 = vadd.f32 %v3089, %v3091
        %3331 = vadd.xlane.f32.xlu0 %v3330
        %v3332 = vpop.xlane.xlu0 %3331
        %v3333 = vadd.f32 %v3093, %v3095
        %3334 = vadd.xlane.f32.xlu0 %v3333
        %v3335 = vpop.xlane.xlu0 %3334
        %v3336 = vadd.f32 %v3097, %v3099
        %3337 = vadd.xlane.f32.xlu0 %v3336
        %v3338 = vpop.xlane.xlu0 %3337
        %v3339 = vadd.f32 %v3101, %v3103
        %3340 = vadd.xlane.f32.xlu0 %v3339
        %v3341 = vpop.xlane.xlu0 %3340
        %v3342 = vadd.f32 %v3105, %v3107
        %3343 = vadd.xlane.f32.xlu0 %v3342
        %v3344 = vpop.xlane.xlu0 %3343
        %v3345 = vadd.f32 %v3109, %v3111
        %3346 = vadd.xlane.f32.xlu0 %v3345
        %v3347 = vpop.xlane.xlu0 %3346
        %v3348 = vadd.f32 %v3113, %v3115
        %3349 = vadd.xlane.f32.xlu0 %v3348
        %v3350 = vpop.xlane.xlu0 %3349
        %v3351 = vadd.f32 %v3117, %v3119
        %3352 = vadd.xlane.f32.xlu0 %v3351
        %v3353 = vpop.xlane.xlu0 %3352
        %v3354 = vadd.f32 %v3121, %v3123
        %3355 = vadd.xlane.f32.xlu0 %v3354
        %v3356 = vpop.xlane.xlu0 %3355
        %v3357 = vadd.f32 %v3125, %v3127
        %3358 = vadd.xlane.f32.xlu0 %v3357
        %v3359 = vpop.xlane.xlu0 %3358
        %v3360 = vadd.f32 %v3129, %v3131
        %3361 = vadd.xlane.f32.xlu0 %v3360
        %v3362 = vpop.xlane.xlu0 %3361
        %v3363 = vadd.f32 %v3133, %v3135
        %3364 = vadd.xlane.f32.xlu0 %v3363
        %v3365 = vpop.xlane.xlu0 %3364
        %v3366 = vadd.f32 %v3137, %v3139
        %3367 = vadd.xlane.f32.xlu0 %v3366
        %v3368 = vpop.xlane.xlu0 %3367
        %v3369 = vadd.f32 %v3141, %v3143
        %3370 = vadd.xlane.f32.xlu0 %v3369
        %v3371 = vpop.xlane.xlu0 %3370
        %v3372 = vadd.f32 %v3145, %v3147
        %3373 = vadd.xlane.f32.xlu0 %v3372
        %v3374 = vpop.xlane.xlu0 %3373
        %v3375 = vadd.f32 %v3149, %v3151
        %3376 = vadd.xlane.f32.xlu0 %v3375
        %v3377 = vpop.xlane.xlu0 %3376
        %v3378 = vadd.f32 %v3153, %v3155
        %3379 = vadd.xlane.f32.xlu0 %v3378
        %v3380 = vpop.xlane.xlu0 %3379
        %v3381 = vadd.f32 %v3157, %v3159
        %3382 = vadd.xlane.f32.xlu0 %v3381
        %v3383 = vpop.xlane.xlu0 %3382
        %v3384 = vadd.f32 %v3161, %v3163
        %3385 = vadd.xlane.f32.xlu0 %v3384
        %v3386 = vpop.xlane.xlu0 %3385
        %v3387 = vadd.f32 %v3165, %v3167
        %3388 = vadd.xlane.f32.xlu0 %v3387
        %v3389 = vpop.xlane.xlu0 %3388
        %v3390 = vadd.f32 %v3169, %v3171
        %3391 = vadd.xlane.f32.xlu0 %v3390
        %v3392 = vpop.xlane.xlu0 %3391
        %v3393 = vadd.f32 %v3173, %v3175
        %3394 = vadd.xlane.f32.xlu0 %v3393
        %v3395 = vpop.xlane.xlu0 %3394
        %v3396 = vadd.f32 %v3177, %v3179
        %3397 = vadd.xlane.f32.xlu0 %v3396
        %v3398 = vpop.xlane.xlu0 %3397
        %v3399 = vadd.f32 %v3181, %v3183
        %3400 = vadd.xlane.f32.xlu0 %v3399
        %v3401 = vpop.xlane.xlu0 %3400
        %v3402 = vadd.f32 %v3185, %v3187
        %3403 = vadd.xlane.f32.xlu0 %v3402
        %v3404 = vpop.xlane.xlu0 %3403
        %v3405 = vadd.f32 %v3189, %v3191
        %3406 = vadd.xlane.f32.xlu0 %v3405
        %v3407 = vpop.xlane.xlu0 %3406
        %v3408 = vadd.f32 %v3193, %v3195
        %3409 = vadd.xlane.f32.xlu0 %v3408
        %v3410 = vpop.xlane.xlu0 %3409
        %v3411 = vadd.f32 %v3197, %v3199
        %3412 = vadd.xlane.f32.xlu0 %v3411
        %v3413 = vpop.xlane.xlu0 %3412
        %v3414 = vadd.f32 %v3201, %v3203
        %3415 = vadd.xlane.f32.xlu0 %v3414
        %v3416 = vpop.xlane.xlu0 %3415
        %v3417 = vadd.f32 %v3205, %v3207
        %3418 = vadd.xlane.f32.xlu0 %v3417
        %v3419 = vpop.xlane.xlu0 %3418
        %v3420 = vadd.f32 %v3209, %v3211
        %3421 = vadd.xlane.f32.xlu0 %v3420
        %v3422 = vpop.xlane.xlu0 %3421
        %v3423 = vadd.f32 %v3213, %v3215
        %3424 = vadd.xlane.f32.xlu0 %v3423
        %v3425 = vpop.xlane.xlu0 %3424
        %v3426 = vadd.f32 %v3217, %v3219
        %3427 = vadd.xlane.f32.xlu0 %v3426
        %v3428 = vpop.xlane.xlu0 %3427
        %v3429 = vadd.f32 %v3221, %v3223
        %3430 = vadd.xlane.f32.xlu0 %v3429
        %v3431 = vpop.xlane.xlu0 %3430
        %v3432 = vadd.f32 %v3225, %v3227
        %3433 = vadd.xlane.f32.xlu0 %v3432
        %v3434 = vpop.xlane.xlu0 %3433
        %v3435 = vadd.f32 %v3229, %v3231
        %3436 = vadd.xlane.f32.xlu0 %v3435
        %v3437 = vpop.xlane.xlu0 %3436
        %v3438 = vadd.f32 %v3233, %v3235
        %3439 = vadd.xlane.f32.xlu0 %v3438
        %v3440 = vpop.xlane.xlu0 %3439
        %v3441 = vadd.f32 %v3237, %v3239
        %3442 = vadd.xlane.f32.xlu0 %v3441
        %v3443 = vpop.xlane.xlu0 %3442
        %v3444 = vadd.f32 %v3241, %v3243
        %3445 = vadd.xlane.f32.xlu0 %v3444
        %v3446 = vpop.xlane.xlu0 %3445
        %v3447 = vadd.f32 %v3245, %v3247
        %3448 = vadd.xlane.f32.xlu0 %v3447
        %v3449 = vpop.xlane.xlu0 %3448
        %v3450 = vadd.f32 %v3249, %v3251
        %3451 = vadd.xlane.f32.xlu0 %v3450
        %v3452 = vpop.xlane.xlu0 %3451
        %v3453 = vadd.f32 %v3253, %v3255
        %3454 = vadd.xlane.f32.xlu0 %v3453
        %v3455 = vpop.xlane.xlu0 %3454
        %v3456 = vadd.f32 %v3257, %v3259
        %3457 = vadd.xlane.f32.xlu0 %v3456
        %v3458 = vpop.xlane.xlu0 %3457
        %v3459 = vadd.f32 %v3261, %v3263
        %3460 = vadd.xlane.f32.xlu0 %v3459
        %v3461 = vpop.xlane.xlu0 %3460
        %v3462 = vadd.f32 %v3265, %v3267
        %3463 = vadd.xlane.f32.xlu0 %v3462
        %v3464 = vpop.xlane.xlu0 %3463
        %v3465 = vadd.f32 %v3269, %v3271
        %3466 = vadd.xlane.f32.xlu0 %v3465
        %v3467 = vpop.xlane.xlu0 %3466
        %v3468 = vadd.f32 %v3273, %v3275
        %3469 = vadd.xlane.f32.xlu0 %v3468
        %v3470 = vpop.xlane.xlu0 %3469
        %v3471 = vadd.f32 %v3277, %v3279
        %3472 = vadd.xlane.f32.xlu0 %v3471
        %v3473 = vpop.xlane.xlu0 %3472
        %v3474 = vadd.f32 %v3281, %v3283
        %3475 = vadd.xlane.f32.xlu0 %v3474
        %v3476 = vpop.xlane.xlu0 %3475
        %v3477 = vadd.f32 %v3285, %v3287
        %3478 = vadd.xlane.f32.xlu0 %v3477
        %v3479 = vpop.xlane.xlu0 %3478
        %v3480 = vrcp.pop %v3290
        %v3481 = vrcp.pop %v3293
        %v3482 = vrcp.pop %v3296
        %v3483 = vrcp.pop %v3299
        %v3484 = vrcp.pop %v3302
        %v3485 = vrcp.pop %v3305
        %v3486 = vrcp.pop %v3308
        %v3487 = vrcp.pop %v3311
        %v3488 = vrcp.pop %v3314
        %v3489 = vrcp.pop %v3317
        %v3490 = vrcp.pop %v3320
        %v3491 = vrcp.pop %v3323
        %v3492 = vrcp.pop %v3326
        %v3493 = vrcp.pop %v3329
        %v3494 = vrcp.pop %v3332
        %v3495 = vrcp.pop %v3335
        %v3496 = vrcp.pop %v3338
        %v3497 = vrcp.pop %v3341
        %v3498 = vrcp.pop %v3344
        %v3499 = vrcp.pop %v3347
        %v3500 = vrcp.pop %v3350
        %v3501 = vrcp.pop %v3353
        %v3502 = vrcp.pop %v3356
        %v3503 = vrcp.pop %v3359
        %v3504 = vrcp.pop %v3362
        %v3505 = vrcp.pop %v3365
        %v3506 = vrcp.pop %v3368
        %v3507 = vrcp.pop %v3371
        %v3508 = vrcp.pop %v3374
        %v3509 = vrcp.pop %v3377
        %v3510 = vrcp.pop %v3380
        %v3511 = vrcp.pop %v3383
        %v3512 = vrcp.pop %v3386
        %v3513 = vrcp.pop %v3389
        %v3514 = vrcp.pop %v3392
        %v3515 = vrcp.pop %v3395
        %v3516 = vrcp.pop %v3398
        %v3517 = vrcp.pop %v3401
        %v3518 = vrcp.pop %v3404
        %v3519 = vrcp.pop %v3407
        %v3520 = vrcp.pop %v3410
        %v3521 = vrcp.pop %v3413
        %v3522 = vrcp.pop %v3416
        %v3523 = vrcp.pop %v3419
        %v3524 = vrcp.pop %v3422
        %v3525 = vrcp.pop %v3425
        %v3526 = vrcp.pop %v3428
        %v3527 = vrcp.pop %v3431
        %v3528 = vrcp.pop %v3434
        %v3529 = vrcp.pop %v3437
        %v3530 = vrcp.pop %v3440
        %v3531 = vrcp.pop %v3443
        %v3532 = vrcp.pop %v3446
        %v3533 = vrcp.pop %v3449
        %v3534 = vrcp.pop %v3452
        %v3535 = vrcp.pop %v3455
        %v3536 = vrcp.pop %v3458
        %v3537 = vrcp.pop %v3461
        %v3538 = vrcp.pop %v3464
        %v3539 = vrcp.pop %v3467
        %v3540 = vrcp.pop %v3470
        %v3541 = vrcp.pop %v3473
        %v3542 = vrcp.pop %v3476
        %v3543 = vrcp.pop %v3479
        %v3544 = vmul.f32 %v3033, %v3480
        %v3545 = vmul.f32 %v3035, %v3480
        %v3546 = vmul.f32 %v3037, %v3481
        %v3547 = vmul.f32 %v3039, %v3481
        %v3548 = vmul.f32 %v3041, %v3482
        %v3549 = vmul.f32 %v3043, %v3482
        %v3550 = vmul.f32 %v3045, %v3483
        %v3551 = vmul.f32 %v3047, %v3483
        %v3552 = vmul.f32 %v3049, %v3484
        %v3553 = vmul.f32 %v3051, %v3484
        %v3554 = vmul.f32 %v3053, %v3485
        %v3555 = vmul.f32 %v3055, %v3485
        %v3556 = vmul.f32 %v3057, %v3486
        %v3557 = vmul.f32 %v3059, %v3486
        %v3558 = vmul.f32 %v3061, %v3487
        %v3559 = vmul.f32 %v3063, %v3487
        %v3560 = vmul.f32 %v3065, %v3488
        %v3561 = vmul.f32 %v3067, %v3488
        %v3562 = vmul.f32 %v3069, %v3489
        %v3563 = vmul.f32 %v3071, %v3489
        %v3564 = vmul.f32 %v3073, %v3490
        %v3565 = vmul.f32 %v3075, %v3490
        %v3566 = vmul.f32 %v3077, %v3491
        %v3567 = vmul.f32 %v3079, %v3491
        %v3568 = vmul.f32 %v3081, %v3492
        %v3569 = vmul.f32 %v3083, %v3492
        %v3570 = vmul.f32 %v3085, %v3493
        %v3571 = vmul.f32 %v3087, %v3493
        %v3572 = vmul.f32 %v3089, %v3494
        %v3573 = vmul.f32 %v3091, %v3494
        %v3574 = vmul.f32 %v3093, %v3495
        %v3575 = vmul.f32 %v3095, %v3495
        %v3576 = vmul.f32 %v3097, %v3496
        %v3577 = vmul.f32 %v3099, %v3496
        %v3578 = vmul.f32 %v3101, %v3497
        %v3579 = vmul.f32 %v3103, %v3497
        %v3580 = vmul.f32 %v3105, %v3498
        %v3581 = vmul.f32 %v3107, %v3498
        %v3582 = vmul.f32 %v3109, %v3499
        %v3583 = vmul.f32 %v3111, %v3499
        %v3584 = vmul.f32 %v3113, %v3500
        %v3585 = vmul.f32 %v3115, %v3500
        %v3586 = vmul.f32 %v3117, %v3501
        %v3587 = vmul.f32 %v3119, %v3501
        %v3588 = vmul.f32 %v3121, %v3502
        %v3589 = vmul.f32 %v3123, %v3502
        %v3590 = vmul.f32 %v3125, %v3503
        %v3591 = vmul.f32 %v3127, %v3503
        %v3592 = vmul.f32 %v3129, %v3504
        %v3593 = vmul.f32 %v3131, %v3504
        %v3594 = vmul.f32 %v3133, %v3505
        %v3595 = vmul.f32 %v3135, %v3505
        %v3596 = vmul.f32 %v3137, %v3506
        %v3597 = vmul.f32 %v3139, %v3506
        %v3598 = vmul.f32 %v3141, %v3507
        %v3599 = vmul.f32 %v3143, %v3507
        %v3600 = vmul.f32 %v3145, %v3508
        %v3601 = vmul.f32 %v3147, %v3508
        %v3602 = vmul.f32 %v3149, %v3509
        %v3603 = vmul.f32 %v3151, %v3509
        %v3604 = vmul.f32 %v3153, %v3510
        %v3605 = vmul.f32 %v3155, %v3510
        %v3606 = vmul.f32 %v3157, %v3511
        %v3607 = vmul.f32 %v3159, %v3511
        %v3608 = vmul.f32 %v3161, %v3512
        %v3609 = vmul.f32 %v3163, %v3512
        %v3610 = vmul.f32 %v3165, %v3513
        %v3611 = vmul.f32 %v3167, %v3513
        %v3612 = vmul.f32 %v3169, %v3514
        %v3613 = vmul.f32 %v3171, %v3514
        %v3614 = vmul.f32 %v3173, %v3515
        %v3615 = vmul.f32 %v3175, %v3515
        %v3616 = vmul.f32 %v3177, %v3516
        %v3617 = vmul.f32 %v3179, %v3516
        %v3618 = vmul.f32 %v3181, %v3517
        %v3619 = vmul.f32 %v3183, %v3517
        %v3620 = vmul.f32 %v3185, %v3518
        %v3621 = vmul.f32 %v3187, %v3518
        %v3622 = vmul.f32 %v3189, %v3519
        %v3623 = vmul.f32 %v3191, %v3519
        %v3624 = vmul.f32 %v3193, %v3520
        %v3625 = vmul.f32 %v3195, %v3520
        %v3626 = vmul.f32 %v3197, %v3521
        %v3627 = vmul.f32 %v3199, %v3521
        %v3628 = vmul.f32 %v3201, %v3522
        %v3629 = vmul.f32 %v3203, %v3522
        %v3630 = vmul.f32 %v3205, %v3523
        %v3631 = vmul.f32 %v3207, %v3523
        %v3632 = vmul.f32 %v3209, %v3524
        %v3633 = vmul.f32 %v3211, %v3524
        %v3634 = vmul.f32 %v3213, %v3525
        %v3635 = vmul.f32 %v3215, %v3525
        %v3636 = vmul.f32 %v3217, %v3526
        %v3637 = vmul.f32 %v3219, %v3526
        %v3638 = vmul.f32 %v3221, %v3527
        %v3639 = vmul.f32 %v3223, %v3527
        %v3640 = vmul.f32 %v3225, %v3528
        %v3641 = vmul.f32 %v3227, %v3528
        %v3642 = vmul.f32 %v3229, %v3529
        %v3643 = vmul.f32 %v3231, %v3529
        %v3644 = vmul.f32 %v3233, %v3530
        %v3645 = vmul.f32 %v3235, %v3530
        %v3646 = vmul.f32 %v3237, %v3531
        %v3647 = vmul.f32 %v3239, %v3531
        %v3648 = vmul.f32 %v3241, %v3532
        %v3649 = vmul.f32 %v3243, %v3532
        %v3650 = vmul.f32 %v3245, %v3533
        %v3651 = vmul.f32 %v3247, %v3533
        %v3652 = vmul.f32 %v3249, %v3534
        %v3653 = vmul.f32 %v3251, %v3534
        %v3654 = vmul.f32 %v3253, %v3535
        %v3655 = vmul.f32 %v3255, %v3535
        %v3656 = vmul.f32 %v3257, %v3536
        %v3657 = vmul.f32 %v3259, %v3536
        %v3658 = vmul.f32 %v3261, %v3537
        %v3659 = vmul.f32 %v3263, %v3537
        %v3660 = vmul.f32 %v3265, %v3538
        %v3661 = vmul.f32 %v3267, %v3538
        %v3662 = vmul.f32 %v3269, %v3539
        %v3663 = vmul.f32 %v3271, %v3539
        %v3664 = vmul.f32 %v3273, %v3540
        %v3665 = vmul.f32 %v3275, %v3540
        %v3666 = vmul.f32 %v3277, %v3541
        %v3667 = vmul.f32 %v3279, %v3541
        %v3668 = vmul.f32 %v3281, %v3542
        %v3669 = vmul.f32 %v3283, %v3542
        %v3670 = vmul.f32 %v3285, %v3543
        %v3671 = vmul.f32 %v3287, %v3543
        %v3672 = vpack.c.bf16 %v3546, %v3544
        %v3673 = vpack.c.bf16 %v3547, %v3545
        %v3674 = vpack.c.bf16 %v3550, %v3548
        %v3675 = vpack.c.bf16 %v3551, %v3549
        %v3676 = vpack.c.bf16 %v3554, %v3552
        %v3677 = vpack.c.bf16 %v3555, %v3553
        %v3678 = vpack.c.bf16 %v3558, %v3556
        %v3679 = vpack.c.bf16 %v3559, %v3557
        %v3680 = vpack.c.bf16 %v3562, %v3560
        %v3681 = vpack.c.bf16 %v3563, %v3561
        %v3682 = vpack.c.bf16 %v3566, %v3564
        %v3683 = vpack.c.bf16 %v3567, %v3565
        %v3684 = vpack.c.bf16 %v3570, %v3568
        %v3685 = vpack.c.bf16 %v3571, %v3569
        %v3686 = vpack.c.bf16 %v3574, %v3572
        %v3687 = vpack.c.bf16 %v3575, %v3573
        %v3688 = vpack.c.bf16 %v3578, %v3576
        %v3689 = vpack.c.bf16 %v3579, %v3577
        %v3690 = vpack.c.bf16 %v3582, %v3580
        %v3691 = vpack.c.bf16 %v3583, %v3581
        %v3692 = vpack.c.bf16 %v3586, %v3584
        %v3693 = vpack.c.bf16 %v3587, %v3585
        %v3694 = vpack.c.bf16 %v3590, %v3588
        %v3695 = vpack.c.bf16 %v3591, %v3589
        %v3696 = vpack.c.bf16 %v3594, %v3592
        %v3697 = vpack.c.bf16 %v3595, %v3593
        %v3698 = vpack.c.bf16 %v3598, %v3596
        %v3699 = vpack.c.bf16 %v3599, %v3597
        %v3700 = vpack.c.bf16 %v3602, %v3600
        %v3701 = vpack.c.bf16 %v3603, %v3601
        %v3702 = vpack.c.bf16 %v3606, %v3604
        %v3703 = vpack.c.bf16 %v3607, %v3605
        %v3704 = vpack.c.bf16 %v3610, %v3608
        %v3705 = vpack.c.bf16 %v3611, %v3609
        %v3706 = vpack.c.bf16 %v3614, %v3612
        %v3707 = vpack.c.bf16 %v3615, %v3613
        %v3708 = vpack.c.bf16 %v3618, %v3616
        %v3709 = vpack.c.bf16 %v3619, %v3617
        %v3710 = vpack.c.bf16 %v3622, %v3620
        %v3711 = vpack.c.bf16 %v3623, %v3621
        %v3712 = vpack.c.bf16 %v3626, %v3624
        %v3713 = vpack.c.bf16 %v3627, %v3625
        %v3714 = vpack.c.bf16 %v3630, %v3628
        %v3715 = vpack.c.bf16 %v3631, %v3629
        %v3716 = vpack.c.bf16 %v3634, %v3632
        %v3717 = vpack.c.bf16 %v3635, %v3633
        %v3718 = vpack.c.bf16 %v3638, %v3636
        %v3719 = vpack.c.bf16 %v3639, %v3637
        %v3720 = vpack.c.bf16 %v3642, %v3640
        %v3721 = vpack.c.bf16 %v3643, %v3641
        %v3722 = vpack.c.bf16 %v3646, %v3644
        %v3723 = vpack.c.bf16 %v3647, %v3645
        %v3724 = vpack.c.bf16 %v3650, %v3648
        %v3725 = vpack.c.bf16 %v3651, %v3649
        %v3726 = vpack.c.bf16 %v3654, %v3652
        %v3727 = vpack.c.bf16 %v3655, %v3653
        %v3728 = vpack.c.bf16 %v3658, %v3656
        %v3729 = vpack.c.bf16 %v3659, %v3657
        %v3730 = vpack.c.bf16 %v3662, %v3660
        %v3731 = vpack.c.bf16 %v3663, %v3661
        %v3732 = vpack.c.bf16 %v3666, %v3664
        %v3733 = vpack.c.bf16 %v3667, %v3665
        %v3734 = vpack.c.bf16 %v3670, %v3668
        %v3735 = vpack.c.bf16 %v3671, %v3669
        %v3736 = vld [vmem:[#allocation4] sm:$0xff]
        %v3737 = vld [vmem:[#allocation4 + $0x8] sm:$0xff]
        %v3738 = vld [vmem:[#allocation4 + $0x10] sm:$0xff]
        %v3739 = vld [vmem:[#allocation4 + $0x18] sm:$0xff]
        %v3740 = vld [vmem:[#allocation4 + $0x20] sm:$0xff]
        %v3741 = vld [vmem:[#allocation4 + $0x28] sm:$0xff]
        %v3742 = vld [vmem:[#allocation4 + $0x30] sm:$0xff]
        %v3743 = vld [vmem:[#allocation4 + $0x38] sm:$0xff]
        %v3744 = vld [vmem:[#allocation4 + $0x40] sm:$0xff]
        %v3745 = vld [vmem:[#allocation4 + $0x48] sm:$0xff]
        %v3746 = vld [vmem:[#allocation4 + $0x50] sm:$0xff]
        %v3747 = vld [vmem:[#allocation4 + $0x58] sm:$0xff]
        %v3748 = vld [vmem:[#allocation4 + $0x60] sm:$0xff]
        %v3749 = vld [vmem:[#allocation4 + $0x68] sm:$0xff]
        %v3750 = vld [vmem:[#allocation4 + $0x70] sm:$0xff]
        %v3751 = vld [vmem:[#allocation4 + $0x78] sm:$0xff]
        %v3752 = vld [vmem:[#allocation4 + $0x80] sm:$0xff]
        %v3753 = vld [vmem:[#allocation4 + $0x88] sm:$0xff]
        %v3754 = vld [vmem:[#allocation4 + $0x90] sm:$0xff]
        %v3755 = vld [vmem:[#allocation4 + $0x98] sm:$0xff]
        %v3756 = vld [vmem:[#allocation4 + $0xa0] sm:$0xff]
        %v3757 = vld [vmem:[#allocation4 + $0xa8] sm:$0xff]
        %v3758 = vld [vmem:[#allocation4 + $0xb0] sm:$0xff]
        %v3759 = vld [vmem:[#allocation4 + $0xb8] sm:$0xff]
        %v3760 = vld [vmem:[#allocation4 + $0xc0] sm:$0xff]
        %v3761 = vld [vmem:[#allocation4 + $0xc8] sm:$0xff]
        %v3762 = vld [vmem:[#allocation4 + $0xd0] sm:$0xff]
        %v3763 = vld [vmem:[#allocation4 + $0xd8] sm:$0xff]
        %v3764 = vld [vmem:[#allocation4 + $0xe0] sm:$0xff]
        %v3765 = vld [vmem:[#allocation4 + $0xe8] sm:$0xff]
        %v3766 = vld [vmem:[#allocation4 + $0xf0] sm:$0xff]
        %v3767 = vld [vmem:[#allocation4 + $0xf8] sm:$0xff]
        %v3768 = vld [vmem:[#allocation4 + $0x100] sm:$0xff]
        %v3769 = vld [vmem:[#allocation4 + $0x108] sm:$0xff]
        %v3770 = vld [vmem:[#allocation4 + $0x110] sm:$0xff]
        %v3771 = vld [vmem:[#allocation4 + $0x118] sm:$0xff]
        %v3772 = vld [vmem:[#allocation4 + $0x120] sm:$0xff]
        %v3773 = vld [vmem:[#allocation4 + $0x128] sm:$0xff]
        %v3774 = vld [vmem:[#allocation4 + $0x130] sm:$0xff]
        %v3775 = vld [vmem:[#allocation4 + $0x138] sm:$0xff]
        %v3776 = vld [vmem:[#allocation4 + $0x140] sm:$0xff]
        %v3777 = vld [vmem:[#allocation4 + $0x148] sm:$0xff]
        %v3778 = vld [vmem:[#allocation4 + $0x150] sm:$0xff]
        %v3779 = vld [vmem:[#allocation4 + $0x158] sm:$0xff]
        %v3780 = vld [vmem:[#allocation4 + $0x160] sm:$0xff]
        %v3781 = vld [vmem:[#allocation4 + $0x168] sm:$0xff]
        %v3782 = vld [vmem:[#allocation4 + $0x170] sm:$0xff]
        %v3783 = vld [vmem:[#allocation4 + $0x178] sm:$0xff]
        %v3784 = vld [vmem:[#allocation4 + $0x180] sm:$0xff]
        %v3785 = vld [vmem:[#allocation4 + $0x188] sm:$0xff]
        %v3786 = vld [vmem:[#allocation4 + $0x190] sm:$0xff]
        %v3787 = vld [vmem:[#allocation4 + $0x198] sm:$0xff]
        %v3788 = vld [vmem:[#allocation4 + $0x1a0] sm:$0xff]
        %v3789 = vld [vmem:[#allocation4 + $0x1a8] sm:$0xff]
        %v3790 = vld [vmem:[#allocation4 + $0x1b0] sm:$0xff]
        %v3791 = vld [vmem:[#allocation4 + $0x1b8] sm:$0xff]
        %v3792 = vld [vmem:[#allocation4 + $0x1c0] sm:$0xff]
        %v3793 = vld [vmem:[#allocation4 + $0x1c8] sm:$0xff]
        %v3794 = vld [vmem:[#allocation4 + $0x1d0] sm:$0xff]
        %v3795 = vld [vmem:[#allocation4 + $0x1d8] sm:$0xff]
        %v3796 = vld [vmem:[#allocation4 + $0x1e0] sm:$0xff]
        %v3797 = vld [vmem:[#allocation4 + $0x1e8] sm:$0xff]
        %v3798 = vld [vmem:[#allocation4 + $0x1f0] sm:$0xff]
        %v3799 = vld [vmem:[#allocation4 + $0x1f8] sm:$0xff]
        %3800 = vmatprep.subr.bf16.mxu0 0
        %3801 = vmatpush1.bf16.msra.mxu0 %v3736
        %3802 = vmatprep.subr.bf16.mxu0 0
        %3803 = vmatpush1.bf16.msra.mxu0 %v3737
        %3804 = vmatprep.subr.bf16.mxu0 0
        %3805 = vmatpush1.bf16.msra.mxu0 %v3738
        %3806 = vmatprep.subr.bf16.mxu0 0
        %3807 = vmatpush1.bf16.msra.mxu0 %v3739
        %3808 = vmatprep.subr.bf16.mxu0 0
        %3809 = vmatpush1.bf16.msra.mxu0 %v3740
        %3810 = vmatprep.subr.bf16.mxu0 0
        %3811 = vmatpush1.bf16.msra.mxu0 %v3741
        %3812 = vmatprep.subr.bf16.mxu0 0
        %3813 = vmatpush1.bf16.msra.mxu0 %v3742
        %3814 = vmatprep.subr.bf16.mxu0 0
        %3815 = vmatpush1.bf16.msra.mxu0 %v3743
        %3816 = vmatprep.subr.bf16.mxu0 0
        %3817 = vmatpush1.bf16.msra.mxu0 %v3744
        %3818 = vmatprep.subr.bf16.mxu0 0
        %3819 = vmatpush1.bf16.msra.mxu0 %v3745
        %3820 = vmatprep.subr.bf16.mxu0 0
        %3821 = vmatpush1.bf16.msra.mxu0 %v3746
        %3822 = vmatprep.subr.bf16.mxu0 0
        %3823 = vmatpush1.bf16.msra.mxu0 %v3747
        %3824 = vmatprep.subr.bf16.mxu0 0
        %3825 = vmatpush1.bf16.msra.mxu0 %v3748
        %3826 = vmatprep.subr.bf16.mxu0 0
        %3827 = vmatpush1.bf16.msra.mxu0 %v3749
        %3828 = vmatprep.subr.bf16.mxu0 0
        %3829 = vmatpush1.bf16.msra.mxu0 %v3750
        %3830 = vmatprep.subr.bf16.mxu0 0
        %3831 = vmatpush1.bf16.msra.mxu0 %v3751
        %3832 = vmatprep.mubr.bf16.mxu0 %v3673
        %3833 = vmatmul.mubr.bf16.gmra.mrb[0].mxu0 %v3672
        %v3834 = vpop.f32.mrb[0].mxu0
        %v3835 = vadd.f32 0.0, %v3834
        %v3836 = vpop.f32.mrb[0].mxu0
        %v3837 = vpop.f32.mrb[0].mxu0
        %v3838 = vadd.f32 0.0, %v3837
        %v3839 = vpop.f32.mrb[0].mxu0
        %3840 = vmatprep.mubr.bf16.mxu0 %v3675
        %3841 = vmatmul.mubr.bf16.gmra.mrb[0].mxu0 %v3674
        %v3842 = vpop.f32.mrb[0].mxu0
        %v3843 = vadd.f32 0.0, %v3842
        %v3844 = vpop.f32.mrb[0].mxu0
        %v3845 = vpop.f32.mrb[0].mxu0
        %v3846 = vadd.f32 0.0, %v3845
        %v3847 = vpop.f32.mrb[0].mxu0
        %3848 = vmatprep.mubr.bf16.mxu0 %v3677
        %3849 = vmatmul.mubr.bf16.gmra.mrb[0].mxu0 %v3676
        %v3850 = vpop.f32.mrb[0].mxu0
        %v3851 = vadd.f32 0.0, %v3850
        %v3852 = vpop.f32.mrb[0].mxu0
        %v3853 = vpop.f32.mrb[0].mxu0
        %v3854 = vadd.f32 0.0, %v3853
        %v3855 = vpop.f32.mrb[0].mxu0
        %3856 = vmatprep.mubr.bf16.mxu0 %v3679
        %3857 = vmatmul.mubr.bf16.gmra.mrb[0].mxu0 %v3678
        %v3858 = vpop.f32.mrb[0].mxu0
        %v3859 = vadd.f32 0.0, %v3858
        %v3860 = vpop.f32.mrb[0].mxu0
        %v3861 = vpop.f32.mrb[0].mxu0
        %v3862 = vadd.f32 0.0, %v3861
        %v3863 = vpop.f32.mrb[0].mxu0
        %3864 = vmatprep.mubr.bf16.mxu0 %v3681
        %3865 = vmatmul.mubr.bf16.gmra.mrb[0].mxu0 %v3680
        %v3866 = vpop.f32.mrb[0].mxu0
        %v3867 = vadd.f32 0.0, %v3866
        %v3868 = vpop.f32.mrb[0].mxu0
        %v3869 = vpop.f32.mrb[0].mxu0
        %v3870 = vadd.f32 0.0, %v3869
        %v3871 = vpop.f32.mrb[0].mxu0
        %3872 = vmatprep.mubr.bf16.mxu0 %v3683
        %3873 = vmatmul.mubr.bf16.gmra.mrb[0].mxu0 %v3682
        %v3874 = vpop.f32.mrb[0].mxu0
        %v3875 = vadd.f32 0.0, %v3874
        %v3876 = vpop.f32.mrb[0].mxu0
        %v3877 = vpop.f32.mrb[0].mxu0
        %v3878 = vadd.f32 0.0, %v3877
        %v3879 = vpop.f32.mrb[0].mxu0
        %3880 = vmatprep.mubr.bf16.mxu0 %v3685
        %3881 = vmatmul.mubr.bf16.gmra.mrb[0].mxu0 %v3684
        %v3882 = vpop.f32.mrb[0].mxu0
        %v3883 = vadd.f32 0.0, %v3882
        %v3884 = vpop.f32.mrb[0].mxu0
        %v3885 = vpop.f32.mrb[0].mxu0
        %v3886 = vadd.f32 0.0, %v3885
        %v3887 = vpop.f32.mrb[0].mxu0
        %3888 = vmatprep.mubr.bf16.mxu0 %v3687
        %3889 = vmatmul.mubr.bf16.gmra.mrb[0].mxu0 %v3686
        %v3890 = vpop.f32.mrb[0].mxu0
        %v3891 = vadd.f32 0.0, %v3890
        %v3892 = vpop.f32.mrb[0].mxu0
        %v3893 = vpop.f32.mrb[0].mxu0
        %v3894 = vadd.f32 0.0, %v3893
        %v3895 = vpop.f32.mrb[0].mxu0
        %3896 = vdwg.mxu0
        %3897 = vmatprep.subr.bf16.mxu0 0
        %3898 = vmatpush1.bf16.msra.mxu0 %v3752
        %3899 = vmatprep.subr.bf16.mxu0 0
        %3900 = vmatpush1.bf16.msra.mxu0 %v3753
        %3901 = vmatprep.subr.bf16.mxu0 0
        %3902 = vmatpush1.bf16.msra.mxu0 %v3754
        %3903 = vmatprep.subr.bf16.mxu0 0
        %3904 = vmatpush1.bf16.msra.mxu0 %v3755
        %3905 = vmatprep.subr.bf16.mxu0 0
        %3906 = vmatpush1.bf16.msra.mxu0 %v3756
        %3907 = vmatprep.subr.bf16.mxu0 0
        %3908 = vmatpush1.bf16.msra.mxu0 %v3757
        %3909 = vmatprep.subr.bf16.mxu0 0
        %3910 = vmatpush1.bf16.msra.mxu0 %v3758
        %3911 = vmatprep.subr.bf16.mxu0 0
        %3912 = vmatpush1.bf16.msra.mxu0 %v3759
        %3913 = vmatprep.subr.bf16.mxu0 0
        %3914 = vmatpush1.bf16.msra.mxu0 %v3760
        %3915 = vmatprep.subr.bf16.mxu0 0
        %3916 = vmatpush1.bf16.msra.mxu0 %v3761
        %3917 = vmatprep.subr.bf16.mxu0 0
        %3918 = vmatpush1.bf16.msra.mxu0 %v3762
        %3919 = vmatprep.subr.bf16.mxu0 0
        %3920 = vmatpush1.bf16.msra.mxu0 %v3763
        %3921 = vmatprep.subr.bf16.mxu0 0
        %3922 = vmatpush1.bf16.msra.mxu0 %v3764
        %3923 = vmatprep.subr.bf16.mxu0 0
        %3924 = vmatpush1.bf16.msra.mxu0 %v3765
        %3925 = vmatprep.subr.bf16.mxu0 0
        %3926 = vmatpush1.bf16.msra.mxu0 %v3766
        %3927 = vmatprep.subr.bf16.mxu0 0
        %3928 = vmatpush1.bf16.msra.mxu0 %v3767
        %3929 = vmatprep.mubr.bf16.mxu0 %v3689
        %3930 = vmatmul.mubr.bf16.gmra.mrb[0].mxu0 %v3688
        %v3931 = vpop.f32.mrb[0].mxu0
        %v3932 = vadd.f32 0.0, %v3931
        %v3933 = vpop.f32.mrb[0].mxu0
        %v3934 = vpop.f32.mrb[0].mxu0
        %v3935 = vadd.f32 0.0, %v3934
        %v3936 = vpop.f32.mrb[0].mxu0
        %3937 = vmatprep.mubr.bf16.mxu0 %v3691
        %3938 = vmatmul.mubr.bf16.gmra.mrb[0].mxu0 %v3690
        %v3939 = vpop.f32.mrb[0].mxu0
        %v3940 = vadd.f32 0.0, %v3939
        %v3941 = vpop.f32.mrb[0].mxu0
        %v3942 = vpop.f32.mrb[0].mxu0
        %v3943 = vadd.f32 0.0, %v3942
        %v3944 = vpop.f32.mrb[0].mxu0
        %3945 = vmatprep.mubr.bf16.mxu0 %v3693
        %3946 = vmatmul.mubr.bf16.gmra.mrb[0].mxu0 %v3692
        %v3947 = vpop.f32.mrb[0].mxu0
        %v3948 = vadd.f32 0.0, %v3947
        %v3949 = vpop.f32.mrb[0].mxu0
        %v3950 = vpop.f32.mrb[0].mxu0
        %v3951 = vadd.f32 0.0, %v3950
        %v3952 = vpop.f32.mrb[0].mxu0
        %3953 = vmatprep.mubr.bf16.mxu0 %v3695
        %3954 = vmatmul.mubr.bf16.gmra.mrb[0].mxu0 %v3694
        %v3955 = vpop.f32.mrb[0].mxu0
        %v3956 = vadd.f32 0.0, %v3955
        %v3957 = vpop.f32.mrb[0].mxu0
        %v3958 = vpop.f32.mrb[0].mxu0
        %v3959 = vadd.f32 0.0, %v3958
        %v3960 = vpop.f32.mrb[0].mxu0
        %3961 = vmatprep.mubr.bf16.mxu0 %v3697
        %3962 = vmatmul.mubr.bf16.gmra.mrb[0].mxu0 %v3696
        %v3963 = vpop.f32.mrb[0].mxu0
        %v3964 = vadd.f32 0.0, %v3963
        %v3965 = vpop.f32.mrb[0].mxu0
        %v3966 = vpop.f32.mrb[0].mxu0
        %v3967 = vadd.f32 0.0, %v3966
        %v3968 = vpop.f32.mrb[0].mxu0
        %3969 = vmatprep.mubr.bf16.mxu0 %v3699
        %3970 = vmatmul.mubr.bf16.gmra.mrb[0].mxu0 %v3698
        %v3971 = vpop.f32.mrb[0].mxu0
        %v3972 = vadd.f32 0.0, %v3971
        %v3973 = vpop.f32.mrb[0].mxu0
        %v3974 = vpop.f32.mrb[0].mxu0
        %v3975 = vadd.f32 0.0, %v3974
        %v3976 = vpop.f32.mrb[0].mxu0
        %3977 = vmatprep.mubr.bf16.mxu0 %v3701
        %3978 = vmatmul.mubr.bf16.gmra.mrb[0].mxu0 %v3700
        %v3979 = vpop.f32.mrb[0].mxu0
        %v3980 = vadd.f32 0.0, %v3979
        %v3981 = vpop.f32.mrb[0].mxu0
        %v3982 = vpop.f32.mrb[0].mxu0
        %v3983 = vadd.f32 0.0, %v3982
        %v3984 = vpop.f32.mrb[0].mxu0
        %3985 = vmatprep.mubr.bf16.mxu0 %v3703
        %3986 = vmatmul.mubr.bf16.gmra.mrb[0].mxu0 %v3702
        %v3987 = vpop.f32.mrb[0].mxu0
        %v3988 = vadd.f32 0.0, %v3987
        %v3989 = vpop.f32.mrb[0].mxu0
        %v3990 = vpop.f32.mrb[0].mxu0
        %v3991 = vadd.f32 0.0, %v3990
        %v3992 = vpop.f32.mrb[0].mxu0
        %3993 = vdwg.mxu0
        %3994 = vmatprep.subr.bf16.mxu0 0
        %3995 = vmatpush1.bf16.msra.mxu0 %v3768
        %3996 = vmatprep.subr.bf16.mxu0 0
        %3997 = vmatpush1.bf16.msra.mxu0 %v3769
        %3998 = vmatprep.subr.bf16.mxu0 0
        %3999 = vmatpush1.bf16.msra.mxu0 %v3770
        %4000 = vmatprep.subr.bf16.mxu0 0
        %4001 = vmatpush1.bf16.msra.mxu0 %v3771
        %4002 = vmatprep.subr.bf16.mxu0 0
        %4003 = vmatpush1.bf16.msra.mxu0 %v3772
        %4004 = vmatprep.subr.bf16.mxu0 0
        %4005 = vmatpush1.bf16.msra.mxu0 %v3773
        %4006 = vmatprep.subr.bf16.mxu0 0
        %4007 = vmatpush1.bf16.msra.mxu0 %v3774
        %4008 = vmatprep.subr.bf16.mxu0 0
        %4009 = vmatpush1.bf16.msra.mxu0 %v3775
        %4010 = vmatprep.subr.bf16.mxu0 0
        %4011 = vmatpush1.bf16.msra.mxu0 %v3776
        %4012 = vmatprep.subr.bf16.mxu0 0
        %4013 = vmatpush1.bf16.msra.mxu0 %v3777
        %4014 = vmatprep.subr.bf16.mxu0 0
        %4015 = vmatpush1.bf16.msra.mxu0 %v3778
        %4016 = vmatprep.subr.bf16.mxu0 0
        %4017 = vmatpush1.bf16.msra.mxu0 %v3779
        %4018 = vmatprep.subr.bf16.mxu0 0
        %4019 = vmatpush1.bf16.msra.mxu0 %v3780
        %4020 = vmatprep.subr.bf16.mxu0 0
        %4021 = vmatpush1.bf16.msra.mxu0 %v3781
        %4022 = vmatprep.subr.bf16.mxu0 0
        %4023 = vmatpush1.bf16.msra.mxu0 %v3782
        %4024 = vmatprep.subr.bf16.mxu0 0
        %4025 = vmatpush1.bf16.msra.mxu0 %v3783
        %4026 = vmatprep.mubr.bf16.mxu0 %v3705
        %4027 = vmatmul.mubr.bf16.gmra.mrb[0].mxu0 %v3704
        %v4028 = vpop.f32.mrb[0].mxu0
        %v4029 = vadd.f32 0.0, %v4028
        %v4030 = vpop.f32.mrb[0].mxu0
        %v4031 = vpop.f32.mrb[0].mxu0
        %v4032 = vadd.f32 0.0, %v4031
        %v4033 = vpop.f32.mrb[0].mxu0
        %4034 = vmatprep.mubr.bf16.mxu0 %v3707
        %4035 = vmatmul.mubr.bf16.gmra.mrb[0].mxu0 %v3706
        %v4036 = vpop.f32.mrb[0].mxu0
        %v4037 = vadd.f32 0.0, %v4036
        %v4038 = vpop.f32.mrb[0].mxu0
        %v4039 = vpop.f32.mrb[0].mxu0
        %v4040 = vadd.f32 0.0, %v4039
        %v4041 = vpop.f32.mrb[0].mxu0
        %4042 = vmatprep.mubr.bf16.mxu0 %v3709
        %4043 = vmatmul.mubr.bf16.gmra.mrb[0].mxu0 %v3708
        %v4044 = vpop.f32.mrb[0].mxu0
        %v4045 = vadd.f32 0.0, %v4044
        %v4046 = vpop.f32.mrb[0].mxu0
        %v4047 = vpop.f32.mrb[0].mxu0
        %v4048 = vadd.f32 0.0, %v4047
        %v4049 = vpop.f32.mrb[0].mxu0
        %4050 = vmatprep.mubr.bf16.mxu0 %v3711
        %4051 = vmatmul.mubr.bf16.gmra.mrb[0].mxu0 %v3710
        %v4052 = vpop.f32.mrb[0].mxu0
        %v4053 = vadd.f32 0.0, %v4052
        %v4054 = vpop.f32.mrb[0].mxu0
        %v4055 = vpop.f32.mrb[0].mxu0
        %v4056 = vadd.f32 0.0, %v4055
        %v4057 = vpop.f32.mrb[0].mxu0
        %4058 = vmatprep.mubr.bf16.mxu0 %v3713
        %4059 = vmatmul.mubr.bf16.gmra.mrb[0].mxu0 %v3712
        %v4060 = vpop.f32.mrb[0].mxu0
        %v4061 = vadd.f32 0.0, %v4060
        %v4062 = vpop.f32.mrb[0].mxu0
        %v4063 = vpop.f32.mrb[0].mxu0
        %v4064 = vadd.f32 0.0, %v4063
        %v4065 = vpop.f32.mrb[0].mxu0
        %4066 = vmatprep.mubr.bf16.mxu0 %v3715
        %4067 = vmatmul.mubr.bf16.gmra.mrb[0].mxu0 %v3714
        %v4068 = vpop.f32.mrb[0].mxu0
        %v4069 = vadd.f32 0.0, %v4068
        %v4070 = vpop.f32.mrb[0].mxu0
        %v4071 = vpop.f32.mrb[0].mxu0
        %v4072 = vadd.f32 0.0, %v4071
        %v4073 = vpop.f32.mrb[0].mxu0
        %4074 = vmatprep.mubr.bf16.mxu0 %v3717
        %4075 = vmatmul.mubr.bf16.gmra.mrb[0].mxu0 %v3716
        %v4076 = vpop.f32.mrb[0].mxu0
        %v4077 = vadd.f32 0.0, %v4076
        %v4078 = vpop.f32.mrb[0].mxu0
        %v4079 = vpop.f32.mrb[0].mxu0
        %v4080 = vadd.f32 0.0, %v4079
        %v4081 = vpop.f32.mrb[0].mxu0
        %4082 = vmatprep.mubr.bf16.mxu0 %v3719
        %4083 = vmatmul.mubr.bf16.gmra.mrb[0].mxu0 %v3718
        %v4084 = vpop.f32.mrb[0].mxu0
        %v4085 = vadd.f32 0.0, %v4084
        %v4086 = vpop.f32.mrb[0].mxu0
        %v4087 = vpop.f32.mrb[0].mxu0
        %v4088 = vadd.f32 0.0, %v4087
        %v4089 = vpop.f32.mrb[0].mxu0
        %4090 = vdwg.mxu0
        %4091 = vmatprep.subr.bf16.mxu0 0
        %4092 = vmatpush1.bf16.msra.mxu0 %v3784
        %4093 = vmatprep.subr.bf16.mxu0 0
        %4094 = vmatpush1.bf16.msra.mxu0 %v3785
        %4095 = vmatprep.subr.bf16.mxu0 0
        %4096 = vmatpush1.bf16.msra.mxu0 %v3786
        %4097 = vmatprep.subr.bf16.mxu0 0
        %4098 = vmatpush1.bf16.msra.mxu0 %v3787
        %4099 = vmatprep.subr.bf16.mxu0 0
        %4100 = vmatpush1.bf16.msra.mxu0 %v3788
        %4101 = vmatprep.subr.bf16.mxu0 0
        %4102 = vmatpush1.bf16.msra.mxu0 %v3789
        %4103 = vmatprep.subr.bf16.mxu0 0
        %4104 = vmatpush1.bf16.msra.mxu0 %v3790
        %4105 = vmatprep.subr.bf16.mxu0 0
        %4106 = vmatpush1.bf16.msra.mxu0 %v3791
        %4107 = vmatprep.subr.bf16.mxu0 0
        %4108 = vmatpush1.bf16.msra.mxu0 %v3792
        %4109 = vmatprep.subr.bf16.mxu0 0
        %4110 = vmatpush1.bf16.msra.mxu0 %v3793
        %4111 = vmatprep.subr.bf16.mxu0 0
        %4112 = vmatpush1.bf16.msra.mxu0 %v3794
        %4113 = vmatprep.subr.bf16.mxu0 0
        %4114 = vmatpush1.bf16.msra.mxu0 %v3795
        %4115 = vmatprep.subr.bf16.mxu0 0
        %4116 = vmatpush1.bf16.msra.mxu0 %v3796
        %4117 = vmatprep.subr.bf16.mxu0 0
        %4118 = vmatpush1.bf16.msra.mxu0 %v3797
        %4119 = vmatprep.subr.bf16.mxu0 0
        %4120 = vmatpush1.bf16.msra.mxu0 %v3798
        %4121 = vmatprep.subr.bf16.mxu0 0
        %4122 = vmatpush1.bf16.msra.mxu0 %v3799
        %4123 = vmatprep.mubr.bf16.mxu0 %v3721
        %4124 = vmatmul.mubr.bf16.gmra.mrb[0].mxu0 %v3720
        %v4125 = vpop.f32.mrb[0].mxu0
        %v4126 = vadd.f32 0.0, %v4125
        %v4127 = vpop.f32.mrb[0].mxu0
        %v4128 = vpop.f32.mrb[0].mxu0
        %v4129 = vadd.f32 0.0, %v4128
        %v4130 = vpop.f32.mrb[0].mxu0
        %4131 = vmatprep.mubr.bf16.mxu0 %v3723
        %4132 = vmatmul.mubr.bf16.gmra.mrb[0].mxu0 %v3722
        %v4133 = vpop.f32.mrb[0].mxu0
        %v4134 = vadd.f32 0.0, %v4133
        %v4135 = vpop.f32.mrb[0].mxu0
        %v4136 = vpop.f32.mrb[0].mxu0
        %v4137 = vadd.f32 0.0, %v4136
        %v4138 = vpop.f32.mrb[0].mxu0
        %4139 = vmatprep.mubr.bf16.mxu0 %v3725
        %4140 = vmatmul.mubr.bf16.gmra.mrb[0].mxu0 %v3724
        %v4141 = vpop.f32.mrb[0].mxu0
        %v4142 = vadd.f32 0.0, %v4141
        %v4143 = vpop.f32.mrb[0].mxu0
        %v4144 = vpop.f32.mrb[0].mxu0
        %v4145 = vadd.f32 0.0, %v4144
        %v4146 = vpop.f32.mrb[0].mxu0
        %4147 = vmatprep.mubr.bf16.mxu0 %v3727
        %4148 = vmatmul.mubr.bf16.gmra.mrb[0].mxu0 %v3726
        %v4149 = vpop.f32.mrb[0].mxu0
        %v4150 = vadd.f32 0.0, %v4149
        %v4151 = vpop.f32.mrb[0].mxu0
        %v4152 = vpop.f32.mrb[0].mxu0
        %v4153 = vadd.f32 0.0, %v4152
        %v4154 = vpop.f32.mrb[0].mxu0
        %4155 = vmatprep.mubr.bf16.mxu0 %v3729
        %4156 = vmatmul.mubr.bf16.gmra.mrb[0].mxu0 %v3728
        %v4157 = vpop.f32.mrb[0].mxu0
        %v4158 = vadd.f32 0.0, %v4157
        %v4159 = vpop.f32.mrb[0].mxu0
        %v4160 = vpop.f32.mrb[0].mxu0
        %v4161 = vadd.f32 0.0, %v4160
        %v4162 = vpop.f32.mrb[0].mxu0
        %4163 = vmatprep.mubr.bf16.mxu0 %v3731
        %4164 = vmatmul.mubr.bf16.gmra.mrb[0].mxu0 %v3730
        %v4165 = vpop.f32.mrb[0].mxu0
        %v4166 = vadd.f32 0.0, %v4165
        %v4167 = vpop.f32.mrb[0].mxu0
        %v4168 = vpop.f32.mrb[0].mxu0
        %v4169 = vadd.f32 0.0, %v4168
        %v4170 = vpop.f32.mrb[0].mxu0
        %4171 = vmatprep.mubr.bf16.mxu0 %v3733
        %4172 = vmatmul.mubr.bf16.gmra.mrb[0].mxu0 %v3732
        %v4173 = vpop.f32.mrb[0].mxu0
        %v4174 = vadd.f32 0.0, %v4173
        %v4175 = vpop.f32.mrb[0].mxu0
        %v4176 = vpop.f32.mrb[0].mxu0
        %v4177 = vadd.f32 0.0, %v4176
        %v4178 = vpop.f32.mrb[0].mxu0
        %4179 = vmatprep.mubr.bf16.mxu0 %v3735
        %4180 = vmatmul.mubr.bf16.gmra.mrb[0].mxu0 %v3734
        %v4181 = vpop.f32.mrb[0].mxu0
        %v4182 = vadd.f32 0.0, %v4181
        %v4183 = vpop.f32.mrb[0].mxu0
        %v4184 = vpop.f32.mrb[0].mxu0
        %v4185 = vadd.f32 0.0, %v4184
        %v4186 = vpop.f32.mrb[0].mxu0
        %4187 = vdwg.mxu0
        %v4188 = vpack.c.bf16 %v3838, %v3835
        %v4189 = vpack.c.bf16 %v3846, %v3843
        %v4190 = vpack.c.bf16 %v3854, %v3851
        %v4191 = vpack.c.bf16 %v3862, %v3859
        %v4192 = vpack.c.bf16 %v3870, %v3867
        %v4193 = vpack.c.bf16 %v3878, %v3875
        %v4194 = vpack.c.bf16 %v3886, %v3883
        %v4195 = vpack.c.bf16 %v3894, %v3891
        %v4196 = vpack.c.bf16 %v3935, %v3932
        %v4197 = vpack.c.bf16 %v3943, %v3940
        %v4198 = vpack.c.bf16 %v3951, %v3948
        %v4199 = vpack.c.bf16 %v3959, %v3956
        %v4200 = vpack.c.bf16 %v3967, %v3964
        %v4201 = vpack.c.bf16 %v3975, %v3972
        %v4202 = vpack.c.bf16 %v3983, %v3980
        %v4203 = vpack.c.bf16 %v3991, %v3988
        %v4204 = vpack.c.bf16 %v4032, %v4029
        %v4205 = vpack.c.bf16 %v4040, %v4037
        %v4206 = vpack.c.bf16 %v4048, %v4045
        %v4207 = vpack.c.bf16 %v4056, %v4053
        %v4208 = vpack.c.bf16 %v4064, %v4061
        %v4209 = vpack.c.bf16 %v4072, %v4069
        %v4210 = vpack.c.bf16 %v4080, %v4077
        %v4211 = vpack.c.bf16 %v4088, %v4085
        %v4212 = vpack.c.bf16 %v4129, %v4126
        %v4213 = vpack.c.bf16 %v4137, %v4134
        %v4214 = vpack.c.bf16 %v4145, %v4142
        %v4215 = vpack.c.bf16 %v4153, %v4150
        %v4216 = vpack.c.bf16 %v4161, %v4158
        %v4217 = vpack.c.bf16 %v4169, %v4166
        %v4218 = vpack.c.bf16 %v4177, %v4174
        %v4219 = vpack.c.bf16 %v4185, %v4182
        %4228 = vrot.lane.b32.xlu0 %v4196, 32
        %v4229 = vpop.permute.xlu0 %4228
        %4230 = vrot.lane.b32.xlu0 %v4197, 32
        %v4231 = vpop.permute.xlu0 %4230
        %4232 = vrot.lane.b32.xlu0 %v4198, 32
        %v4233 = vpop.permute.xlu0 %4232
        %4234 = vrot.lane.b32.xlu0 %v4199, 32
        %v4235 = vpop.permute.xlu0 %4234
        %4236 = vrot.lane.b32.xlu0 %v4200, 32
        %v4237 = vpop.permute.xlu0 %4236
        %4238 = vrot.lane.b32.xlu0 %v4201, 32
        %v4239 = vpop.permute.xlu0 %4238
        %4240 = vrot.lane.b32.xlu0 %v4202, 32
        %v4241 = vpop.permute.xlu0 %4240
        %4242 = vrot.lane.b32.xlu0 %v4203, 32
        %v4243 = vpop.permute.xlu0 %4242
        %4252 = vrot.lane.b32.xlu0 %v4204, 64
        %v4253 = vpop.permute.xlu0 %4252
        %4254 = vrot.lane.b32.xlu0 %v4205, 64
        %v4255 = vpop.permute.xlu0 %4254
        %4256 = vrot.lane.b32.xlu0 %v4206, 64
        %v4257 = vpop.permute.xlu0 %4256
        %4258 = vrot.lane.b32.xlu0 %v4207, 64
        %v4259 = vpop.permute.xlu0 %4258
        %4260 = vrot.lane.b32.xlu0 %v4208, 64
        %v4261 = vpop.permute.xlu0 %4260
        %4262 = vrot.lane.b32.xlu0 %v4209, 64
        %v4263 = vpop.permute.xlu0 %4262
        %4264 = vrot.lane.b32.xlu0 %v4210, 64
        %v4265 = vpop.permute.xlu0 %4264
        %4266 = vrot.lane.b32.xlu0 %v4211, 64
        %v4267 = vpop.permute.xlu0 %4266
        %4276 = vrot.lane.b32.xlu0 %v4212, 96
        %v4277 = vpop.permute.xlu0 %4276
        %4278 = vrot.lane.b32.xlu0 %v4213, 96
        %v4279 = vpop.permute.xlu0 %4278
        %4280 = vrot.lane.b32.xlu0 %v4214, 96
        %v4281 = vpop.permute.xlu0 %4280
        %4282 = vrot.lane.b32.xlu0 %v4215, 96
        %v4283 = vpop.permute.xlu0 %4282
        %4284 = vrot.lane.b32.xlu0 %v4216, 96
        %v4285 = vpop.permute.xlu0 %4284
        %4286 = vrot.lane.b32.xlu0 %v4217, 96
        %v4287 = vpop.permute.xlu0 %4286
        %4288 = vrot.lane.b32.xlu0 %v4218, 96
        %v4289 = vpop.permute.xlu0 %4288
        %4290 = vrot.lane.b32.xlu0 %v4219, 96
        %v4291 = vpop.permute.xlu0 %4290
        %v4294 = vsel %vm1971, %v4188, %v4229
        %v4297 = vsel %vm1971, %v4189, %v4231
        %v4300 = vsel %vm1971, %v4190, %v4233
        %v4303 = vsel %vm1971, %v4191, %v4235
        %v4306 = vsel %vm1971, %v4192, %v4237
        %v4309 = vsel %vm1971, %v4193, %v4239
        %v4312 = vsel %vm1971, %v4194, %v4241
        %v4315 = vsel %vm1971, %v4195, %v4243
        %vm4316 = vcmask 523264
        %v4318 = vsel %vm4316, %v4294, %v4253
        %v4320 = vsel %vm4316, %v4297, %v4255
        %v4322 = vsel %vm4316, %v4300, %v4257
        %v4324 = vsel %vm4316, %v4303, %v4259
        %v4326 = vsel %vm4316, %v4306, %v4261
        %v4328 = vsel %vm4316, %v4309, %v4263
        %v4330 = vsel %vm4316, %v4312, %v4265
        %v4332 = vsel %vm4316, %v4315, %v4267
        %vm4333 = vcmask 785408
        %v4335 = vsel %vm4333, %v4318, %v4277
        %v4338 = vsel %vm4333, %v4320, %v4279
        %v4341 = vsel %vm4333, %v4322, %v4281
        %v4344 = vsel %vm4333, %v4324, %v4283
        %v4347 = vsel %vm4333, %v4326, %v4285
        %v4350 = vsel %vm4333, %v4328, %v4287
        %v4353 = vsel %vm4333, %v4330, %v4289
        %v4356 = vsel %vm4333, %v4332, %v4291
        %v4358 = vld [vmem:[#allocation14] sm:$0xf]
        %v4359 = vld [vmem:[#allocation14 + $0x4] sm:$0xf]
        %v4360 = vld [vmem:[#allocation14 + $0x8] sm:$0xf]
        %v4361 = vld [vmem:[#allocation14 + $0xc] sm:$0xf]
        %v4362 = vld [vmem:[#allocation14 + $0x10] sm:$0xf]
        %v4363 = vld [vmem:[#allocation14 + $0x14] sm:$0xf]
        %v4364 = vld [vmem:[#allocation14 + $0x18] sm:$0xf]
        %v4365 = vld [vmem:[#allocation14 + $0x1c] sm:$0xf]
        %v4366 = vld [vmem:[#allocation14 + $0x20] sm:$0xf]
        %v4367 = vld [vmem:[#allocation14 + $0x24] sm:$0xf]
        %v4368 = vld [vmem:[#allocation14 + $0x28] sm:$0xf]
        %v4369 = vld [vmem:[#allocation14 + $0x2c] sm:$0xf]
        %v4370 = vld [vmem:[#allocation14 + $0x30] sm:$0xf]
        %v4371 = vld [vmem:[#allocation14 + $0x34] sm:$0xf]
        %v4372 = vld [vmem:[#allocation14 + $0x38] sm:$0xf]
        %v4373 = vld [vmem:[#allocation14 + $0x3c] sm:$0xf]
        %v4374 = vld [vmem:[#allocation16] sm:$0x1]
        %v4376 = vlaneseq
        %v4377 = vshrl.u32 %v4376, 7
        %v4378 = vsub.s32 0, %v4377
        %v4379 = vrot.slane %v4374, %v4378
        %v4397 = vunpack.c.l.b16 %v4358
        %v4398 = vunpack.c.l.b16 %v4359
        %v4399 = vunpack.c.l.b16 %v4360
        %v4400 = vunpack.c.l.b16 %v4361
        %v4401 = vunpack.c.l.b16 %v4362
        %v4402 = vunpack.c.l.b16 %v4363
        %v4403 = vunpack.c.l.b16 %v4364
        %v4404 = vunpack.c.l.b16 %v4365
        %v4405 = vunpack.c.l.b16 %v4366
        %v4406 = vunpack.c.l.b16 %v4367
        %v4407 = vunpack.c.l.b16 %v4368
        %v4408 = vunpack.c.l.b16 %v4369
        %v4409 = vunpack.c.l.b16 %v4370
        %v4410 = vunpack.c.l.b16 %v4371
        %v4411 = vunpack.c.l.b16 %v4372
        %v4412 = vunpack.c.l.b16 %v4373
        %v4413 = vpack.c.b16 %v4398, %v4397
        %v4414 = vpack.c.b16 %v4400, %v4399
        %v4415 = vpack.c.b16 %v4402, %v4401
        %v4416 = vpack.c.b16 %v4404, %v4403
        %v4417 = vpack.c.b16 %v4406, %v4405
        %v4418 = vpack.c.b16 %v4408, %v4407
        %v4419 = vpack.c.b16 %v4410, %v4409
        %v4420 = vpack.c.b16 %v4412, %v4411
        %4429 = vmatprep.subr.bf16.mxu0 0
        %4430 = vmatpush1.bf16.msra.mxu0 %v4413
        %4431 = vmatprep.subr.bf16.mxu0 0
        %4432 = vmatpush1.bf16.msra.mxu0 %v4414
        %4433 = vmatprep.subr.bf16.mxu0 0
        %4434 = vmatpush1.bf16.msra.mxu0 %v4415
        %4435 = vmatprep.subr.bf16.mxu0 0
        %4436 = vmatpush1.bf16.msra.mxu0 %v4416
        %4437 = vmatprep.subr.bf16.mxu0 0
        %4438 = vmatpush1.bf16.msra.mxu0 %v4417
        %4439 = vmatprep.subr.bf16.mxu0 0
        %4440 = vmatpush1.bf16.msra.mxu0 %v4418
        %4441 = vmatprep.subr.bf16.mxu0 0
        %4442 = vmatpush1.bf16.msra.mxu0 %v4419
        %4443 = vmatprep.subr.bf16.mxu0 0
        %4444 = vmatpush1.bf16.msra.mxu0 %v4420
        %4445 = vmatprep.subr.bf16.mxu0 0
        %4446 = vmatpush1.bf16.msra.mxu0 0
        %4447 = vmatprep.subr.bf16.mxu0 0
        %4448 = vmatpush1.bf16.msra.mxu0 0
        %4449 = vmatprep.subr.bf16.mxu0 0
        %4450 = vmatpush1.bf16.msra.mxu0 0
        %4451 = vmatprep.subr.bf16.mxu0 0
        %4452 = vmatpush1.bf16.msra.mxu0 0
        %4453 = vmatprep.subr.bf16.mxu0 0
        %4454 = vmatpush1.bf16.msra.mxu0 0
        %4455 = vmatprep.subr.bf16.mxu0 0
        %4456 = vmatpush1.bf16.msra.mxu0 0
        %4457 = vmatprep.subr.bf16.mxu0 0
        %4458 = vmatpush1.bf16.msra.mxu0 0
        %4459 = vmatprep.subr.bf16.mxu0 0
        %4460 = vmatpush1.bf16.msra.mxu0 0
        %4461 = vmatprep.mubr.bf16.mxu0 0
        %4462 = vmatmul.mubr.bf16.gmra.mrb[0].mxu0 %v4335
        %v4463 = vpop.f32.mrb[0].mxu0
        %v4464 = vadd.f32 %v4379, %v4463
        %v4465 = vpop.f32.mrb[0].mxu0
        %v4466 = vpop.f32.mrb[0].mxu0
        %v4467 = vadd.f32 %v4379, %v4466
        %v4468 = vpop.f32.mrb[0].mxu0
        %4469 = vmatprep.mubr.bf16.mxu0 0
        %4470 = vmatmul.mubr.bf16.gmra.mrb[0].mxu0 %v4338
        %v4471 = vpop.f32.mrb[0].mxu0
        %v4472 = vadd.f32 %v4379, %v4471
        %v4473 = vpop.f32.mrb[0].mxu0
        %v4474 = vpop.f32.mrb[0].mxu0
        %v4475 = vadd.f32 %v4379, %v4474
        %v4476 = vpop.f32.mrb[0].mxu0
        %4477 = vmatprep.mubr.bf16.mxu0 0
        %4478 = vmatmul.mubr.bf16.gmra.mrb[0].mxu0 %v4341
        %v4479 = vpop.f32.mrb[0].mxu0
        %v4480 = vadd.f32 %v4379, %v4479
        %v4481 = vpop.f32.mrb[0].mxu0
        %v4482 = vpop.f32.mrb[0].mxu0
        %v4483 = vadd.f32 %v4379, %v4482
        %v4484 = vpop.f32.mrb[0].mxu0
        %4485 = vmatprep.mubr.bf16.mxu0 0
        %4486 = vmatmul.mubr.bf16.gmra.mrb[0].mxu0 %v4344
        %v4487 = vpop.f32.mrb[0].mxu0
        %v4488 = vadd.f32 %v4379, %v4487
        %v4489 = vpop.f32.mrb[0].mxu0
        %v4490 = vpop.f32.mrb[0].mxu0
        %v4491 = vadd.f32 %v4379, %v4490
        %v4492 = vpop.f32.mrb[0].mxu0
        %4493 = vmatprep.mubr.bf16.mxu0 0
        %4494 = vmatmul.mubr.bf16.gmra.mrb[0].mxu0 %v4347
        %v4495 = vpop.f32.mrb[0].mxu0
        %v4496 = vadd.f32 %v4379, %v4495
        %v4497 = vpop.f32.mrb[0].mxu0
        %v4498 = vpop.f32.mrb[0].mxu0
        %v4499 = vadd.f32 %v4379, %v4498
        %v4500 = vpop.f32.mrb[0].mxu0
        %4501 = vmatprep.mubr.bf16.mxu0 0
        %4502 = vmatmul.mubr.bf16.gmra.mrb[0].mxu0 %v4350
        %v4503 = vpop.f32.mrb[0].mxu0
        %v4504 = vadd.f32 %v4379, %v4503
        %v4505 = vpop.f32.mrb[0].mxu0
        %v4506 = vpop.f32.mrb[0].mxu0
        %v4507 = vadd.f32 %v4379, %v4506
        %v4508 = vpop.f32.mrb[0].mxu0
        %4509 = vmatprep.mubr.bf16.mxu0 0
        %4510 = vmatmul.mubr.bf16.gmra.mrb[0].mxu0 %v4353
        %v4511 = vpop.f32.mrb[0].mxu0
        %v4512 = vadd.f32 %v4379, %v4511
        %v4513 = vpop.f32.mrb[0].mxu0
        %v4514 = vpop.f32.mrb[0].mxu0
        %v4515 = vadd.f32 %v4379, %v4514
        %v4516 = vpop.f32.mrb[0].mxu0
        %4517 = vmatprep.mubr.bf16.mxu0 0
        %4518 = vmatmul.mubr.bf16.gmra.mrb[0].mxu0 %v4356
        %v4519 = vpop.f32.mrb[0].mxu0
        %v4520 = vadd.f32 %v4379, %v4519
        %v4521 = vpop.f32.mrb[0].mxu0
        %v4522 = vpop.f32.mrb[0].mxu0
        %v4523 = vadd.f32 %v4379, %v4522
        %v4524 = vpop.f32.mrb[0].mxu0
        %4525 = vdwg.mxu0
        %v4526 = vadd.f32 %v1651, %v4464
        %v4527 = vadd.f32 %v1652, %v4467
        %v4528 = vadd.f32 %v1653, %v4472
        %v4529 = vadd.f32 %v1654, %v4475
        %v4530 = vadd.f32 %v1655, %v4480
        %v4531 = vadd.f32 %v1656, %v4483
        %v4532 = vadd.f32 %v1657, %v4488
        %v4533 = vadd.f32 %v1658, %v4491
        %v4534 = vadd.f32 %v1659, %v4496
        %v4535 = vadd.f32 %v1660, %v4499
        %v4536 = vadd.f32 %v1661, %v4504
        %v4537 = vadd.f32 %v1662, %v4507
        %v4538 = vadd.f32 %v1663, %v4512
        %v4539 = vadd.f32 %v1664, %v4515
        %v4540 = vadd.f32 %v1665, %v4520
        %v4541 = vadd.f32 %v1666, %v4523
        %4542 = vadd.xlane.f32.xlu0 %v4526
        %v4543 = vpop.xlane.xlu0 %4542
        %4544 = vadd.xlane.f32.xlu0 %v4527
        %v4545 = vpop.xlane.xlu0 %4544
        %4546 = vadd.xlane.f32.xlu0 %v4528
        %v4547 = vpop.xlane.xlu0 %4546
        %4548 = vadd.xlane.f32.xlu0 %v4529
        %v4549 = vpop.xlane.xlu0 %4548
        %4550 = vadd.xlane.f32.xlu0 %v4530
        %v4551 = vpop.xlane.xlu0 %4550
        %4552 = vadd.xlane.f32.xlu0 %v4531
        %v4553 = vpop.xlane.xlu0 %4552
        %4554 = vadd.xlane.f32.xlu0 %v4532
        %v4555 = vpop.xlane.xlu0 %4554
        %4556 = vadd.xlane.f32.xlu0 %v4533
        %v4557 = vpop.xlane.xlu0 %4556
        %4558 = vadd.xlane.f32.xlu0 %v4534
        %v4559 = vpop.xlane.xlu0 %4558
        %4560 = vadd.xlane.f32.xlu0 %v4535
        %v4561 = vpop.xlane.xlu0 %4560
        %4562 = vadd.xlane.f32.xlu0 %v4536
        %v4563 = vpop.xlane.xlu0 %4562
        %4564 = vadd.xlane.f32.xlu0 %v4537
        %v4565 = vpop.xlane.xlu0 %4564
        %4566 = vadd.xlane.f32.xlu0 %v4538
        %v4567 = vpop.xlane.xlu0 %4566
        %4568 = vadd.xlane.f32.xlu0 %v4539
        %v4569 = vpop.xlane.xlu0 %4568
        %4570 = vadd.xlane.f32.xlu0 %v4540
        %v4571 = vpop.xlane.xlu0 %4570
        %4572 = vadd.xlane.f32.xlu0 %v4541
        %v4573 = vpop.xlane.xlu0 %4572
        %v4574 = vrcp.pop 128.0
        %v4575 = vmul.f32 %v4543, %v4574
        %v4576 = vmul.f32 %v4545, %v4574
        %v4577 = vmul.f32 %v4547, %v4574
        %v4578 = vmul.f32 %v4549, %v4574
        %v4579 = vmul.f32 %v4551, %v4574
        %v4580 = vmul.f32 %v4553, %v4574
        %v4581 = vmul.f32 %v4555, %v4574
        %v4582 = vmul.f32 %v4557, %v4574
        %v4583 = vmul.f32 %v4559, %v4574
        %v4584 = vmul.f32 %v4561, %v4574
        %v4585 = vmul.f32 %v4563, %v4574
        %v4586 = vmul.f32 %v4565, %v4574
        %v4587 = vmul.f32 %v4567, %v4574
        %v4588 = vmul.f32 %v4569, %v4574
        %v4589 = vmul.f32 %v4571, %v4574
        %v4590 = vmul.f32 %v4573, %v4574
        %v4591 = vsub.f32 %v4526, %v4575
        %v4592 = vsub.f32 %v4527, %v4576
        %v4593 = vsub.f32 %v4528, %v4577
        %v4594 = vsub.f32 %v4529, %v4578
        %v4595 = vsub.f32 %v4530, %v4579
        %v4596 = vsub.f32 %v4531, %v4580
        %v4597 = vsub.f32 %v4532, %v4581
        %v4598 = vsub.f32 %v4533, %v4582
        %v4599 = vsub.f32 %v4534, %v4583
        %v4600 = vsub.f32 %v4535, %v4584
        %v4601 = vsub.f32 %v4536, %v4585
        %v4602 = vsub.f32 %v4537, %v4586
        %v4603 = vsub.f32 %v4538, %v4587
        %v4604 = vsub.f32 %v4539, %v4588
        %v4605 = vsub.f32 %v4540, %v4589
        %v4606 = vsub.f32 %v4541, %v4590
        %v4607 = vmul.f32 %v4591, %v4591
        %v4608 = vmul.f32 %v4592, %v4592
        %v4609 = vmul.f32 %v4593, %v4593
        %v4610 = vmul.f32 %v4594, %v4594
        %v4611 = vmul.f32 %v4595, %v4595
        %v4612 = vmul.f32 %v4596, %v4596
        %v4613 = vmul.f32 %v4597, %v4597
        %v4614 = vmul.f32 %v4598, %v4598
        %v4615 = vmul.f32 %v4599, %v4599
        %v4616 = vmul.f32 %v4600, %v4600
        %v4617 = vmul.f32 %v4601, %v4601
        %v4618 = vmul.f32 %v4602, %v4602
        %v4619 = vmul.f32 %v4603, %v4603
        %v4620 = vmul.f32 %v4604, %v4604
        %v4621 = vmul.f32 %v4605, %v4605
        %v4622 = vmul.f32 %v4606, %v4606
        %4623 = vadd.xlane.f32.xlu0 %v4607
        %v4624 = vpop.xlane.xlu0 %4623
        %4625 = vadd.xlane.f32.xlu0 %v4608
        %v4626 = vpop.xlane.xlu0 %4625
        %4627 = vadd.xlane.f32.xlu0 %v4609
        %v4628 = vpop.xlane.xlu0 %4627
        %4629 = vadd.xlane.f32.xlu0 %v4610
        %v4630 = vpop.xlane.xlu0 %4629
        %4631 = vadd.xlane.f32.xlu0 %v4611
        %v4632 = vpop.xlane.xlu0 %4631
        %4633 = vadd.xlane.f32.xlu0 %v4612
        %v4634 = vpop.xlane.xlu0 %4633
        %4635 = vadd.xlane.f32.xlu0 %v4613
        %v4636 = vpop.xlane.xlu0 %4635
        %4637 = vadd.xlane.f32.xlu0 %v4614
        %v4638 = vpop.xlane.xlu0 %4637
        %4639 = vadd.xlane.f32.xlu0 %v4615
        %v4640 = vpop.xlane.xlu0 %4639
        %4641 = vadd.xlane.f32.xlu0 %v4616
        %v4642 = vpop.xlane.xlu0 %4641
        %4643 = vadd.xlane.f32.xlu0 %v4617
        %v4644 = vpop.xlane.xlu0 %4643
        %4645 = vadd.xlane.f32.xlu0 %v4618
        %v4646 = vpop.xlane.xlu0 %4645
        %4647 = vadd.xlane.f32.xlu0 %v4619
        %v4648 = vpop.xlane.xlu0 %4647
        %4649 = vadd.xlane.f32.xlu0 %v4620
        %v4650 = vpop.xlane.xlu0 %4649
        %4651 = vadd.xlane.f32.xlu0 %v4621
        %v4652 = vpop.xlane.xlu0 %4651
        %4653 = vadd.xlane.f32.xlu0 %v4622
        %v4654 = vpop.xlane.xlu0 %4653
        %v4655 = vmul.f32 %v4624, %v4574
        %v4656 = vmul.f32 %v4626, %v4574
        %v4657 = vmul.f32 %v4628, %v4574
        %v4658 = vmul.f32 %v4630, %v4574
        %v4659 = vmul.f32 %v4632, %v4574
        %v4660 = vmul.f32 %v4634, %v4574
        %v4661 = vmul.f32 %v4636, %v4574
        %v4662 = vmul.f32 %v4638, %v4574
        %v4663 = vmul.f32 %v4640, %v4574
        %v4664 = vmul.f32 %v4642, %v4574
        %v4665 = vmul.f32 %v4644, %v4574
        %v4666 = vmul.f32 %v4646, %v4574
        %v4667 = vmul.f32 %v4648, %v4574
        %v4668 = vmul.f32 %v4650, %v4574
        %v4669 = vmul.f32 %v4652, %v4574
        %v4670 = vmul.f32 %v4654, %v4574
        %v4671 = vadd.f32 %v4655, 1e-05
        %v4672 = vadd.f32 %v4656, 1e-05
        %v4673 = vadd.f32 %v4657, 1e-05
        %v4674 = vadd.f32 %v4658, 1e-05
        %v4675 = vadd.f32 %v4659, 1e-05
        %v4676 = vadd.f32 %v4660, 1e-05
        %v4677 = vadd.f32 %v4661, 1e-05
        %v4678 = vadd.f32 %v4662, 1e-05
        %v4679 = vadd.f32 %v4663, 1e-05
        %v4680 = vadd.f32 %v4664, 1e-05
        %v4681 = vadd.f32 %v4665, 1e-05
        %v4682 = vadd.f32 %v4666, 1e-05
        %v4683 = vadd.f32 %v4667, 1e-05
        %v4684 = vadd.f32 %v4668, 1e-05
        %v4685 = vadd.f32 %v4669, 1e-05
        %v4686 = vadd.f32 %v4670, 1e-05
        %v4687 = vrsqrt.pop %v4671
        %v4688 = vrsqrt.pop %v4672
        %v4689 = vrsqrt.pop %v4673
        %v4690 = vrsqrt.pop %v4674
        %v4691 = vrsqrt.pop %v4675
        %v4692 = vrsqrt.pop %v4676
        %v4693 = vrsqrt.pop %v4677
        %v4694 = vrsqrt.pop %v4678
        %v4695 = vrsqrt.pop %v4679
        %v4696 = vrsqrt.pop %v4680
        %v4697 = vrsqrt.pop %v4681
        %v4698 = vrsqrt.pop %v4682
        %v4699 = vrsqrt.pop %v4683
        %v4700 = vrsqrt.pop %v4684
        %v4701 = vrsqrt.pop %v4685
        %v4702 = vrsqrt.pop %v4686
        %v4703 = vmul.f32 %v4591, %v4687
        %v4704 = vmul.f32 %v4592, %v4688
        %v4705 = vmul.f32 %v4593, %v4689
        %v4706 = vmul.f32 %v4594, %v4690
        %v4707 = vmul.f32 %v4595, %v4691
        %v4708 = vmul.f32 %v4596, %v4692
        %v4709 = vmul.f32 %v4597, %v4693
        %v4710 = vmul.f32 %v4598, %v4694
        %v4711 = vmul.f32 %v4599, %v4695
        %v4712 = vmul.f32 %v4600, %v4696
        %v4713 = vmul.f32 %v4601, %v4697
        %v4714 = vmul.f32 %v4602, %v4698
        %v4715 = vmul.f32 %v4603, %v4699
        %v4716 = vmul.f32 %v4604, %v4700
        %v4717 = vmul.f32 %v4605, %v4701
        %v4718 = vmul.f32 %v4606, %v4702
        %v4719 = vld [vmem:[#allocation17] sm:$0x1]
        %v4721 = vlaneseq
        %v4722 = vshrl.u32 %v4721, 7
        %v4723 = vsub.s32 0, %v4722
        %v4724 = vrot.slane %v4719, %v4723
        %v4726 = vmul.f32 %v4703, %v4724
        %v4727 = vmul.f32 %v4704, %v4724
        %v4728 = vmul.f32 %v4705, %v4724
        %v4729 = vmul.f32 %v4706, %v4724
        %v4730 = vmul.f32 %v4707, %v4724
        %v4731 = vmul.f32 %v4708, %v4724
        %v4732 = vmul.f32 %v4709, %v4724
        %v4733 = vmul.f32 %v4710, %v4724
        %v4734 = vmul.f32 %v4711, %v4724
        %v4735 = vmul.f32 %v4712, %v4724
        %v4736 = vmul.f32 %v4713, %v4724
        %v4737 = vmul.f32 %v4714, %v4724
        %v4738 = vmul.f32 %v4715, %v4724
        %v4739 = vmul.f32 %v4716, %v4724
        %v4740 = vmul.f32 %v4717, %v4724
        %v4741 = vmul.f32 %v4718, %v4724
        %v4742 = vld [vmem:[#allocation19] sm:$0x1]
        %v4744 = vlaneseq
        %v4745 = vshrl.u32 %v4744, 7
        %v4746 = vsub.s32 0, %v4745
        %v4747 = vrot.slane %v4742, %v4746
        %v4749 = vadd.f32 %v4726, %v4747
        %v4750 = vadd.f32 %v4727, %v4747
        %v4751 = vadd.f32 %v4728, %v4747
        %v4752 = vadd.f32 %v4729, %v4747
        %v4753 = vadd.f32 %v4730, %v4747
        %v4754 = vadd.f32 %v4731, %v4747
        %v4755 = vadd.f32 %v4732, %v4747
        %v4756 = vadd.f32 %v4733, %v4747
        %v4757 = vadd.f32 %v4734, %v4747
        %v4758 = vadd.f32 %v4735, %v4747
        %v4759 = vadd.f32 %v4736, %v4747
        %v4760 = vadd.f32 %v4737, %v4747
        %v4761 = vadd.f32 %v4738, %v4747
        %v4762 = vadd.f32 %v4739, %v4747
        %v4763 = vadd.f32 %v4740, %v4747
        %v4764 = vadd.f32 %v4741, %v4747
        %v4765 = vpack.c.bf16 %v4750, %v4749
        %v4766 = vpack.c.bf16 %v4752, %v4751
        %v4767 = vpack.c.bf16 %v4754, %v4753
        %v4768 = vpack.c.bf16 %v4756, %v4755
        %v4769 = vpack.c.bf16 %v4758, %v4757
        %v4770 = vpack.c.bf16 %v4760, %v4759
        %v4771 = vpack.c.bf16 %v4762, %v4761
        %v4772 = vpack.c.bf16 %v4764, %v4763
        %v4773 = vld [vmem:[#allocation20] sm:$0xff]
        %v4774 = vld [vmem:[#allocation20 + $0x8] sm:$0xff]
        %v4775 = vld [vmem:[#allocation20 + $0x10] sm:$0xff]
        %v4776 = vld [vmem:[#allocation20 + $0x18] sm:$0xff]
        %v4777 = vld [vmem:[#allocation20 + $0x20] sm:$0xff]
        %v4778 = vld [vmem:[#allocation20 + $0x28] sm:$0xff]
        %v4779 = vld [vmem:[#allocation20 + $0x30] sm:$0xff]
        %v4780 = vld [vmem:[#allocation20 + $0x38] sm:$0xff]
        %v4781 = vld [vmem:[#allocation20 + $0x40] sm:$0xff]
        %v4782 = vld [vmem:[#allocation20 + $0x48] sm:$0xff]
        %v4783 = vld [vmem:[#allocation20 + $0x50] sm:$0xff]
        %v4784 = vld [vmem:[#allocation20 + $0x58] sm:$0xff]
        %v4785 = vld [vmem:[#allocation20 + $0x60] sm:$0xff]
        %v4786 = vld [vmem:[#allocation20 + $0x68] sm:$0xff]
        %v4787 = vld [vmem:[#allocation20 + $0x70] sm:$0xff]
        %v4788 = vld [vmem:[#allocation20 + $0x78] sm:$0xff]
        %v4789 = vld [vmem:[#allocation22] sm:$0x3]
        %v4791 = vlaneseq
        %v4792 = vshrl.u32 %v4791, 7
        %v4793 = vsub.s32 0, %v4792
        %v4794 = vrot.slane %v4789, %v4793
        %v4795 = vlaneseq
        %v4796 = vshrl.u32 %v4795, 7
        %v4797 = vsub.s32 1, %v4796
        %v4798 = vrot.slane %v4789, %v4797
        %v4817 = vunpack.c.l.b16 %v4773
        %v4818 = vunpack.c.h.b16 %v4773
        %v4819 = vunpack.c.l.b16 %v4774
        %v4820 = vunpack.c.h.b16 %v4774
        %v4821 = vunpack.c.l.b16 %v4775
        %v4822 = vunpack.c.h.b16 %v4775
        %v4823 = vunpack.c.l.b16 %v4776
        %v4824 = vunpack.c.h.b16 %v4776
        %v4825 = vunpack.c.l.b16 %v4777
        %v4826 = vunpack.c.h.b16 %v4777
        %v4827 = vunpack.c.l.b16 %v4778
        %v4828 = vunpack.c.h.b16 %v4778
        %v4829 = vunpack.c.l.b16 %v4779
        %v4830 = vunpack.c.h.b16 %v4779
        %v4831 = vunpack.c.l.b16 %v4780
        %v4832 = vunpack.c.h.b16 %v4780
        %v4833 = vunpack.c.l.b16 %v4781
        %v4834 = vunpack.c.h.b16 %v4781
        %v4835 = vunpack.c.l.b16 %v4782
        %v4836 = vunpack.c.h.b16 %v4782
        %v4837 = vunpack.c.l.b16 %v4783
        %v4838 = vunpack.c.h.b16 %v4783
        %v4839 = vunpack.c.l.b16 %v4784
        %v4840 = vunpack.c.h.b16 %v4784
        %v4841 = vunpack.c.l.b16 %v4785
        %v4842 = vunpack.c.h.b16 %v4785
        %v4843 = vunpack.c.l.b16 %v4786
        %v4844 = vunpack.c.h.b16 %v4786
        %v4845 = vunpack.c.l.b16 %v4787
        %v4846 = vunpack.c.h.b16 %v4787
        %v4847 = vunpack.c.l.b16 %v4788
        %v4848 = vunpack.c.h.b16 %v4788
        %v4849 = vpack.c.b16 %v4819, %v4817
        %v4850 = vpack.c.b16 %v4820, %v4818
        %v4851 = vpack.c.b16 %v4823, %v4821
        %v4852 = vpack.c.b16 %v4824, %v4822
        %v4853 = vpack.c.b16 %v4827, %v4825
        %v4854 = vpack.c.b16 %v4828, %v4826
        %v4855 = vpack.c.b16 %v4831, %v4829
        %v4856 = vpack.c.b16 %v4832, %v4830
        %v4857 = vpack.c.b16 %v4835, %v4833
        %v4858 = vpack.c.b16 %v4836, %v4834
        %v4859 = vpack.c.b16 %v4839, %v4837
        %v4860 = vpack.c.b16 %v4840, %v4838
        %v4861 = vpack.c.b16 %v4843, %v4841
        %v4862 = vpack.c.b16 %v4844, %v4842
        %v4863 = vpack.c.b16 %v4847, %v4845
        %v4864 = vpack.c.b16 %v4848, %v4846
        %4881 = vmatprep.subr.bf16.mxu0 %v4850
        %4882 = vmatpush1.bf16.msra.mxu0 %v4849
        %4883 = vmatprep.subr.bf16.mxu0 %v4852
        %4884 = vmatpush1.bf16.msra.mxu0 %v4851
        %4885 = vmatprep.subr.bf16.mxu0 %v4854
        %4886 = vmatpush1.bf16.msra.mxu0 %v4853
        %4887 = vmatprep.subr.bf16.mxu0 %v4856
        %4888 = vmatpush1.bf16.msra.mxu0 %v4855
        %4889 = vmatprep.subr.bf16.mxu0 %v4858
        %4890 = vmatpush1.bf16.msra.mxu0 %v4857
        %4891 = vmatprep.subr.bf16.mxu0 %v4860
        %4892 = vmatpush1.bf16.msra.mxu0 %v4859
        %4893 = vmatprep.subr.bf16.mxu0 %v4862
        %4894 = vmatpush1.bf16.msra.mxu0 %v4861
        %4895 = vmatprep.subr.bf16.mxu0 %v4864
        %4896 = vmatpush1.bf16.msra.mxu0 %v4863
        %4897 = vmatprep.subr.bf16.mxu0 0
        %4898 = vmatpush1.bf16.msra.mxu0 0
        %4899 = vmatprep.subr.bf16.mxu0 0
        %4900 = vmatpush1.bf16.msra.mxu0 0
        %4901 = vmatprep.subr.bf16.mxu0 0
        %4902 = vmatpush1.bf16.msra.mxu0 0
        %4903 = vmatprep.subr.bf16.mxu0 0
        %4904 = vmatpush1.bf16.msra.mxu0 0
        %4905 = vmatprep.subr.bf16.mxu0 0
        %4906 = vmatpush1.bf16.msra.mxu0 0
        %4907 = vmatprep.subr.bf16.mxu0 0
        %4908 = vmatpush1.bf16.msra.mxu0 0
        %4909 = vmatprep.subr.bf16.mxu0 0
        %4910 = vmatpush1.bf16.msra.mxu0 0
        %4911 = vmatprep.subr.bf16.mxu0 0
        %4912 = vmatpush1.bf16.msra.mxu0 0
        %4913 = vmatprep.mubr.bf16.mxu0 0
        %4914 = vmatmul.mubr.bf16.gmra.mrb[0].mxu0 %v4765
        %v4915 = vpop.f32.mrb[0].mxu0
        %v4916 = vadd.f32 %v4794, %v4915
        %v4917 = vpop.f32.mrb[0].mxu0
        %v4918 = vadd.f32 %v4798, %v4917
        %v4919 = vpop.f32.mrb[0].mxu0
        %v4920 = vadd.f32 %v4794, %v4919
        %v4921 = vpop.f32.mrb[0].mxu0
        %v4922 = vadd.f32 %v4798, %v4921
        %4923 = vmatprep.mubr.bf16.mxu0 0
        %4924 = vmatmul.mubr.bf16.gmra.mrb[0].mxu0 %v4766
        %v4925 = vpop.f32.mrb[0].mxu0
        %v4926 = vadd.f32 %v4794, %v4925
        %v4927 = vpop.f32.mrb[0].mxu0
        %v4928 = vadd.f32 %v4798, %v4927
        %v4929 = vpop.f32.mrb[0].mxu0
        %v4930 = vadd.f32 %v4794, %v4929
        %v4931 = vpop.f32.mrb[0].mxu0
        %v4932 = vadd.f32 %v4798, %v4931
        %4933 = vmatprep.mubr.bf16.mxu0 0
        %4934 = vmatmul.mubr.bf16.gmra.mrb[0].mxu0 %v4767
        %v4935 = vpop.f32.mrb[0].mxu0
        %v4936 = vadd.f32 %v4794, %v4935
        %v4937 = vpop.f32.mrb[0].mxu0
        %v4938 = vadd.f32 %v4798, %v4937
        %v4939 = vpop.f32.mrb[0].mxu0
        %v4940 = vadd.f32 %v4794, %v4939
        %v4941 = vpop.f32.mrb[0].mxu0
        %v4942 = vadd.f32 %v4798, %v4941
        %4943 = vmatprep.mubr.bf16.mxu0 0
        %4944 = vmatmul.mubr.bf16.gmra.mrb[0].mxu0 %v4768
        %v4945 = vpop.f32.mrb[0].mxu0
        %v4946 = vadd.f32 %v4794, %v4945
        %v4947 = vpop.f32.mrb[0].mxu0
        %v4948 = vadd.f32 %v4798, %v4947
        %v4949 = vpop.f32.mrb[0].mxu0
        %v4950 = vadd.f32 %v4794, %v4949
        %v4951 = vpop.f32.mrb[0].mxu0
        %v4952 = vadd.f32 %v4798, %v4951
        %4953 = vmatprep.mubr.bf16.mxu0 0
        %4954 = vmatmul.mubr.bf16.gmra.mrb[0].mxu0 %v4769
        %v4955 = vpop.f32.mrb[0].mxu0
        %v4956 = vadd.f32 %v4794, %v4955
        %v4957 = vpop.f32.mrb[0].mxu0
        %v4958 = vadd.f32 %v4798, %v4957
        %v4959 = vpop.f32.mrb[0].mxu0
        %v4960 = vadd.f32 %v4794, %v4959
        %v4961 = vpop.f32.mrb[0].mxu0
        %v4962 = vadd.f32 %v4798, %v4961
        %4963 = vmatprep.mubr.bf16.mxu0 0
        %4964 = vmatmul.mubr.bf16.gmra.mrb[0].mxu0 %v4770
        %v4965 = vpop.f32.mrb[0].mxu0
        %v4966 = vadd.f32 %v4794, %v4965
        %v4967 = vpop.f32.mrb[0].mxu0
        %v4968 = vadd.f32 %v4798, %v4967
        %v4969 = vpop.f32.mrb[0].mxu0
        %v4970 = vadd.f32 %v4794, %v4969
        %v4971 = vpop.f32.mrb[0].mxu0
        %v4972 = vadd.f32 %v4798, %v4971
        %4973 = vmatprep.mubr.bf16.mxu0 0
        %4974 = vmatmul.mubr.bf16.gmra.mrb[0].mxu0 %v4771
        %v4975 = vpop.f32.mrb[0].mxu0
        %v4976 = vadd.f32 %v4794, %v4975
        %v4977 = vpop.f32.mrb[0].mxu0
        %v4978 = vadd.f32 %v4798, %v4977
        %v4979 = vpop.f32.mrb[0].mxu0
        %v4980 = vadd.f32 %v4794, %v4979
        %v4981 = vpop.f32.mrb[0].mxu0
        %v4982 = vadd.f32 %v4798, %v4981
        %4983 = vmatprep.mubr.bf16.mxu0 0
        %4984 = vmatmul.mubr.bf16.gmra.mrb[0].mxu0 %v4772
        %v4985 = vpop.f32.mrb[0].mxu0
        %v4986 = vadd.f32 %v4794, %v4985
        %v4987 = vpop.f32.mrb[0].mxu0
        %v4988 = vadd.f32 %v4798, %v4987
        %v4989 = vpop.f32.mrb[0].mxu0
        %v4990 = vadd.f32 %v4794, %v4989
        %v4991 = vpop.f32.mrb[0].mxu0
        %v4992 = vadd.f32 %v4798, %v4991
        %4993 = vdwg.mxu0
        %v4994 = vmax.f32 %v4916, 0.0
        %v4995 = vmax.f32 %v4918, 0.0
        %v4996 = vmax.f32 %v4920, 0.0
        %v4997 = vmax.f32 %v4922, 0.0
        %v4998 = vmax.f32 %v4926, 0.0
        %v4999 = vmax.f32 %v4928, 0.0
        %v5000 = vmax.f32 %v4930, 0.0
        %v5001 = vmax.f32 %v4932, 0.0
        %v5002 = vmax.f32 %v4936, 0.0
        %v5003 = vmax.f32 %v4938, 0.0
        %v5004 = vmax.f32 %v4940, 0.0
        %v5005 = vmax.f32 %v4942, 0.0
        %v5006 = vmax.f32 %v4946, 0.0
        %v5007 = vmax.f32 %v4948, 0.0
        %v5008 = vmax.f32 %v4950, 0.0
        %v5009 = vmax.f32 %v4952, 0.0
        %v5010 = vmax.f32 %v4956, 0.0
        %v5011 = vmax.f32 %v4958, 0.0
        %v5012 = vmax.f32 %v4960, 0.0
        %v5013 = vmax.f32 %v4962, 0.0
        %v5014 = vmax.f32 %v4966, 0.0
        %v5015 = vmax.f32 %v4968, 0.0
        %v5016 = vmax.f32 %v4970, 0.0
        %v5017 = vmax.f32 %v4972, 0.0
        %v5018 = vmax.f32 %v4976, 0.0
        %v5019 = vmax.f32 %v4978, 0.0
        %v5020 = vmax.f32 %v4980, 0.0
        %v5021 = vmax.f32 %v4982, 0.0
        %v5022 = vmax.f32 %v4986, 0.0
        %v5023 = vmax.f32 %v4988, 0.0
        %v5024 = vmax.f32 %v4990, 0.0
        %v5025 = vmax.f32 %v4992, 0.0
        %v5026 = vpack.c.bf16 %v4996, %v4994
        %v5027 = vpack.c.bf16 %v4997, %v4995
        %v5028 = vpack.c.bf16 %v5000, %v4998
        %v5029 = vpack.c.bf16 %v5001, %v4999
        %v5030 = vpack.c.bf16 %v5004, %v5002
        %v5031 = vpack.c.bf16 %v5005, %v5003
        %v5032 = vpack.c.bf16 %v5008, %v5006
        %v5033 = vpack.c.bf16 %v5009, %v5007
        %v5034 = vpack.c.bf16 %v5012, %v5010
        %v5035 = vpack.c.bf16 %v5013, %v5011
        %v5036 = vpack.c.bf16 %v5016, %v5014
        %v5037 = vpack.c.bf16 %v5017, %v5015
        %v5038 = vpack.c.bf16 %v5020, %v5018
        %v5039 = vpack.c.bf16 %v5021, %v5019
        %v5040 = vpack.c.bf16 %v5024, %v5022
        %v5041 = vpack.c.bf16 %v5025, %v5023
        %v5042 = vld [vmem:[#allocation23] sm:$0xf]
        %v5043 = vld [vmem:[#allocation23 + $0x4] sm:$0xf]
        %v5044 = vld [vmem:[#allocation23 + $0x8] sm:$0xf]
        %v5045 = vld [vmem:[#allocation23 + $0xc] sm:$0xf]
        %v5046 = vld [vmem:[#allocation23 + $0x10] sm:$0xf]
        %v5047 = vld [vmem:[#allocation23 + $0x14] sm:$0xf]
        %v5048 = vld [vmem:[#allocation23 + $0x18] sm:$0xf]
        %v5049 = vld [vmem:[#allocation23 + $0x1c] sm:$0xf]
        %v5050 = vld [vmem:[#allocation23 + $0x20] sm:$0xf]
        %v5051 = vld [vmem:[#allocation23 + $0x24] sm:$0xf]
        %v5052 = vld [vmem:[#allocation23 + $0x28] sm:$0xf]
        %v5053 = vld [vmem:[#allocation23 + $0x2c] sm:$0xf]
        %v5054 = vld [vmem:[#allocation23 + $0x30] sm:$0xf]
        %v5055 = vld [vmem:[#allocation23 + $0x34] sm:$0xf]
        %v5056 = vld [vmem:[#allocation23 + $0x38] sm:$0xf]
        %v5057 = vld [vmem:[#allocation23 + $0x3c] sm:$0xf]
        %v5058 = vld [vmem:[#allocation23 + $0x40] sm:$0xf]
        %v5059 = vld [vmem:[#allocation23 + $0x44] sm:$0xf]
        %v5060 = vld [vmem:[#allocation23 + $0x48] sm:$0xf]
        %v5061 = vld [vmem:[#allocation23 + $0x4c] sm:$0xf]
        %v5062 = vld [vmem:[#allocation23 + $0x50] sm:$0xf]
        %v5063 = vld [vmem:[#allocation23 + $0x54] sm:$0xf]
        %v5064 = vld [vmem:[#allocation23 + $0x58] sm:$0xf]
        %v5065 = vld [vmem:[#allocation23 + $0x5c] sm:$0xf]
        %v5066 = vld [vmem:[#allocation23 + $0x60] sm:$0xf]
        %v5067 = vld [vmem:[#allocation23 + $0x64] sm:$0xf]
        %v5068 = vld [vmem:[#allocation23 + $0x68] sm:$0xf]
        %v5069 = vld [vmem:[#allocation23 + $0x6c] sm:$0xf]
        %v5070 = vld [vmem:[#allocation23 + $0x70] sm:$0xf]
        %v5071 = vld [vmem:[#allocation23 + $0x74] sm:$0xf]
        %v5072 = vld [vmem:[#allocation23 + $0x78] sm:$0xf]
        %v5073 = vld [vmem:[#allocation23 + $0x7c] sm:$0xf]
        %v5074 = vld [vmem:[#allocation25] sm:$0x1]
        %v5076 = vlaneseq
        %v5077 = vshrl.u32 %v5076, 7
        %v5078 = vsub.s32 0, %v5077
        %v5079 = vrot.slane %v5074, %v5078
        %v5113 = vunpack.c.l.b16 %v5042
        %v5114 = vunpack.c.l.b16 %v5043
        %v5115 = vunpack.c.l.b16 %v5044
        %v5116 = vunpack.c.l.b16 %v5045
        %v5117 = vunpack.c.l.b16 %v5046
        %v5118 = vunpack.c.l.b16 %v5047
        %v5119 = vunpack.c.l.b16 %v5048
        %v5120 = vunpack.c.l.b16 %v5049
        %v5121 = vunpack.c.l.b16 %v5050
        %v5122 = vunpack.c.l.b16 %v5051
        %v5123 = vunpack.c.l.b16 %v5052
        %v5124 = vunpack.c.l.b16 %v5053
        %v5125 = vunpack.c.l.b16 %v5054
        %v5126 = vunpack.c.l.b16 %v5055
        %v5127 = vunpack.c.l.b16 %v5056
        %v5128 = vunpack.c.l.b16 %v5057
        %v5129 = vunpack.c.l.b16 %v5058
        %v5130 = vunpack.c.l.b16 %v5059
        %v5131 = vunpack.c.l.b16 %v5060
        %v5132 = vunpack.c.l.b16 %v5061
        %v5133 = vunpack.c.l.b16 %v5062
        %v5134 = vunpack.c.l.b16 %v5063
        %v5135 = vunpack.c.l.b16 %v5064
        %v5136 = vunpack.c.l.b16 %v5065
        %v5137 = vunpack.c.l.b16 %v5066
        %v5138 = vunpack.c.l.b16 %v5067
        %v5139 = vunpack.c.l.b16 %v5068
        %v5140 = vunpack.c.l.b16 %v5069
        %v5141 = vunpack.c.l.b16 %v5070
        %v5142 = vunpack.c.l.b16 %v5071
        %v5143 = vunpack.c.l.b16 %v5072
        %v5144 = vunpack.c.l.b16 %v5073
        %v5145 = vpack.c.b16 %v5114, %v5113
        %v5146 = vpack.c.b16 %v5116, %v5115
        %v5147 = vpack.c.b16 %v5118, %v5117
        %v5148 = vpack.c.b16 %v5120, %v5119
        %v5149 = vpack.c.b16 %v5122, %v5121
        %v5150 = vpack.c.b16 %v5124, %v5123
        %v5151 = vpack.c.b16 %v5126, %v5125
        %v5152 = vpack.c.b16 %v5128, %v5127
        %v5153 = vpack.c.b16 %v5130, %v5129
        %v5154 = vpack.c.b16 %v5132, %v5131
        %v5155 = vpack.c.b16 %v5134, %v5133
        %v5156 = vpack.c.b16 %v5136, %v5135
        %v5157 = vpack.c.b16 %v5138, %v5137
        %v5158 = vpack.c.b16 %v5140, %v5139
        %v5159 = vpack.c.b16 %v5142, %v5141
        %v5160 = vpack.c.b16 %v5144, %v5143
        %5177 = vmatprep.subr.bf16.mxu0 0
        %5178 = vmatpush1.bf16.msra.mxu0 %v5145
        %5179 = vmatprep.subr.bf16.mxu0 0
        %5180 = vmatpush1.bf16.msra.mxu0 %v5146
        %5181 = vmatprep.subr.bf16.mxu0 0
        %5182 = vmatpush1.bf16.msra.mxu0 %v5147
        %5183 = vmatprep.subr.bf16.mxu0 0
        %5184 = vmatpush1.bf16.msra.mxu0 %v5148
        %5185 = vmatprep.subr.bf16.mxu0 0
        %5186 = vmatpush1.bf16.msra.mxu0 %v5149
        %5187 = vmatprep.subr.bf16.mxu0 0
        %5188 = vmatpush1.bf16.msra.mxu0 %v5150
        %5189 = vmatprep.subr.bf16.mxu0 0
        %5190 = vmatpush1.bf16.msra.mxu0 %v5151
        %5191 = vmatprep.subr.bf16.mxu0 0
        %5192 = vmatpush1.bf16.msra.mxu0 %v5152
        %5193 = vmatprep.subr.bf16.mxu0 0
        %5194 = vmatpush1.bf16.msra.mxu0 %v5153
        %5195 = vmatprep.subr.bf16.mxu0 0
        %5196 = vmatpush1.bf16.msra.mxu0 %v5154
        %5197 = vmatprep.subr.bf16.mxu0 0
        %5198 = vmatpush1.bf16.msra.mxu0 %v5155
        %5199 = vmatprep.subr.bf16.mxu0 0
        %5200 = vmatpush1.bf16.msra.mxu0 %v5156
        %5201 = vmatprep.subr.bf16.mxu0 0
        %5202 = vmatpush1.bf16.msra.mxu0 %v5157
        %5203 = vmatprep.subr.bf16.mxu0 0
        %5204 = vmatpush1.bf16.msra.mxu0 %v5158
        %5205 = vmatprep.subr.bf16.mxu0 0
        %5206 = vmatpush1.bf16.msra.mxu0 %v5159
        %5207 = vmatprep.subr.bf16.mxu0 0
        %5208 = vmatpush1.bf16.msra.mxu0 %v5160
        %5209 = vmatprep.mubr.bf16.mxu0 %v5027
        %5210 = vmatmul.mubr.bf16.gmra.mrb[0].mxu0 %v5026
        %v5211 = vpop.f32.mrb[0].mxu0
        %v5212 = vadd.f32 %v5079, %v5211
        %v5213 = vpop.f32.mrb[0].mxu0
        %v5214 = vpop.f32.mrb[0].mxu0
        %v5215 = vadd.f32 %v5079, %v5214
        %v5216 = vpop.f32.mrb[0].mxu0
        %5217 = vmatprep.mubr.bf16.mxu0 %v5029
        %5218 = vmatmul.mubr.bf16.gmra.mrb[0].mxu0 %v5028
        %v5219 = vpop.f32.mrb[0].mxu0
        %v5220 = vadd.f32 %v5079, %v5219
        %v5221 = vpop.f32.mrb[0].mxu0
        %v5222 = vpop.f32.mrb[0].mxu0
        %v5223 = vadd.f32 %v5079, %v5222
        %v5224 = vpop.f32.mrb[0].mxu0
        %5225 = vmatprep.mubr.bf16.mxu0 %v5031
        %5226 = vmatmul.mubr.bf16.gmra.mrb[0].mxu0 %v5030
        %v5227 = vpop.f32.mrb[0].mxu0
        %v5228 = vadd.f32 %v5079, %v5227
        %v5229 = vpop.f32.mrb[0].mxu0
        %v5230 = vpop.f32.mrb[0].mxu0
        %v5231 = vadd.f32 %v5079, %v5230
        %v5232 = vpop.f32.mrb[0].mxu0
        %5233 = vmatprep.mubr.bf16.mxu0 %v5033
        %5234 = vmatmul.mubr.bf16.gmra.mrb[0].mxu0 %v5032
        %v5235 = vpop.f32.mrb[0].mxu0
        %v5236 = vadd.f32 %v5079, %v5235
        %v5237 = vpop.f32.mrb[0].mxu0
        %v5238 = vpop.f32.mrb[0].mxu0
        %v5239 = vadd.f32 %v5079, %v5238
        %v5240 = vpop.f32.mrb[0].mxu0
        %5241 = vmatprep.mubr.bf16.mxu0 %v5035
        %5242 = vmatmul.mubr.bf16.gmra.mrb[0].mxu0 %v5034
        %v5243 = vpop.f32.mrb[0].mxu0
        %v5244 = vadd.f32 %v5079, %v5243
        %v5245 = vpop.f32.mrb[0].mxu0
        %v5246 = vpop.f32.mrb[0].mxu0
        %v5247 = vadd.f32 %v5079, %v5246
        %v5248 = vpop.f32.mrb[0].mxu0
        %5249 = vmatprep.mubr.bf16.mxu0 %v5037
        %5250 = vmatmul.mubr.bf16.gmra.mrb[0].mxu0 %v5036
        %v5251 = vpop.f32.mrb[0].mxu0
        %v5252 = vadd.f32 %v5079, %v5251
        %v5253 = vpop.f32.mrb[0].mxu0
        %v5254 = vpop.f32.mrb[0].mxu0
        %v5255 = vadd.f32 %v5079, %v5254
        %v5256 = vpop.f32.mrb[0].mxu0
        %5257 = vmatprep.mubr.bf16.mxu0 %v5039
        %5258 = vmatmul.mubr.bf16.gmra.mrb[0].mxu0 %v5038
        %v5259 = vpop.f32.mrb[0].mxu0
        %v5260 = vadd.f32 %v5079, %v5259
        %v5261 = vpop.f32.mrb[0].mxu0
        %v5262 = vpop.f32.mrb[0].mxu0
        %v5263 = vadd.f32 %v5079, %v5262
        %v5264 = vpop.f32.mrb[0].mxu0
        %5265 = vmatprep.mubr.bf16.mxu0 %v5041
        %5266 = vmatmul.mubr.bf16.gmra.mrb[0].mxu0 %v5040
        %v5267 = vpop.f32.mrb[0].mxu0
        %v5268 = vadd.f32 %v5079, %v5267
        %v5269 = vpop.f32.mrb[0].mxu0
        %v5270 = vpop.f32.mrb[0].mxu0
        %v5271 = vadd.f32 %v5079, %v5270
        %v5272 = vpop.f32.mrb[0].mxu0
        %5273 = vdwg.mxu0
        %v5274 = vadd.f32 %v4749, %v5212
        %v5275 = vadd.f32 %v4750, %v5215
        %v5276 = vadd.f32 %v4751, %v5220
        %v5277 = vadd.f32 %v4752, %v5223
        %v5278 = vadd.f32 %v4753, %v5228
        %v5279 = vadd.f32 %v4754, %v5231
        %v5280 = vadd.f32 %v4755, %v5236
        %v5281 = vadd.f32 %v4756, %v5239
        %v5282 = vadd.f32 %v4757, %v5244
        %v5283 = vadd.f32 %v4758, %v5247
        %v5284 = vadd.f32 %v4759, %v5252
        %v5285 = vadd.f32 %v4760, %v5255
        %v5286 = vadd.f32 %v4761, %v5260
        %v5287 = vadd.f32 %v4762, %v5263
        %v5288 = vadd.f32 %v4763, %v5268
        %v5289 = vadd.f32 %v4764, %v5271
        %5290 = vadd.xlane.f32.xlu0 %v5274
        %v5291 = vpop.xlane.xlu0 %5290
        %5292 = vadd.xlane.f32.xlu0 %v5275
        %v5293 = vpop.xlane.xlu0 %5292
        %5294 = vadd.xlane.f32.xlu0 %v5276
        %v5295 = vpop.xlane.xlu0 %5294
        %5296 = vadd.xlane.f32.xlu0 %v5277
        %v5297 = vpop.xlane.xlu0 %5296
        %5298 = vadd.xlane.f32.xlu0 %v5278
        %v5299 = vpop.xlane.xlu0 %5298
        %5300 = vadd.xlane.f32.xlu0 %v5279
        %v5301 = vpop.xlane.xlu0 %5300
        %5302 = vadd.xlane.f32.xlu0 %v5280
        %v5303 = vpop.xlane.xlu0 %5302
        %5304 = vadd.xlane.f32.xlu0 %v5281
        %v5305 = vpop.xlane.xlu0 %5304
        %5306 = vadd.xlane.f32.xlu0 %v5282
        %v5307 = vpop.xlane.xlu0 %5306
        %5308 = vadd.xlane.f32.xlu0 %v5283
        %v5309 = vpop.xlane.xlu0 %5308
        %5310 = vadd.xlane.f32.xlu0 %v5284
        %v5311 = vpop.xlane.xlu0 %5310
        %5312 = vadd.xlane.f32.xlu0 %v5285
        %v5313 = vpop.xlane.xlu0 %5312
        %5314 = vadd.xlane.f32.xlu0 %v5286
        %v5315 = vpop.xlane.xlu0 %5314
        %5316 = vadd.xlane.f32.xlu0 %v5287
        %v5317 = vpop.xlane.xlu0 %5316
        %5318 = vadd.xlane.f32.xlu0 %v5288
        %v5319 = vpop.xlane.xlu0 %5318
        %5320 = vadd.xlane.f32.xlu0 %v5289
        %v5321 = vpop.xlane.xlu0 %5320
        %v5322 = vmul.f32 %v5291, %v4574
        %v5323 = vmul.f32 %v5293, %v4574
        %v5324 = vmul.f32 %v5295, %v4574
        %v5325 = vmul.f32 %v5297, %v4574
        %v5326 = vmul.f32 %v5299, %v4574
        %v5327 = vmul.f32 %v5301, %v4574
        %v5328 = vmul.f32 %v5303, %v4574
        %v5329 = vmul.f32 %v5305, %v4574
        %v5330 = vmul.f32 %v5307, %v4574
        %v5331 = vmul.f32 %v5309, %v4574
        %v5332 = vmul.f32 %v5311, %v4574
        %v5333 = vmul.f32 %v5313, %v4574
        %v5334 = vmul.f32 %v5315, %v4574
        %v5335 = vmul.f32 %v5317, %v4574
        %v5336 = vmul.f32 %v5319, %v4574
        %v5337 = vmul.f32 %v5321, %v4574
        %v5338 = vsub.f32 %v5274, %v5322
        %v5339 = vsub.f32 %v5275, %v5323
        %v5340 = vsub.f32 %v5276, %v5324
        %v5341 = vsub.f32 %v5277, %v5325
        %v5342 = vsub.f32 %v5278, %v5326
        %v5343 = vsub.f32 %v5279, %v5327
        %v5344 = vsub.f32 %v5280, %v5328
        %v5345 = vsub.f32 %v5281, %v5329
        %v5346 = vsub.f32 %v5282, %v5330
        %v5347 = vsub.f32 %v5283, %v5331
        %v5348 = vsub.f32 %v5284, %v5332
        %v5349 = vsub.f32 %v5285, %v5333
        %v5350 = vsub.f32 %v5286, %v5334
        %v5351 = vsub.f32 %v5287, %v5335
        %v5352 = vsub.f32 %v5288, %v5336
        %v5353 = vsub.f32 %v5289, %v5337
        %v5354 = vmul.f32 %v5338, %v5338
        %v5355 = vmul.f32 %v5339, %v5339
        %v5356 = vmul.f32 %v5340, %v5340
        %v5357 = vmul.f32 %v5341, %v5341
        %v5358 = vmul.f32 %v5342, %v5342
        %v5359 = vmul.f32 %v5343, %v5343
        %v5360 = vmul.f32 %v5344, %v5344
        %v5361 = vmul.f32 %v5345, %v5345
        %v5362 = vmul.f32 %v5346, %v5346
        %v5363 = vmul.f32 %v5347, %v5347
        %v5364 = vmul.f32 %v5348, %v5348
        %v5365 = vmul.f32 %v5349, %v5349
        %v5366 = vmul.f32 %v5350, %v5350
        %v5367 = vmul.f32 %v5351, %v5351
        %v5368 = vmul.f32 %v5352, %v5352
        %v5369 = vmul.f32 %v5353, %v5353
        %5370 = vadd.xlane.f32.xlu0 %v5354
        %v5371 = vpop.xlane.xlu0 %5370
        %5372 = vadd.xlane.f32.xlu0 %v5355
        %v5373 = vpop.xlane.xlu0 %5372
        %5374 = vadd.xlane.f32.xlu0 %v5356
        %v5375 = vpop.xlane.xlu0 %5374
        %5376 = vadd.xlane.f32.xlu0 %v5357
        %v5377 = vpop.xlane.xlu0 %5376
        %5378 = vadd.xlane.f32.xlu0 %v5358
        %v5379 = vpop.xlane.xlu0 %5378
        %5380 = vadd.xlane.f32.xlu0 %v5359
        %v5381 = vpop.xlane.xlu0 %5380
        %5382 = vadd.xlane.f32.xlu0 %v5360
        %v5383 = vpop.xlane.xlu0 %5382
        %5384 = vadd.xlane.f32.xlu0 %v5361
        %v5385 = vpop.xlane.xlu0 %5384
        %5386 = vadd.xlane.f32.xlu0 %v5362
        %v5387 = vpop.xlane.xlu0 %5386
        %5388 = vadd.xlane.f32.xlu0 %v5363
        %v5389 = vpop.xlane.xlu0 %5388
        %5390 = vadd.xlane.f32.xlu0 %v5364
        %v5391 = vpop.xlane.xlu0 %5390
        %5392 = vadd.xlane.f32.xlu0 %v5365
        %v5393 = vpop.xlane.xlu0 %5392
        %5394 = vadd.xlane.f32.xlu0 %v5366
        %v5395 = vpop.xlane.xlu0 %5394
        %5396 = vadd.xlane.f32.xlu0 %v5367
        %v5397 = vpop.xlane.xlu0 %5396
        %5398 = vadd.xlane.f32.xlu0 %v5368
        %v5399 = vpop.xlane.xlu0 %5398
        %5400 = vadd.xlane.f32.xlu0 %v5369
        %v5401 = vpop.xlane.xlu0 %5400
        %v5402 = vmul.f32 %v5371, %v4574
        %v5403 = vmul.f32 %v5373, %v4574
        %v5404 = vmul.f32 %v5375, %v4574
        %v5405 = vmul.f32 %v5377, %v4574
        %v5406 = vmul.f32 %v5379, %v4574
        %v5407 = vmul.f32 %v5381, %v4574
        %v5408 = vmul.f32 %v5383, %v4574
        %v5409 = vmul.f32 %v5385, %v4574
        %v5410 = vmul.f32 %v5387, %v4574
        %v5411 = vmul.f32 %v5389, %v4574
        %v5412 = vmul.f32 %v5391, %v4574
        %v5413 = vmul.f32 %v5393, %v4574
        %v5414 = vmul.f32 %v5395, %v4574
        %v5415 = vmul.f32 %v5397, %v4574
        %v5416 = vmul.f32 %v5399, %v4574
        %v5417 = vmul.f32 %v5401, %v4574
        %v5418 = vadd.f32 %v5402, 1e-05
        %v5419 = vadd.f32 %v5403, 1e-05
        %v5420 = vadd.f32 %v5404, 1e-05
        %v5421 = vadd.f32 %v5405, 1e-05
        %v5422 = vadd.f32 %v5406, 1e-05
        %v5423 = vadd.f32 %v5407, 1e-05
        %v5424 = vadd.f32 %v5408, 1e-05
        %v5425 = vadd.f32 %v5409, 1e-05
        %v5426 = vadd.f32 %v5410, 1e-05
        %v5427 = vadd.f32 %v5411, 1e-05
        %v5428 = vadd.f32 %v5412, 1e-05
        %v5429 = vadd.f32 %v5413, 1e-05
        %v5430 = vadd.f32 %v5414, 1e-05
        %v5431 = vadd.f32 %v5415, 1e-05
        %v5432 = vadd.f32 %v5416, 1e-05
        %v5433 = vadd.f32 %v5417, 1e-05
        %v5434 = vrsqrt.pop %v5418
        %v5435 = vrsqrt.pop %v5419
        %v5436 = vrsqrt.pop %v5420
        %v5437 = vrsqrt.pop %v5421
        %v5438 = vrsqrt.pop %v5422
        %v5439 = vrsqrt.pop %v5423
        %v5440 = vrsqrt.pop %v5424
        %v5441 = vrsqrt.pop %v5425
        %v5442 = vrsqrt.pop %v5426
        %v5443 = vrsqrt.pop %v5427
        %v5444 = vrsqrt.pop %v5428
        %v5445 = vrsqrt.pop %v5429
        %v5446 = vrsqrt.pop %v5430
        %v5447 = vrsqrt.pop %v5431
        %v5448 = vrsqrt.pop %v5432
        %v5449 = vrsqrt.pop %v5433
        %v5450 = vmul.f32 %v5338, %v5434
        %v5451 = vmul.f32 %v5339, %v5435
        %v5452 = vmul.f32 %v5340, %v5436
        %v5453 = vmul.f32 %v5341, %v5437
        %v5454 = vmul.f32 %v5342, %v5438
        %v5455 = vmul.f32 %v5343, %v5439
        %v5456 = vmul.f32 %v5344, %v5440
        %v5457 = vmul.f32 %v5345, %v5441
        %v5458 = vmul.f32 %v5346, %v5442
        %v5459 = vmul.f32 %v5347, %v5443
        %v5460 = vmul.f32 %v5348, %v5444
        %v5461 = vmul.f32 %v5349, %v5445
        %v5462 = vmul.f32 %v5350, %v5446
        %v5463 = vmul.f32 %v5351, %v5447
        %v5464 = vmul.f32 %v5352, %v5448
        %v5465 = vmul.f32 %v5353, %v5449
        %v5466 = vld [vmem:[#allocation26] sm:$0x1]
        %v5468 = vlaneseq
        %v5469 = vshrl.u32 %v5468, 7
        %v5470 = vsub.s32 0, %v5469
        %v5471 = vrot.slane %v5466, %v5470
        %v5473 = vmul.f32 %v5450, %v5471
        %v5474 = vmul.f32 %v5451, %v5471
        %v5475 = vmul.f32 %v5452, %v5471
        %v5476 = vmul.f32 %v5453, %v5471
        %v5477 = vmul.f32 %v5454, %v5471
        %v5478 = vmul.f32 %v5455, %v5471
        %v5479 = vmul.f32 %v5456, %v5471
        %v5480 = vmul.f32 %v5457, %v5471
        %v5481 = vmul.f32 %v5458, %v5471
        %v5482 = vmul.f32 %v5459, %v5471
        %v5483 = vmul.f32 %v5460, %v5471
        %v5484 = vmul.f32 %v5461, %v5471
        %v5485 = vmul.f32 %v5462, %v5471
        %v5486 = vmul.f32 %v5463, %v5471
        %v5487 = vmul.f32 %v5464, %v5471
        %v5488 = vmul.f32 %v5465, %v5471
        %v5489 = vld [vmem:[#allocation28] sm:$0x1]
        %v5491 = vlaneseq
        %v5492 = vshrl.u32 %v5491, 7
        %v5493 = vsub.s32 0, %v5492
        %v5494 = vrot.slane %v5489, %v5493
        %v5496 = vadd.f32 %v5473, %v5494
        %v5497 = vadd.f32 %v5474, %v5494
        %v5498 = vadd.f32 %v5475, %v5494
        %v5499 = vadd.f32 %v5476, %v5494
        %v5500 = vadd.f32 %v5477, %v5494
        %v5501 = vadd.f32 %v5478, %v5494
        %v5502 = vadd.f32 %v5479, %v5494
        %v5503 = vadd.f32 %v5480, %v5494
        %v5504 = vadd.f32 %v5481, %v5494
        %v5505 = vadd.f32 %v5482, %v5494
        %v5506 = vadd.f32 %v5483, %v5494
        %v5507 = vadd.f32 %v5484, %v5494
        %v5508 = vadd.f32 %v5485, %v5494
        %v5509 = vadd.f32 %v5486, %v5494
        %v5510 = vadd.f32 %v5487, %v5494
        %v5511 = vadd.f32 %v5488, %v5494
        %5512 = vxpose.xlu0.b32.start [1/16] %v5496, 128
        %5513 = vxpose.xlu0.b32.cont [2/16] %v5497, 128
        %5514 = vxpose.xlu0.b32.cont [3/16] %v5498, 128
        %5515 = vxpose.xlu0.b32.cont [4/16] %v5499, 128
        %5516 = vxpose.xlu0.b32.cont [5/16] %v5500, 128
        %5517 = vxpose.xlu0.b32.cont [6/16] %v5501, 128
        %5518 = vxpose.xlu0.b32.cont [7/16] %v5502, 128
        %5519 = vxpose.xlu0.b32.cont [8/16] %v5503, 128
        %5520 = vxpose.xlu0.b32.cont [9/16] %v5504, 128
        %5521 = vxpose.xlu0.b32.cont [10/16] %v5505, 128
        %5522 = vxpose.xlu0.b32.cont [11/16] %v5506, 128
        %5523 = vxpose.xlu0.b32.cont [12/16] %v5507, 128
        %5524 = vxpose.xlu0.b32.cont [13/16] %v5508, 128
        %5525 = vxpose.xlu0.b32.cont [14/16] %v5509, 128
        %5526 = vxpose.xlu0.b32.cont [15/16] %v5510, 128
        %5527 = vxpose.xlu0.b32.end [16/16] %v5511, 128
        %v5528 = vpop.trf.xlu0
        %v5529 = vpop.trf.xlu0
        %v5530 = vpop.trf.xlu0
        %v5531 = vpop.trf.xlu0
        %v5532 = vpop.trf.xlu0
        %v5533 = vpop.trf.xlu0
        %v5534 = vpop.trf.xlu0
        %v5535 = vpop.trf.xlu0
        %v5536 = vpop.trf.xlu0
        %v5537 = vpop.trf.xlu0
        %v5538 = vpop.trf.xlu0
        %v5539 = vpop.trf.xlu0
        %v5540 = vpop.trf.xlu0
        %v5541 = vpop.trf.xlu0
        %v5542 = vpop.trf.xlu0
        %v5543 = vpop.trf.xlu0
        %5544 = vst [vmem:[%s711] sm:$0xff] %v5528
        %5545 = vst [vmem:[%s711 + $0x8] sm:$0xff] %v5529
        %5546 = vst [vmem:[%s711 + $0x10] sm:$0xff] %v5530
        %5547 = vst [vmem:[%s711 + $0x18] sm:$0xff] %v5531
        %5548 = vst [vmem:[%s711 + $0x20] sm:$0xff] %v5532
        %5549 = vst [vmem:[%s711 + $0x28] sm:$0xff] %v5533
        %5550 = vst [vmem:[%s711 + $0x30] sm:$0xff] %v5534
        %5551 = vst [vmem:[%s711 + $0x38] sm:$0xff] %v5535
        %5552 = vst [vmem:[%s711 + $0x40] sm:$0xff] %v5536
        %5553 = vst [vmem:[%s711 + $0x48] sm:$0xff] %v5537
        %5554 = vst [vmem:[%s711 + $0x50] sm:$0xff] %v5538
        %5555 = vst [vmem:[%s711 + $0x58] sm:$0xff] %v5539
        %5556 = vst [vmem:[%s711 + $0x60] sm:$0xff] %v5540
        %5557 = vst [vmem:[%s711 + $0x68] sm:$0xff] %v5541
        %5558 = vst [vmem:[%s711 + $0x70] sm:$0xff] %v5542
        %5559 = vst [vmem:[%s711 + $0x78] sm:$0xff] %v5543
        %s5560 = sand.u32 %s381, 1
        %s5561 = scalar_lea.sflag [#allocation7], %s5560
        %s5562 = sand.u32 %s381, 1
        %s5563 = smul.addr %s5562, 128
        %s5564 = scalar_lea.vmem [#allocation29], %s5563
        // Predicated region
        $region145: #{tpu_custom_call.1} parent=79 // pred_check
          %p5565 = pneg %p391
        $region146: #{tpu_custom_call.1} parent=79 // pred_check_branch
          %5567 = sbr.rel (%p5565) target = $region148
        $region147: #{tpu_custom_call.1} parent=79 // pred_region
          %s5569 = ssub.s32 2048, 2048
          %5570 = vsyncadd %s5561, %s5569
          %s5571 = smul.addr %s43, 32
          %s5572 = sadd.s32 %s44, %s5571
          %s5573 = smul.addr %s5572, 128
          %s5574 = scalar_lea.hbm %s15, %s5573
          %s5575 = sshll.u32 %s5564, 4
          %s5576 = int_to_ptr.vmem [resolvable:$true] %s5575
          %5581 = dma.vmem_to_hbm [thread:$0]  %s5576, 2048, %s5574, %s5561, 128, 256, 8
        $region148: #{tpu_custom_call.1} parent=79 // pred_fallthru
          _
      $region80: #{tpu_custom_call.1} parent=5 // pred_fallthru
        _
      %p5582 = scmp.le.s32.totalorder 2, %s34
      // Predicated region
      $region149: #{tpu_custom_call.1} parent=5 // pred_check
        %p5583 = pneg %p5582
      $region150: #{tpu_custom_call.1} parent=5 // pred_check_branch
        %5585 = sbr.rel (%p5583) target = $region152
      $region151: #{tpu_custom_call.1} parent=5 // pred_region
        %s5586 = ssub.s32 %s34, 2
        // Predicated region
        $region153: #{tpu_custom_call.1} parent=151 // pred_check
          %p5587 = pneg %p397
        $region154: #{tpu_custom_call.1} parent=151 // pred_check_branch
          %5589 = sbr.rel (%p5587) target = $region156
        $region155: #{tpu_custom_call.1} parent=151 // pred_region
          %s5590 = sand.u32 %s382, 1
          %s5591 = scalar_lea.sflag [#allocation7], %s5590
          %s5592 = sand.u32 %s382, 1
          %s5593 = smul.addr %s5592, 128
          %s5594 = scalar_lea.vmem [#allocation29], %s5593
          %5595 = dma.done %s5591, 2048
        $region156: #{tpu_custom_call.1} parent=151 // pred_fallthru
          _
      $region152: #{tpu_custom_call.1} parent=5 // pred_fallthru
        _
    $region6: #{tpu_custom_call.1} parent=1 // loop_footer
      %s38 = sadd.s32 1, %s34
    $region7: #{tpu_custom_call.1} parent=1 // loop_footer_branch
      %33 = sbr.rel target = $region3
    $region8: #{tpu_custom_call.1} parent=1 // loop_exit
      _
    %5596 = vsyncpa [#allocation6], 1
    %s5597 = scalar_lea.sflag [#allocation6], 1
    %5598 = vsyncpa %s5597, 1
    %5599 = vsyncpa [#allocation9], 1
    %5600 = vsyncpa [#allocation12], 1
    %5601 = vsyncpa [#allocation15], 1
    %5602 = vsyncpa [#allocation18], 1
    %5603 = vsyncpa [#allocation21], 1
    %5604 = vsyncpa [#allocation24], 1
    %5605 = vsyncpa [#allocation27], 1
    %5606 = vsyncpa [#allocation7], 1
    %s5607 = scalar_lea.sflag [#allocation7], 1
    %5608 = vsyncpa %s5607, 1

</llo_original>
